<compile_context>
chip_gen: v7x
topology: tpu7x:2x2x1
jax: 0.10.0
libtpu: 0.0.40
codegen_flags: <defaults>
</compile_context>

<pallas_src>
import functools

import jax
import jax.numpy as jnp
import numpy as np
from jax.experimental import pallas as pl
from jax.experimental.pallas import tpu as pltpu


def _round_up(x, m):
    return ((x + m - 1) // m) * m


# ---------------- configuration (matches module __init__ args) ----------------
NODE_F_DIM = 4
NODE_S_DIM = 8
EDGE_F_DIM = 2
EDGE_S_DIM = 3
HIDDEN_DIM = 8            # must equal NODE_S_DIM (see note above)
OUTPUT_F_DIM = 4
EPS = 1e-12               # F.normalize eps

D_IN = 2 * NODE_F_DIM + EDGE_F_DIM        # frame-feature width of _f       (10)
S_IN = 2 * NODE_S_DIM + EDGE_S_DIM        # scalar-feature width of _s      (19)
D_PAD = _round_up(D_IN, 8)                # padded frame width              (16)
F_PAD = _round_up(OUTPUT_F_DIM, 8)        # padded output-frame width       (8)
BLOCK_E = 512                             # edges per grid step

assert HIDDEN_DIM == NODE_S_DIM, "original slicing requires hidden_dim == node_s_dim"


def _silu(x):
    # nn.SiLU()
    return x * (1.0 / (1.0 + jnp.exp(-x)))


# ------------------------------- Pallas kernel --------------------------------
def _edge_readout_kernel(fT_ref, sT_ref, w1g_ref, w1s_ref, b1_ref, w2_ref, b2_ref,
                         w3_ref, b3_ref, fout_ref, sout_ref, xg_ref, *, D, Dp, Fp):
    """One EdgeReadoutLayer 'GVP block' with the batch axis on lanes.

    fT_ref : [3, Dp, BB]  (_f transposed, zero-padded columns >= D)
    sT_ref : [S, BB]
    weights: [out, in] (W1 split into Gram part [hid, Dp*Dp] + scalar part [hid, S],
             W3/b3 padded so chunk i occupies aligned rows [i*Fp, (i+1)*Fp))
    outputs: fout [3, Fp, BB], sout [H, BB]
    scratch: xg_ref [Dp*Dp, BB] holds the flattened Gram matrix.
    """
    fT = fT_ref[...]                                   # [3, Dp, BB] f32
    sT = sT_ref[...]                                   # [S,  BB]
    BB = fT.shape[-1]

    # Gram matrix, flattened row-major into the scratch: xg[i*Dp + j, b].
    # Padded rows/cols come out exactly zero because fT's padding is zero.
    for i in range(Dp):
        row = fT[:, i:i + 1, :]                        # [3, 1, BB]
        xg_ref[i * Dp:(i + 1) * Dp, :] = jnp.sum(row * fT, axis=0)
    xg = xg_ref[...]                                   # [Dp*Dp, BB]

    # F.normalize(flatten(g), p=2, dim=-1): reciprocal on a [1, BB] row only.
    ss = jnp.sum(xg * xg, axis=0, keepdims=True)       # [1, BB]
    inv = 1.0 / jnp.maximum(jnp.sqrt(ss), EPS)
    xg = xg * inv

    # 3-layer MLP (SiLU), one fused matmul per layer, batch on lanes.
    h = (jnp.dot(w1g_ref[...], xg, preferred_element_type=jnp.float32)
         + jnp.dot(w1s_ref[...], sT, preferred_element_type=jnp.float32)
         + b1_ref[...])
    h = _silu(h)
    h = _silu(jnp.dot(w2_ref[...], h, preferred_element_type=jnp.float32) + b2_ref[...])
    c = jnp.dot(w3_ref[...], h, preferred_element_type=jnp.float32) + b3_ref[...]
    # c: [D*Fp + H, BB]; rows [i*Fp, i*Fp+Fout) hold the i-th output chunk
    # (pad rows are exactly zero), rows [D*Fp, D*Fp+H) hold the scalar output.

    sout_ref[...] = c[D * Fp:, :]                      # [H, BB]

    # f_out[a, o, b] = sum_i _f[b, a, i] * c[b, i*Fout + o]   (VPU, lane-dense)
    acc = jnp.zeros((3, Fp, BB), jnp.float32)
    for i in range(D):
        acc = acc + fT[:, i:i + 1, :] * c[i * Fp:(i + 1) * Fp, :][None, :, :]
    fout_ref[...] = acc


def _gvp_block_lanes(fT, sT, kp, *, block_b):
    """Run the kernel over the (padded, feature-major) edge batch."""
    E_pad = fT.shape[-1]
    S = sT.shape[0]
    assert E_pad % block_b == 0
    grid = (E_pad // block_b,)

    kernel = functools.partial(_edge_readout_kernel, D=D_IN, Dp=D_PAD, Fp=F_PAD)

    def wspec(a):
        # Whole-array blocks with a constant index map; the weights are ~20 KiB
        # total so the (minor) double-buffering overhead is negligible.
        return pl.BlockSpec(a.shape, lambda i: (0,) * a.ndim)

    foutT, soutT = pl.pallas_call(
        kernel,
        out_shape=(jax.ShapeDtypeStruct((3, F_PAD, E_pad), jnp.float32),
                   jax.ShapeDtypeStruct((HIDDEN_DIM, E_pad), jnp.float32)),
        grid=grid,
        in_specs=[
            pl.BlockSpec((3, D_PAD, block_b), lambda i: (0, 0, i)),
            pl.BlockSpec((S, block_b), lambda i: (0, i)),
            wspec(kp["w1g"]), wspec(kp["w1s"]), wspec(kp["b1"]),
            wspec(kp["w2"]), wspec(kp["b2"]),
            wspec(kp["w3"]), wspec(kp["b3"]),
        ],
        out_specs=(pl.BlockSpec((3, F_PAD, block_b), lambda i: (0, 0, i)),
                   pl.BlockSpec((HIDDEN_DIM, block_b), lambda i: (0, i))),
        scratch_shapes=[pltpu.VMEM((D_PAD * D_PAD, block_b), jnp.float32)],
        compiler_params=pltpu.CompilerParams(dimension_semantics=("parallel",)),
    )(fT, sT, kp["w1g"], kp["w1s"], kp["b1"], kp["w2"], kp["b2"], kp["w3"], kp["b3"])
    return foutT, soutT


# ------------------------- forward pass (wrapper glue) -------------------------
def edge_readout_forward(f, s, edge_index, edge_f, edge_s, kp):
    """EdgeReadoutLayer.forward."""
    E = edge_index.shape[1]
    if E == 0:
        # Original returns empty tensors; with static shapes this resolves at trace time.
        return (jnp.zeros((0, 3, OUTPUT_F_DIM), jnp.float32),
                jnp.zeros((0, NODE_S_DIM), jnp.float32))

    src, dst = edge_index[0], edge_index[1]
    # TODO(synk): the f[src]/f[dst] gather + concat still runs as XLA glue; fusing it
    #             into the kernel via scalar-prefetched edge_index is a follow-up.
    _f = jnp.concatenate([f[src], f[dst], edge_f], axis=-1)        # [E, 3, D]
    _s = jnp.concatenate([s[src], s[dst], edge_s], axis=-1)        # [E, S]

    block_b = min(BLOCK_E, _round_up(E, 128))
    E_pad = _round_up(E, block_b)

    # Feature-major, batch-on-lanes layout + zero padding (layout plumbing only).
    fT = jnp.transpose(_f, (1, 2, 0)).astype(jnp.float32)          # [3, D, E]
    fT = jnp.pad(fT, ((0, 0), (0, D_PAD - D_IN), (0, E_pad - E)))
    sT = jnp.pad(_s.T.astype(jnp.float32), ((0, 0), (0, E_pad - E)))

    foutT, soutT = _gvp_block_lanes(fT, sT, kp, block_b=block_b)

    f_c = jnp.transpose(foutT[:, :OUTPUT_F_DIM, :E], (2, 0, 1))    # [E, 3, Fout]
    s_c = soutT[:, :E].T                                           # [E, H]
    return f_c, s_c


# ------------------------ parameter construction / prep ------------------------
def init_linear(key, in_dim, out_dim):
    kw, kb = jax.random.split(key)
    bound = 1.0 / np.sqrt(in_dim)
    w = jax.random.uniform(kw, (in_dim, out_dim), jnp.float32, -bound, bound)
    b = jax.random.uniform(kb, (1, out_dim), jnp.float32, -bound, bound)
    return w, b


def init_mlp(key, in_dim, hid, out_dim):
    k1, k2, k3 = jax.random.split(key, 3)
    w1, b1 = init_linear(k1, in_dim, hid)
    w2, b2 = init_linear(k2, hid, hid)
    w3, b3 = init_linear(k3, hid, out_dim)
    return (w1, b1, w2, b2, w3, b3)


def prepare_kernel_params(params):
    """Transpose to [out, in] and zero-pad to the kernel's aligned layout."""
    w1, b1, w2, b2, w3, b3 = params
    hid = w1.shape[1]
    D, Dp, Fout, Fp = D_IN, D_PAD, OUTPUT_F_DIM, F_PAD

    w1T = w1.T                                                     # [hid, D*D + S]
    w1g = jnp.pad(w1T[:, :D * D].reshape(hid, D, D),
                  ((0, 0), (0, Dp - D), (0, Dp - D))).reshape(hid, Dp * Dp)
    w1s = w1T[:, D * D:]                                           # [hid, S]

    w3T = w3.T                                                     # [D*Fout + H, hid]
    w3f = jnp.pad(w3T[:D * Fout].reshape(D, Fout, hid),
                  ((0, 0), (0, Fp - Fout), (0, 0))).reshape(D * Fp, hid)
    w3p = jnp.concatenate([w3f, w3T[D * Fout:]], axis=0)           # [D*Fp + H, hid]

    b3T = b3.reshape(-1, 1)                                        # [D*Fout + H, 1]
    b3f = jnp.pad(b3T[:D * Fout].reshape(D, Fout, 1),
                  ((0, 0), (0, Fp - Fout), (0, 0))).reshape(D * Fp, 1)
    b3p = jnp.concatenate([b3f, b3T[D * Fout:]], axis=0)           # [D*Fp + H, 1]

    return {"w1g": w1g, "w1s": w1s, "b1": b1.reshape(-1, 1),
            "w2": w2.T, "b2": b2.reshape(-1, 1), "w3": w3p, "b3": b3p}


# ------------------------------ pure-JAX reference ----------------------------
_HI = jax.lax.Precision.HIGHEST


def _mlp_ref(x, params):
    w1, b1, w2, b2, w3, b3 = params
    h = _silu(jnp.dot(x, w1, precision=_HI) + b1)
    h = _silu(jnp.dot(h, w2, precision=_HI) + b2)
    return jnp.dot(h, w3, precision=_HI) + b3


def edge_readout_ref(f, s, edge_index, edge_f, edge_s, params):
    src, dst = edge_index[0], edge_index[1]
    _f = jnp.concatenate([f[src], f[dst], edge_f], axis=-1)
    _s = jnp.concatenate([s[src], s[dst], edge_s], axis=-1)
    g = jnp.einsum('bij,bjk->bik', jnp.swapaxes(_f, -1, -2), _f, precision=_HI)
    g = g.reshape(g.shape[0], -1)
    g = g / jnp.maximum(jnp.sqrt(jnp.sum(g * g, -1, keepdims=True)), EPS)
    x = jnp.concatenate([g, _s], axis=-1)
    c = _mlp_ref(x, params)
    f_c, s_c = c[..., :-HIDDEN_DIM], c[..., -HIDDEN_DIM:]
    f_c = f_c.reshape(f_c.shape[0], _f.shape[-1], -1)
    f_c = jnp.einsum('bij,bjk->bik', _f, f_c, precision=_HI)
    return f_c, s_c


# ------------------------------------ main -------------------------------------
if __name__ == "__main__":
    key = jax.random.PRNGKey(0)
    N, E = 64, 1024                      # 1024 edges -> 2 grid steps of 512
    ks = jax.random.split(key, 7)

    f = jax.random.normal(ks[0], (N, 3, NODE_F_DIM), jnp.float32)
    s = jax.random.normal(ks[1], (N, NODE_S_DIM), jnp.float32)
    edge_f = jax.random.normal(ks[2], (E, 3, EDGE_F_DIM), jnp.float32)
    edge_s = jax.random.normal(ks[3], (E, EDGE_S_DIM), jnp.float32)
    src = jax.random.randint(ks[4], (E,), 0, N, jnp.int32)
    dst = jax.random.randint(ks[5], (E,), 0, N, jnp.int32)
    edge_index = jnp.stack([src, dst])

    # BaseMLP of the EdgeReadoutLayer: in = D^2 + 2*node_s + edge_s, out = D*Fout + node_s
    params = init_mlp(ks[6],
                      D_IN ** 2 + S_IN,
                      HIDDEN_DIM,
                      D_IN * OUTPUT_F_DIM + NODE_S_DIM)
    kp = prepare_kernel_params(params)

    run = jax.jit(edge_readout_forward)
    f_c, s_c = run(f, s, edge_index, edge_f, edge_s, kp)
    (f_c, s_c) = jax.block_until_ready((f_c, s_c))

    assert f_c.shape == (E, 3, OUTPUT_F_DIM)
    assert s_c.shape == (E, HIDDEN_DIM)

    # Tightened validation (was 5e-2): the kernel path is all-f32.
    f_ref, s_ref = edge_readout_ref(f, s, edge_index, edge_f, edge_s, params)
    np.testing.assert_allclose(np.asarray(f_c), np.asarray(f_ref), rtol=1e-3, atol=1e-3)
    np.testing.assert_allclose(np.asarray(s_c), np.asarray(s_ref), rtol=1e-3, atol=1e-3)

    print("KERNEL_OK")
</pallas_src>

<mosaic_0001>
module attributes {stable_mosaic.version = 11 : i64} {
  func.func @_edge_readout_kernel(%arg0: i32, %arg1: memref<3x16x512xf32, #tpu.memory_space<vmem>>, %arg2: memref<19x512xf32, #tpu.memory_space<vmem>>, %arg3: memref<8x256xf32, #tpu.memory_space<vmem>>, %arg4: memref<8x19xf32, #tpu.memory_space<vmem>>, %arg5: memref<8x1xf32, #tpu.memory_space<vmem>>, %arg6: memref<8x8xf32, #tpu.memory_space<vmem>>, %arg7: memref<8x1xf32, #tpu.memory_space<vmem>>, %arg8: memref<88x8xf32, #tpu.memory_space<vmem>>, %arg9: memref<88x1xf32, #tpu.memory_space<vmem>>, %arg10: memref<3x8x512xf32, #tpu.memory_space<vmem>>, %arg11: memref<8x512xf32, #tpu.memory_space<vmem>>, %arg12: memref<256x512xf32, #tpu.memory_space<vmem>>) attributes {dimension_semantics = [#tpu.dimension_semantics<parallel>], iteration_bounds = array<i64: 2>, scalar_prefetch = 0 : i64, scratch_operands = 1 : i64, tpu.core_type = #tpu.core_type<tc>, window_params = [{transform_indices = @transform_0, window_bounds = array<i64: 3, 16, 512>}, {transform_indices = @transform_1, window_bounds = array<i64: 19, 512>}, {pipeline_mode = #tpu.pipeline_mode<synchronous>, transform_indices = @transform_2, window_bounds = array<i64: 8, 256>}, {pipeline_mode = #tpu.pipeline_mode<synchronous>, transform_indices = @transform_3, window_bounds = array<i64: 8, 19>}, {pipeline_mode = #tpu.pipeline_mode<synchronous>, transform_indices = @transform_4, window_bounds = array<i64: 8, 1>}, {pipeline_mode = #tpu.pipeline_mode<synchronous>, transform_indices = @transform_5, window_bounds = array<i64: 8, 8>}, {pipeline_mode = #tpu.pipeline_mode<synchronous>, transform_indices = @transform_6, window_bounds = array<i64: 8, 1>}, {pipeline_mode = #tpu.pipeline_mode<synchronous>, transform_indices = @transform_7, window_bounds = array<i64: 88, 8>}, {pipeline_mode = #tpu.pipeline_mode<synchronous>, transform_indices = @transform_8, window_bounds = array<i64: 88, 1>}, {transform_indices = @transform_9, window_bounds = array<i64: 3, 8, 512>}, {transform_indices = @transform_10, window_bounds = array<i64: 8, 512>}]} {
    %c0 = arith.constant 0 : index
    %c0_0 = arith.constant 0 : index
    %c0_1 = arith.constant 0 : index
    %0 = vector.load %arg1[%c0, %c0_0, %c0_1] : memref<3x16x512xf32, #tpu.memory_space<vmem>>, vector<3x16x512xf32>
    %c0_2 = arith.constant 0 : index
    %c0_3 = arith.constant 0 : index
    %1 = vector.load %arg2[%c0_2, %c0_3] : memref<19x512xf32, #tpu.memory_space<vmem>>, vector<19x512xf32>
    %2 = vector.extract_strided_slice %0 {offsets = [0, 0, 0], sizes = [3, 1, 512], strides = [1, 1, 1]} : vector<3x16x512xf32> to vector<3x1x512xf32>
    %3 = vector.broadcast %2 : vector<3x1x512xf32> to vector<3x16x512xf32>
    %4 = arith.mulf %3, %0 : vector<3x16x512xf32>
    %cst = arith.constant dense<0.000000e+00> : vector<16x512xf32>
    %5 = vector.multi_reduction <add>, %4, %cst [0] : vector<3x16x512xf32> to vector<16x512xf32>
    %c0_4 = arith.constant 0 : index
    %c0_5 = arith.constant 0 : index
    %6 = vector.load %arg12[%c0_4, %c0_5] : memref<256x512xf32, #tpu.memory_space<vmem>>, vector<16x512xf32>
    tpu.vector_store %arg12[%c0_4, %c0_5], %5 {strides = array<i32>} : memref<256x512xf32, #tpu.memory_space<vmem>>, vector<16x512xf32>,
    %7 = vector.extract_strided_slice %0 {offsets = [0, 1, 0], sizes = [3, 1, 512], strides = [1, 1, 1]} : vector<3x16x512xf32> to vector<3x1x512xf32>
    %8 = vector.broadcast %7 : vector<3x1x512xf32> to vector<3x16x512xf32>
    %9 = arith.mulf %8, %0 : vector<3x16x512xf32>
    %cst_6 = arith.constant dense<0.000000e+00> : vector<16x512xf32>
    %10 = vector.multi_reduction <add>, %9, %cst_6 [0] : vector<3x16x512xf32> to vector<16x512xf32>
    %c16 = arith.constant 16 : index
    %c0_7 = arith.constant 0 : index
    %11 = vector.load %arg12[%c16, %c0_7] : memref<256x512xf32, #tpu.memory_space<vmem>>, vector<16x512xf32>
    tpu.vector_store %arg12[%c16, %c0_7], %10 {strides = array<i32>} : memref<256x512xf32, #tpu.memory_space<vmem>>, vector<16x512xf32>,
    %12 = vector.extract_strided_slice %0 {offsets = [0, 2, 0], sizes = [3, 1, 512], strides = [1, 1, 1]} : vector<3x16x512xf32> to vector<3x1x512xf32>
    %13 = vector.broadcast %12 : vector<3x1x512xf32> to vector<3x16x512xf32>
    %14 = arith.mulf %13, %0 : vector<3x16x512xf32>
    %cst_8 = arith.constant dense<0.000000e+00> : vector<16x512xf32>
    %15 = vector.multi_reduction <add>, %14, %cst_8 [0] : vector<3x16x512xf32> to vector<16x512xf32>
    %c32 = arith.constant 32 : index
    %c0_9 = arith.constant 0 : index
    %16 = vector.load %arg12[%c32, %c0_9] : memref<256x512xf32, #tpu.memory_space<vmem>>, vector<16x512xf32>
    tpu.vector_store %arg12[%c32, %c0_9], %15 {strides = array<i32>} : memref<256x512xf32, #tpu.memory_space<vmem>>, vector<16x512xf32>,
    %17 = vector.extract_strided_slice %0 {offsets = [0, 3, 0], sizes = [3, 1, 512], strides = [1, 1, 1]} : vector<3x16x512xf32> to vector<3x1x512xf32>
    %18 = vector.broadcast %17 : vector<3x1x512xf32> to vector<3x16x512xf32>
    %19 = arith.mulf %18, %0 : vector<3x16x512xf32>
    %cst_10 = arith.constant dense<0.000000e+00> : vector<16x512xf32>
    %20 = vector.multi_reduction <add>, %19, %cst_10 [0] : vector<3x16x512xf32> to vector<16x512xf32>
    %c48 = arith.constant 48 : index
    %c0_11 = arith.constant 0 : index
    %21 = vector.load %arg12[%c48, %c0_11] : memref<256x512xf32, #tpu.memory_space<vmem>>, vector<16x512xf32>
    tpu.vector_store %arg12[%c48, %c0_11], %20 {strides = array<i32>} : memref<256x512xf32, #tpu.memory_space<vmem>>, vector<16x512xf32>,
    %22 = vector.extract_strided_slice %0 {offsets = [0, 4, 0], sizes = [3, 1, 512], strides = [1, 1, 1]} : vector<3x16x512xf32> to vector<3x1x512xf32>
    %23 = vector.broadcast %22 : vector<3x1x512xf32> to vector<3x16x512xf32>
    %24 = arith.mulf %23, %0 : vector<3x16x512xf32>
    %cst_12 = arith.constant dense<0.000000e+00> : vector<16x512xf32>
    %25 = vector.multi_reduction <add>, %24, %cst_12 [0] : vector<3x16x512xf32> to vector<16x512xf32>
    %c64 = arith.constant 64 : index
    %c0_13 = arith.constant 0 : index
    %26 = vector.load %arg12[%c64, %c0_13] : memref<256x512xf32, #tpu.memory_space<vmem>>, vector<16x512xf32>
    tpu.vector_store %arg12[%c64, %c0_13], %25 {strides = array<i32>} : memref<256x512xf32, #tpu.memory_space<vmem>>, vector<16x512xf32>,
    %27 = vector.extract_strided_slice %0 {offsets = [0, 5, 0], sizes = [3, 1, 512], strides = [1, 1, 1]} : vector<3x16x512xf32> to vector<3x1x512xf32>
    %28 = vector.broadcast %27 : vector<3x1x512xf32> to vector<3x16x512xf32>
    %29 = arith.mulf %28, %0 : vector<3x16x512xf32>
    %cst_14 = arith.constant dense<0.000000e+00> : vector<16x512xf32>
    %30 = vector.multi_reduction <add>, %29, %cst_14 [0] : vector<3x16x512xf32> to vector<16x512xf32>
    %c80 = arith.constant 80 : index
    %c0_15 = arith.constant 0 : index
    %31 = vector.load %arg12[%c80, %c0_15] : memref<256x512xf32, #tpu.memory_space<vmem>>, vector<16x512xf32>
    tpu.vector_store %arg12[%c80, %c0_15], %30 {strides = array<i32>} : memref<256x512xf32, #tpu.memory_space<vmem>>, vector<16x512xf32>,
    %32 = vector.extract_strided_slice %0 {offsets = [0, 6, 0], sizes = [3, 1, 512], strides = [1, 1, 1]} : vector<3x16x512xf32> to vector<3x1x512xf32>
    %33 = vector.broadcast %32 : vector<3x1x512xf32> to vector<3x16x512xf32>
    %34 = arith.mulf %33, %0 : vector<3x16x512xf32>
    %cst_16 = arith.constant dense<0.000000e+00> : vector<16x512xf32>
    %35 = vector.multi_reduction <add>, %34, %cst_16 [0] : vector<3x16x512xf32> to vector<16x512xf32>
    %c96 = arith.constant 96 : index
    %c0_17 = arith.constant 0 : index
    %36 = vector.load %arg12[%c96, %c0_17] : memref<256x512xf32, #tpu.memory_space<vmem>>, vector<16x512xf32>
    tpu.vector_store %arg12[%c96, %c0_17], %35 {strides = array<i32>} : memref<256x512xf32, #tpu.memory_space<vmem>>, vector<16x512xf32>,
    %37 = vector.extract_strided_slice %0 {offsets = [0, 7, 0], sizes = [3, 1, 512], strides = [1, 1, 1]} : vector<3x16x512xf32> to vector<3x1x512xf32>
    %38 = vector.broadcast %37 : vector<3x1x512xf32> to vector<3x16x512xf32>
    %39 = arith.mulf %38, %0 : vector<3x16x512xf32>
    %cst_18 = arith.constant dense<0.000000e+00> : vector<16x512xf32>
    %40 = vector.multi_reduction <add>, %39, %cst_18 [0] : vector<3x16x512xf32> to vector<16x512xf32>
    %c112 = arith.constant 112 : index
    %c0_19 = arith.constant 0 : index
    %41 = vector.load %arg12[%c112, %c0_19] : memref<256x512xf32, #tpu.memory_space<vmem>>, vector<16x512xf32>
    tpu.vector_store %arg12[%c112, %c0_19], %40 {strides = array<i32>} : memref<256x512xf32, #tpu.memory_space<vmem>>, vector<16x512xf32>,
    %42 = vector.extract_strided_slice %0 {offsets = [0, 8, 0], sizes = [3, 1, 512], strides = [1, 1, 1]} : vector<3x16x512xf32> to vector<3x1x512xf32>
    %43 = vector.broadcast %42 : vector<3x1x512xf32> to vector<3x16x512xf32>
    %44 = arith.mulf %43, %0 : vector<3x16x512xf32>
    %cst_20 = arith.constant dense<0.000000e+00> : vector<16x512xf32>
    %45 = vector.multi_reduction <add>, %44, %cst_20 [0] : vector<3x16x512xf32> to vector<16x512xf32>
    %c128 = arith.constant 128 : index
    %c0_21 = arith.constant 0 : index
    %46 = vector.load %arg12[%c128, %c0_21] : memref<256x512xf32, #tpu.memory_space<vmem>>, vector<16x512xf32>
    tpu.vector_store %arg12[%c128, %c0_21], %45 {strides = array<i32>} : memref<256x512xf32, #tpu.memory_space<vmem>>, vector<16x512xf32>,
    %47 = vector.extract_strided_slice %0 {offsets = [0, 9, 0], sizes = [3, 1, 512], strides = [1, 1, 1]} : vector<3x16x512xf32> to vector<3x1x512xf32>
    %48 = vector.broadcast %47 : vector<3x1x512xf32> to vector<3x16x512xf32>
    %49 = arith.mulf %48, %0 : vector<3x16x512xf32>
    %cst_22 = arith.constant dense<0.000000e+00> : vector<16x512xf32>
    %50 = vector.multi_reduction <add>, %49, %cst_22 [0] : vector<3x16x512xf32> to vector<16x512xf32>
    %c144 = arith.constant 144 : index
    %c0_23 = arith.constant 0 : index
    %51 = vector.load %arg12[%c144, %c0_23] : memref<256x512xf32, #tpu.memory_space<vmem>>, vector<16x512xf32>
    tpu.vector_store %arg12[%c144, %c0_23], %50 {strides = array<i32>} : memref<256x512xf32, #tpu.memory_space<vmem>>, vector<16x512xf32>,
    %52 = vector.extract_strided_slice %0 {offsets = [0, 10, 0], sizes = [3, 1, 512], strides = [1, 1, 1]} : vector<3x16x512xf32> to vector<3x1x512xf32>
    %53 = vector.broadcast %52 : vector<3x1x512xf32> to vector<3x16x512xf32>
    %54 = arith.mulf %53, %0 : vector<3x16x512xf32>
    %cst_24 = arith.constant dense<0.000000e+00> : vector<16x512xf32>
    %55 = vector.multi_reduction <add>, %54, %cst_24 [0] : vector<3x16x512xf32> to vector<16x512xf32>
    %c160 = arith.constant 160 : index
    %c0_25 = arith.constant 0 : index
    %56 = vector.load %arg12[%c160, %c0_25] : memref<256x512xf32, #tpu.memory_space<vmem>>, vector<16x512xf32>
    tpu.vector_store %arg12[%c160, %c0_25], %55 {strides = array<i32>} : memref<256x512xf32, #tpu.memory_space<vmem>>, vector<16x512xf32>,
    %57 = vector.extract_strided_slice %0 {offsets = [0, 11, 0], sizes = [3, 1, 512], strides = [1, 1, 1]} : vector<3x16x512xf32> to vector<3x1x512xf32>
    %58 = vector.broadcast %57 : vector<3x1x512xf32> to vector<3x16x512xf32>
    %59 = arith.mulf %58, %0 : vector<3x16x512xf32>
    %cst_26 = arith.constant dense<0.000000e+00> : vector<16x512xf32>
    %60 = vector.multi_reduction <add>, %59, %cst_26 [0] : vector<3x16x512xf32> to vector<16x512xf32>
    %c176 = arith.constant 176 : index
    %c0_27 = arith.constant 0 : index
    %61 = vector.load %arg12[%c176, %c0_27] : memref<256x512xf32, #tpu.memory_space<vmem>>, vector<16x512xf32>
    tpu.vector_store %arg12[%c176, %c0_27], %60 {strides = array<i32>} : memref<256x512xf32, #tpu.memory_space<vmem>>, vector<16x512xf32>,
    %62 = vector.extract_strided_slice %0 {offsets = [0, 12, 0], sizes = [3, 1, 512], strides = [1, 1, 1]} : vector<3x16x512xf32> to vector<3x1x512xf32>
    %63 = vector.broadcast %62 : vector<3x1x512xf32> to vector<3x16x512xf32>
    %64 = arith.mulf %63, %0 : vector<3x16x512xf32>
    %cst_28 = arith.constant dense<0.000000e+00> : vector<16x512xf32>
    %65 = vector.multi_reduction <add>, %64, %cst_28 [0] : vector<3x16x512xf32> to vector<16x512xf32>
    %c192 = arith.constant 192 : index
    %c0_29 = arith.constant 0 : index
    %66 = vector.load %arg12[%c192, %c0_29] : memref<256x512xf32, #tpu.memory_space<vmem>>, vector<16x512xf32>
    tpu.vector_store %arg12[%c192, %c0_29], %65 {strides = array<i32>} : memref<256x512xf32, #tpu.memory_space<vmem>>, vector<16x512xf32>,
    %67 = vector.extract_strided_slice %0 {offsets = [0, 13, 0], sizes = [3, 1, 512], strides = [1, 1, 1]} : vector<3x16x512xf32> to vector<3x1x512xf32>
    %68 = vector.broadcast %67 : vector<3x1x512xf32> to vector<3x16x512xf32>
    %69 = arith.mulf %68, %0 : vector<3x16x512xf32>
    %cst_30 = arith.constant dense<0.000000e+00> : vector<16x512xf32>
    %70 = vector.multi_reduction <add>, %69, %cst_30 [0] : vector<3x16x512xf32> to vector<16x512xf32>
    %c208 = arith.constant 208 : index
    %c0_31 = arith.constant 0 : index
    %71 = vector.load %arg12[%c208, %c0_31] : memref<256x512xf32, #tpu.memory_space<vmem>>, vector<16x512xf32>
    tpu.vector_store %arg12[%c208, %c0_31], %70 {strides = array<i32>} : memref<256x512xf32, #tpu.memory_space<vmem>>, vector<16x512xf32>,
    %72 = vector.extract_strided_slice %0 {offsets = [0, 14, 0], sizes = [3, 1, 512], strides = [1, 1, 1]} : vector<3x16x512xf32> to vector<3x1x512xf32>
    %73 = vector.broadcast %72 : vector<3x1x512xf32> to vector<3x16x512xf32>
    %74 = arith.mulf %73, %0 : vector<3x16x512xf32>
    %cst_32 = arith.constant dense<0.000000e+00> : vector<16x512xf32>
    %75 = vector.multi_reduction <add>, %74, %cst_32 [0] : vector<3x16x512xf32> to vector<16x512xf32>
    %c224 = arith.constant 224 : index
    %c0_33 = arith.constant 0 : index
    %76 = vector.load %arg12[%c224, %c0_33] : memref<256x512xf32, #tpu.memory_space<vmem>>, vector<16x512xf32>
    tpu.vector_store %arg12[%c224, %c0_33], %75 {strides = array<i32>} : memref<256x512xf32, #tpu.memory_space<vmem>>, vector<16x512xf32>,
    %77 = vector.extract_strided_slice %0 {offsets = [0, 15, 0], sizes = [3, 1, 512], strides = [1, 1, 1]} : vector<3x16x512xf32> to vector<3x1x512xf32>
    %78 = vector.broadcast %77 : vector<3x1x512xf32> to vector<3x16x512xf32>
    %79 = arith.mulf %78, %0 : vector<3x16x512xf32>
    %cst_34 = arith.constant dense<0.000000e+00> : vector<16x512xf32>
    %80 = vector.multi_reduction <add>, %79, %cst_34 [0] : vector<3x16x512xf32> to vector<16x512xf32>
    %c240 = arith.constant 240 : index
    %c0_35 = arith.constant 0 : index
    %81 = vector.load %arg12[%c240, %c0_35] : memref<256x512xf32, #tpu.memory_space<vmem>>, vector<16x512xf32>
    tpu.vector_store %arg12[%c240, %c0_35], %80 {strides = array<i32>} : memref<256x512xf32, #tpu.memory_space<vmem>>, vector<16x512xf32>,
    %c0_36 = arith.constant 0 : index
    %c0_37 = arith.constant 0 : index
    %82 = vector.load %arg12[%c0_36, %c0_37] : memref<256x512xf32, #tpu.memory_space<vmem>>, vector<256x512xf32>
    %83 = arith.mulf %82, %82 : vector<256x512xf32>
    %cst_38 = arith.constant dense<0.000000e+00> : vector<512xf32>
    %84 = vector.multi_reduction <add>, %83, %cst_38 [0] : vector<256x512xf32> to vector<512xf32>
    %85 = vector.shape_cast %84 : vector<512xf32> to vector<1x512xf32>
    %86 = math.sqrt %85 : vector<1x512xf32>
    %cst_39 = arith.constant 9.99999996E-13 : f32
    %87 = vector.broadcast %cst_39 : f32 to vector<1x512xf32>
    %88 = arith.maximumf %86, %87 : vector<1x512xf32>
    %cst_40 = arith.constant 1.000000e+00 : f32
    %89 = vector.broadcast %cst_40 : f32 to vector<1x512xf32>
    %90 = arith.divf %89, %88 : vector<1x512xf32>
    %91 = vector.broadcast %90 : vector<1x512xf32> to vector<256x512xf32>
    %92 = arith.mulf %82, %91 : vector<256x512xf32>
    %c0_41 = arith.constant 0 : index
    %c0_42 = arith.constant 0 : index
    %93 = vector.load %arg3[%c0_41, %c0_42] : memref<8x256xf32, #tpu.memory_space<vmem>>, vector<8x256xf32>
    %cst_43 = arith.constant dense<0.000000e+00> : vector<8x512xf32>
    %94 = tpu.matmul %93, %92, %cst_43 {dimension_numbers = #tpu.dot_dimension_numbers<[1], [0], [0], [1], [0, 0, 1, 1], [], []>} : vector<8x256xf32>, vector<256x512xf32>, vector<8x512xf32> -> vector<8x512xf32>
    %c0_44 = arith.constant 0 : index
    %c0_45 = arith.constant 0 : index
    %95 = vector.load %arg4[%c0_44, %c0_45] : memref<8x19xf32, #tpu.memory_space<vmem>>, vector<8x19xf32>
    %cst_46 = arith.constant dense<0.000000e+00> : vector<8x512xf32>
    %96 = tpu.matmul %95, %1, %cst_46 {dimension_numbers = #tpu.dot_dimension_numbers<[1], [0], [0], [1], [0, 0, 1, 1], [], []>} : vector<8x19xf32>, vector<19x512xf32>, vector<8x512xf32> -> vector<8x512xf32>
    %97 = arith.addf %94, %96 : vector<8x512xf32>
    %c0_47 = arith.constant 0 : index
    %c0_48 = arith.constant 0 : index
    %98 = vector.load %arg5[%c0_47, %c0_48] : memref<8x1xf32, #tpu.memory_space<vmem>>, vector<8x1xf32>
    %99 = vector.broadcast %98 : vector<8x1xf32> to vector<8x512xf32>
    %100 = arith.addf %97, %99 : vector<8x512xf32>
    %cst_49 = arith.constant 0.000000e+00 : f32
    %101 = vector.broadcast %cst_49 : f32 to vector<8x512xf32>
    %102 = arith.subf %101, %100 : vector<8x512xf32>
    %103 = math.exp %102 : vector<8x512xf32>
    %cst_50 = arith.constant 1.000000e+00 : f32
    %104 = vector.broadcast %cst_50 : f32 to vector<8x512xf32>
    %105 = arith.addf %104, %103 : vector<8x512xf32>
    %cst_51 = arith.constant 1.000000e+00 : f32
    %106 = vector.broadcast %cst_51 : f32 to vector<8x512xf32>
    %107 = arith.divf %106, %105 : vector<8x512xf32>
    %108 = arith.mulf %100, %107 : vector<8x512xf32>
    %c0_52 = arith.constant 0 : index
    %c0_53 = arith.constant 0 : index
    %109 = vector.load %arg6[%c0_52, %c0_53] : memref<8x8xf32, #tpu.memory_space<vmem>>, vector<8x8xf32>
    %cst_54 = arith.constant dense<0.000000e+00> : vector<8x512xf32>
    %110 = tpu.matmul %109, %108, %cst_54 {dimension_numbers = #tpu.dot_dimension_numbers<[1], [0], [0], [1], [0, 0, 1, 1], [], []>} : vector<8x8xf32>, vector<8x512xf32>, vector<8x512xf32> -> vector<8x512xf32>
    %c0_55 = arith.constant 0 : index
    %c0_56 = arith.constant 0 : index
    %111 = vector.load %arg7[%c0_55, %c0_56] : memref<8x1xf32, #tpu.memory_space<vmem>>, vector<8x1xf32>
    %112 = vector.broadcast %111 : vector<8x1xf32> to vector<8x512xf32>
    %113 = arith.addf %110, %112 : vector<8x512xf32>
    %cst_57 = arith.constant 0.000000e+00 : f32
    %114 = vector.broadcast %cst_57 : f32 to vector<8x512xf32>
    %115 = arith.subf %114, %113 : vector<8x512xf32>
    %116 = math.exp %115 : vector<8x512xf32>
    %cst_58 = arith.constant 1.000000e+00 : f32
    %117 = vector.broadcast %cst_58 : f32 to vector<8x512xf32>
    %118 = arith.addf %117, %116 : vector<8x512xf32>
    %cst_59 = arith.constant 1.000000e+00 : f32
    %119 = vector.broadcast %cst_59 : f32 to vector<8x512xf32>
    %120 = arith.divf %119, %118 : vector<8x512xf32>
    %121 = arith.mulf %113, %120 : vector<8x512xf32>
    %c0_60 = arith.constant 0 : index
    %c0_61 = arith.constant 0 : index
    %122 = vector.load %arg8[%c0_60, %c0_61] : memref<88x8xf32, #tpu.memory_space<vmem>>, vector<88x8xf32>
    %cst_62 = arith.constant dense<0.000000e+00> : vector<88x512xf32>
    %123 = tpu.matmul %122, %121, %cst_62 {dimension_numbers = #tpu.dot_dimension_numbers<[1], [0], [0], [1], [0, 0, 1, 1], [], []>} : vector<88x8xf32>, vector<8x512xf32>, vector<88x512xf32> -> vector<88x512xf32>
    %c0_63 = arith.constant 0 : index
    %c0_64 = arith.constant 0 : index
    %124 = vector.load %arg9[%c0_63, %c0_64] : memref<88x1xf32, #tpu.memory_space<vmem>>, vector<88x1xf32>
    %125 = vector.broadcast %124 : vector<88x1xf32> to vector<88x512xf32>
    %126 = arith.addf %123, %125 : vector<88x512xf32>
    %127 = vector.extract_strided_slice %126 {offsets = [80, 0], sizes = [8, 512], strides = [1, 1]} : vector<88x512xf32> to vector<8x512xf32>
    %c0_65 = arith.constant 0 : index
    %c0_66 = arith.constant 0 : index
    %128 = vector.load %arg11[%c0_65, %c0_66] : memref<8x512xf32, #tpu.memory_space<vmem>>, vector<8x512xf32>
    tpu.vector_store %arg11[%c0_65, %c0_66], %127 {strides = array<i32>} : memref<8x512xf32, #tpu.memory_space<vmem>>, vector<8x512xf32>,
    %cst_67 = arith.constant 0.000000e+00 : f32
    %129 = vector.broadcast %cst_67 : f32 to vector<3x8x512xf32>
    %130 = vector.extract_strided_slice %0 {offsets = [0, 0, 0], sizes = [3, 1, 512], strides = [1, 1, 1]} : vector<3x16x512xf32> to vector<3x1x512xf32>
    %131 = vector.extract_strided_slice %126 {offsets = [0, 0], sizes = [8, 512], strides = [1, 1]} : vector<88x512xf32> to vector<8x512xf32>
    %132 = vector.shape_cast %131 : vector<8x512xf32> to vector<1x8x512xf32>
    %133 = vector.broadcast %130 : vector<3x1x512xf32> to vector<3x8x512xf32>
    %134 = vector.broadcast %132 : vector<1x8x512xf32> to vector<3x8x512xf32>
    %135 = arith.mulf %133, %134 : vector<3x8x512xf32>
    %136 = arith.addf %129, %135 : vector<3x8x512xf32>
    %137 = vector.extract_strided_slice %0 {offsets = [0, 1, 0], sizes = [3, 1, 512], strides = [1, 1, 1]} : vector<3x16x512xf32> to vector<3x1x512xf32>
    %138 = vector.extract_strided_slice %126 {offsets = [8, 0], sizes = [8, 512], strides = [1, 1]} : vector<88x512xf32> to vector<8x512xf32>
    %139 = vector.shape_cast %138 : vector<8x512xf32> to vector<1x8x512xf32>
    %140 = vector.broadcast %137 : vector<3x1x512xf32> to vector<3x8x512xf32>
    %141 = vector.broadcast %139 : vector<1x8x512xf32> to vector<3x8x512xf32>
    %142 = arith.mulf %140, %141 : vector<3x8x512xf32>
    %143 = arith.addf %136, %142 : vector<3x8x512xf32>
    %144 = vector.extract_strided_slice %0 {offsets = [0, 2, 0], sizes = [3, 1, 512], strides = [1, 1, 1]} : vector<3x16x512xf32> to vector<3x1x512xf32>
    %145 = vector.extract_strided_slice %126 {offsets = [16, 0], sizes = [8, 512], strides = [1, 1]} : vector<88x512xf32> to vector<8x512xf32>
    %146 = vector.shape_cast %145 : vector<8x512xf32> to vector<1x8x512xf32>
    %147 = vector.broadcast %144 : vector<3x1x512xf32> to vector<3x8x512xf32>
    %148 = vector.broadcast %146 : vector<1x8x512xf32> to vector<3x8x512xf32>
    %149 = arith.mulf %147, %148 : vector<3x8x512xf32>
    %150 = arith.addf %143, %149 : vector<3x8x512xf32>
    %151 = vector.extract_strided_slice %0 {offsets = [0, 3, 0], sizes = [3, 1, 512], strides = [1, 1, 1]} : vector<3x16x512xf32> to vector<3x1x512xf32>
    %152 = vector.extract_strided_slice %126 {offsets = [24, 0], sizes = [8, 512], strides = [1, 1]} : vector<88x512xf32> to vector<8x512xf32>
    %153 = vector.shape_cast %152 : vector<8x512xf32> to vector<1x8x512xf32>
    %154 = vector.broadcast %151 : vector<3x1x512xf32> to vector<3x8x512xf32>
    %155 = vector.broadcast %153 : vector<1x8x512xf32> to vector<3x8x512xf32>
    %156 = arith.mulf %154, %155 : vector<3x8x512xf32>
    %157 = arith.addf %150, %156 : vector<3x8x512xf32>
    %158 = vector.extract_strided_slice %0 {offsets = [0, 4, 0], sizes = [3, 1, 512], strides = [1, 1, 1]} : vector<3x16x512xf32> to vector<3x1x512xf32>
    %159 = vector.extract_strided_slice %126 {offsets = [32, 0], sizes = [8, 512], strides = [1, 1]} : vector<88x512xf32> to vector<8x512xf32>
    %160 = vector.shape_cast %159 : vector<8x512xf32> to vector<1x8x512xf32>
    %161 = vector.broadcast %158 : vector<3x1x512xf32> to vector<3x8x512xf32>
    %162 = vector.broadcast %160 : vector<1x8x512xf32> to vector<3x8x512xf32>
    %163 = arith.mulf %161, %162 : vector<3x8x512xf32>
    %164 = arith.addf %157, %163 : vector<3x8x512xf32>
    %165 = vector.extract_strided_slice %0 {offsets = [0, 5, 0], sizes = [3, 1, 512], strides = [1, 1, 1]} : vector<3x16x512xf32> to vector<3x1x512xf32>
    %166 = vector.extract_strided_slice %126 {offsets = [40, 0], sizes = [8, 512], strides = [1, 1]} : vector<88x512xf32> to vector<8x512xf32>
    %167 = vector.shape_cast %166 : vector<8x512xf32> to vector<1x8x512xf32>
    %168 = vector.broadcast %165 : vector<3x1x512xf32> to vector<3x8x512xf32>
    %169 = vector.broadcast %167 : vector<1x8x512xf32> to vector<3x8x512xf32>
    %170 = arith.mulf %168, %169 : vector<3x8x512xf32>
    %171 = arith.addf %164, %170 : vector<3x8x512xf32>
    %172 = vector.extract_strided_slice %0 {offsets = [0, 6, 0], sizes = [3, 1, 512], strides = [1, 1, 1]} : vector<3x16x512xf32> to vector<3x1x512xf32>
    %173 = vector.extract_strided_slice %126 {offsets = [48, 0], sizes = [8, 512], strides = [1, 1]} : vector<88x512xf32> to vector<8x512xf32>
    %174 = vector.shape_cast %173 : vector<8x512xf32> to vector<1x8x512xf32>
    %175 = vector.broadcast %172 : vector<3x1x512xf32> to vector<3x8x512xf32>
    %176 = vector.broadcast %174 : vector<1x8x512xf32> to vector<3x8x512xf32>
    %177 = arith.mulf %175, %176 : vector<3x8x512xf32>
    %178 = arith.addf %171, %177 : vector<3x8x512xf32>
    %179 = vector.extract_strided_slice %0 {offsets = [0, 7, 0], sizes = [3, 1, 512], strides = [1, 1, 1]} : vector<3x16x512xf32> to vector<3x1x512xf32>
    %180 = vector.extract_strided_slice %126 {offsets = [56, 0], sizes = [8, 512], strides = [1, 1]} : vector<88x512xf32> to vector<8x512xf32>
    %181 = vector.shape_cast %180 : vector<8x512xf32> to vector<1x8x512xf32>
    %182 = vector.broadcast %179 : vector<3x1x512xf32> to vector<3x8x512xf32>
    %183 = vector.broadcast %181 : vector<1x8x512xf32> to vector<3x8x512xf32>
    %184 = arith.mulf %182, %183 : vector<3x8x512xf32>
    %185 = arith.addf %178, %184 : vector<3x8x512xf32>
    %186 = vector.extract_strided_slice %0 {offsets = [0, 8, 0], sizes = [3, 1, 512], strides = [1, 1, 1]} : vector<3x16x512xf32> to vector<3x1x512xf32>
    %187 = vector.extract_strided_slice %126 {offsets = [64, 0], sizes = [8, 512], strides = [1, 1]} : vector<88x512xf32> to vector<8x512xf32>
    %188 = vector.shape_cast %187 : vector<8x512xf32> to vector<1x8x512xf32>
    %189 = vector.broadcast %186 : vector<3x1x512xf32> to vector<3x8x512xf32>
    %190 = vector.broadcast %188 : vector<1x8x512xf32> to vector<3x8x512xf32>
    %191 = arith.mulf %189, %190 : vector<3x8x512xf32>
    %192 = arith.addf %185, %191 : vector<3x8x512xf32>
    %193 = vector.extract_strided_slice %0 {offsets = [0, 9, 0], sizes = [3, 1, 512], strides = [1, 1, 1]} : vector<3x16x512xf32> to vector<3x1x512xf32>
    %194 = vector.extract_strided_slice %126 {offsets = [72, 0], sizes = [8, 512], strides = [1, 1]} : vector<88x512xf32> to vector<8x512xf32>
    %195 = vector.shape_cast %194 : vector<8x512xf32> to vector<1x8x512xf32>
    %196 = vector.broadcast %193 : vector<3x1x512xf32> to vector<3x8x512xf32>
    %197 = vector.broadcast %195 : vector<1x8x512xf32> to vector<3x8x512xf32>
    %198 = arith.mulf %196, %197 : vector<3x8x512xf32>
    %199 = arith.addf %192, %198 : vector<3x8x512xf32>
    %c0_68 = arith.constant 0 : index
    %c0_69 = arith.constant 0 : index
    %c0_70 = arith.constant 0 : index
    %200 = vector.load %arg10[%c0_68, %c0_69, %c0_70] : memref<3x8x512xf32, #tpu.memory_space<vmem>>, vector<3x8x512xf32>
    tpu.vector_store %arg10[%c0_68, %c0_69, %c0_70], %199 {strides = array<i32>} : memref<3x8x512xf32, #tpu.memory_space<vmem>>, vector<3x8x512xf32>,
    return
  }
  func.func @transform_0(%arg0: i32) -> (i32, i32, i32) {
    %c0_i32 = arith.constant 0 : i32
    %c0_i32_0 = arith.constant 0 : i32
    %c0_i32_1 = arith.constant 0 : i32
    return %c0_i32, %c0_i32_0, %arg0 : i32, i32, i32
  }
  func.func @transform_1(%arg0: i32) -> (i32, i32) {
    %c0_i32 = arith.constant 0 : i32
    %c0_i32_0 = arith.constant 0 : i32
    return %c0_i32, %arg0 : i32, i32
  }
  func.func @transform_2(%arg0: i32) -> (i32, i32) {
    %c0_i32 = arith.constant 0 : i32
    %c0_i32_0 = arith.constant 0 : i32
    %c0_i32_1 = arith.constant 0 : i32
    return %c0_i32, %c0_i32_0 : i32, i32
  }
  func.func @transform_3(%arg0: i32) -> (i32, i32) {
    %c0_i32 = arith.constant 0 : i32
    %c0_i32_0 = arith.constant 0 : i32
    %c0_i32_1 = arith.constant 0 : i32
    return %c0_i32, %c0_i32_0 : i32, i32
  }
  func.func @transform_4(%arg0: i32) -> (i32, i32) {
    %c0_i32 = arith.constant 0 : i32
    %c0_i32_0 = arith.constant 0 : i32
    %c0_i32_1 = arith.constant 0 : i32
    return %c0_i32, %c0_i32_0 : i32, i32
  }
  func.func @transform_5(%arg0: i32) -> (i32, i32) {
    %c0_i32 = arith.constant 0 : i32
    %c0_i32_0 = arith.constant 0 : i32
    %c0_i32_1 = arith.constant 0 : i32
    return %c0_i32, %c0_i32_0 : i32, i32
  }
  func.func @transform_6(%arg0: i32) -> (i32, i32) {
    %c0_i32 = arith.constant 0 : i32
    %c0_i32_0 = arith.constant 0 : i32
    %c0_i32_1 = arith.constant 0 : i32
    return %c0_i32, %c0_i32_0 : i32, i32
  }
  func.func @transform_7(%arg0: i32) -> (i32, i32) {
    %c0_i32 = arith.constant 0 : i32
    %c0_i32_0 = arith.constant 0 : i32
    %c0_i32_1 = arith.constant 0 : i32
    return %c0_i32, %c0_i32_0 : i32, i32
  }
  func.func @transform_8(%arg0: i32) -> (i32, i32) {
    %c0_i32 = arith.constant 0 : i32
    %c0_i32_0 = arith.constant 0 : i32
    %c0_i32_1 = arith.constant 0 : i32
    return %c0_i32, %c0_i32_0 : i32, i32
  }
  func.func @transform_9(%arg0: i32) -> (i32, i32, i32) {
    %c0_i32 = arith.constant 0 : i32
    %c0_i32_0 = arith.constant 0 : i32
    %c0_i32_1 = arith.constant 0 : i32
    return %c0_i32, %c0_i32_0, %arg0 : i32, i32, i32
  }
  func.func @transform_10(%arg0: i32) -> (i32, i32) {
    %c0_i32 = arith.constant 0 : i32
    %c0_i32_0 = arith.constant 0 : i32
    return %c0_i32, %arg0 : i32, i32
  }
}

</mosaic_0001>

<llo_original>
// kernel: edge_readout_forward.1
$region0: #{edge_readout_forward.1}
  #allocation0 [shape = 'u32[]', space=smem, size = 0x4, offset = 0x4, fixed_abs, tag = 'smem constant byte address 0x4 - core index']
  #allocation1 [shape = 'u32[144,128]{1,0:T(1,128)}', space=vmem, size = 0x12000, scoped, tag = 'internal scratch']
  #allocation2 [shape = 'f32[256,512]{1,0:T(8,128)}', space=vmem, size = 0x80000, scoped, tag = 'scratch operand']
  %s0 = inlined_call_operand.vmem [shape: f32[3,16,1024], index: 0, kind: input, shape index: {}]
  %s1 = inlined_call_operand.vmem [shape: f32[19,1024], index: 1, kind: input, shape index: {}]
  %s2 = inlined_call_operand.vmem [shape: f32[8,256], index: 2, kind: input, shape index: {}]
  %s3 = inlined_call_operand.vmem [shape: f32[8,19], index: 3, kind: input, shape index: {}]
  %s4 = inlined_call_operand.vmem [shape: f32[8,1], index: 4, kind: input, shape index: {}]
  %s5 = inlined_call_operand.vmem [shape: f32[8,8], index: 5, kind: input, shape index: {}]
  %s6 = inlined_call_operand.vmem [shape: f32[8,1], index: 6, kind: input, shape index: {}]
  %s7 = inlined_call_operand.vmem [shape: f32[88,8], index: 7, kind: input, shape index: {}]
  %s8 = inlined_call_operand.vmem [shape: f32[88,1], index: 8, kind: input, shape index: {}]
  %s9 = inlined_call_operand.vmem [shape: f32[3,8,1024], index: 9, kind: output, shape index: {0}]
  %s10 = inlined_call_operand.hbm [shape: f32[8,1024], index: 10, kind: output, shape index: {1}]
  %11 = xla_tuple %s9, %s10
  %s12 = sld [smem:[#allocation0]]
  $region142: #{edge_readout_forward.1} parent=0
    _
  %s14 = ssub.s32 1, %s12
  %s15 = scalar_select 0, %s14, %s12
  $region1: #{edge_readout_forward.1} parent=0
    #allocation3 [shape = 'u8[196608]{0}', space=vmem, size = 0x30000, scoped, tag = 'input window, operand 0']
    #allocation4 [shape = 'u8[98304]{0}', space=vmem, size = 0x18000, scoped, tag = 'input window, operand 1']
    #allocation5 [shape = 'u8[98304]{0}', space=vmem, size = 0x18000, scoped, tag = 'output window, operand 0']
    #allocation6 [shape = 'u8[32768]{0}', space=vmem, size = 0x8000, scoped, tag = 'output window, operand 1']
    #allocation7 [shape = 's32[2]{0}', space=sflag, size = 0x8, scoped, tag = 'scoped memory for edge_readout_forward.1']
    %16 = vsyncpa [#allocation7], 0
    %s17 = scalar_lea.sflag [#allocation7], 1
    %18 = vsyncpa %s17, 0
    loop: start=0, step=1, limit=4
    $region2: #{edge_readout_forward.1} parent=1 // loop_pre_header
      _
    $region3: #{edge_readout_forward.1} parent=1 // loop_header
      %s20 = sphi 0, %s24
      %p21 = scmp.ge.s32.totalorder %s20, 4
      %s30 = sphi 0, %s32
      %s33 = sphi 0, %s30
      %s34 = sphi 0, %s33
      %s50 = sphi 0, %s34
      %s56 = sphi 0, %s58
      %s59 = sphi 0, %s56
      %s60 = sphi 0, %s59
      %s76 = sphi 0, %s60
      %s80 = sphi 0, %s80
      %s82 = sphi 0, %s80
      %s83 = sphi 0, %s82
      %s97 = sphi 0, %s83
      %s101 = sphi 0, %s101
      %s103 = sphi 0, %s101
      %s104 = sphi 0, %s103
      %s118 = sphi 0, %s104
      %s122 = sphi 0, %s122
      %s124 = sphi 0, %s122
      %s125 = sphi 0, %s124
      %s139 = sphi 0, %s125
      %s143 = sphi 0, %s143
      %s145 = sphi 0, %s143
      %s146 = sphi 0, %s145
      %s160 = sphi 0, %s146
      %s164 = sphi 0, %s164
      %s166 = sphi 0, %s164
      %s167 = sphi 0, %s166
      %s181 = sphi 0, %s167
      %s185 = sphi 0, %s185
      %s187 = sphi 0, %s185
      %s188 = sphi 0, %s187
      %s202 = sphi 0, %s188
      %s206 = sphi 0, %s206
      %s208 = sphi 0, %s206
      %s209 = sphi 0, %s208
      %s223 = sphi 0, %s209
      %s229 = sphi 0, %s231
      %s232 = sphi 0, %s229
      %s233 = sphi 0, %s232
      %s249 = sphi 0, %s233
      %s255 = sphi 0, %s257
      %s258 = sphi 0, %s255
      %s259 = sphi 0, %s258
      %s275 = sphi 0, %s259
    $region4: #{edge_readout_forward.1} parent=1 // loop_header_branch
      %23 = sbr.rel (%p21) target = $region8
    $region5: #{edge_readout_forward.1} parent=1 // loop_body
      %s25 = ssub.s32 %s20, 1
      %s26 = ssub.s32 %s20, 2
      %s27 = sadd.s32 %s20, 1
      %s28 = ssub.s32 %s20, %s27
      %p29 = scmp.eq.s32.totalorder %s28, 0
      %s31 = sadd.s32 %s30, 1
      %s32 = scalar_select %p29, %s30, %s31
      %p35 = pneg %p29
      %p36 = scmp.eq.s32.totalorder %s20, 1
      %p37 = por %p35, %p36
      %p38 = scmp.ne.s32.totalorder %s30, %s33
      %p39 = scmp.eq.s32.totalorder %s20, 0
      %p40 = por %p38, %p39
      %p41 = scmp.ne.s32.totalorder %s30, %s33
      %p42 = scmp.eq.s32.totalorder %s25, 1
      %p43 = por %p41, %p42
      %p44 = scmp.ne.s32.totalorder %s33, %s34
      %p45 = scmp.eq.s32.totalorder %s25, 0
      %p46 = por %p44, %p45
      %p47 = scmp.ne.s32.totalorder %s33, %s34
      %p48 = scmp.eq.s32.totalorder %s26, 1
      %p49 = por %p47, %p48
      %p51 = scmp.ne.s32.totalorder %s34, %s50
      %p52 = scmp.eq.s32.totalorder %s26, 0
      %p53 = por %p51, %p52
      %s54 = ssub.s32 %s20, %s27
      %p55 = scmp.eq.s32.totalorder %s54, 0
      %s57 = sadd.s32 %s56, 1
      %s58 = scalar_select %p55, %s56, %s57
      %p61 = pneg %p55
      %p62 = scmp.eq.s32.totalorder %s20, 1
      %p63 = por %p61, %p62
      %p64 = scmp.ne.s32.totalorder %s56, %s59
      %p65 = scmp.eq.s32.totalorder %s20, 0
      %p66 = por %p64, %p65
      %p67 = scmp.ne.s32.totalorder %s56, %s59
      %p68 = scmp.eq.s32.totalorder %s25, 1
      %p69 = por %p67, %p68
      %p70 = scmp.ne.s32.totalorder %s59, %s60
      %p71 = scmp.eq.s32.totalorder %s25, 0
      %p72 = por %p70, %p71
      %p73 = scmp.ne.s32.totalorder %s59, %s60
      %p74 = scmp.eq.s32.totalorder %s26, 1
      %p75 = por %p73, %p74
      %p77 = scmp.ne.s32.totalorder %s60, %s76
      %p78 = scmp.eq.s32.totalorder %s26, 0
      %p79 = por %p77, %p78
      %s81 = sadd.s32 %s80, 1
      %p84 = scmp.eq.s32.totalorder %s20, 1
      %p85 = scmp.ne.s32.totalorder %s80, %s82
      %p86 = scmp.eq.s32.totalorder %s20, 0
      %p87 = por %p85, %p86
      %p88 = scmp.ne.s32.totalorder %s80, %s82
      %p89 = scmp.eq.s32.totalorder %s25, 1
      %p90 = por %p88, %p89
      %p91 = scmp.ne.s32.totalorder %s82, %s83
      %p92 = scmp.eq.s32.totalorder %s25, 0
      %p93 = por %p91, %p92
      %p94 = scmp.ne.s32.totalorder %s82, %s83
      %p95 = scmp.eq.s32.totalorder %s26, 1
      %p96 = por %p94, %p95
      %p98 = scmp.ne.s32.totalorder %s83, %s97
      %p99 = scmp.eq.s32.totalorder %s26, 0
      %p100 = por %p98, %p99
      %s102 = sadd.s32 %s101, 1
      %p105 = scmp.eq.s32.totalorder %s20, 1
      %p106 = scmp.ne.s32.totalorder %s101, %s103
      %p107 = scmp.eq.s32.totalorder %s20, 0
      %p108 = por %p106, %p107
      %p109 = scmp.ne.s32.totalorder %s101, %s103
      %p110 = scmp.eq.s32.totalorder %s25, 1
      %p111 = por %p109, %p110
      %p112 = scmp.ne.s32.totalorder %s103, %s104
      %p113 = scmp.eq.s32.totalorder %s25, 0
      %p114 = por %p112, %p113
      %p115 = scmp.ne.s32.totalorder %s103, %s104
      %p116 = scmp.eq.s32.totalorder %s26, 1
      %p117 = por %p115, %p116
      %p119 = scmp.ne.s32.totalorder %s104, %s118
      %p120 = scmp.eq.s32.totalorder %s26, 0
      %p121 = por %p119, %p120
      %s123 = sadd.s32 %s122, 1
      %p126 = scmp.eq.s32.totalorder %s20, 1
      %p127 = scmp.ne.s32.totalorder %s122, %s124
      %p128 = scmp.eq.s32.totalorder %s20, 0
      %p129 = por %p127, %p128
      %p130 = scmp.ne.s32.totalorder %s122, %s124
      %p131 = scmp.eq.s32.totalorder %s25, 1
      %p132 = por %p130, %p131
      %p133 = scmp.ne.s32.totalorder %s124, %s125
      %p134 = scmp.eq.s32.totalorder %s25, 0
      %p135 = por %p133, %p134
      %p136 = scmp.ne.s32.totalorder %s124, %s125
      %p137 = scmp.eq.s32.totalorder %s26, 1
      %p138 = por %p136, %p137
      %p140 = scmp.ne.s32.totalorder %s125, %s139
      %p141 = scmp.eq.s32.totalorder %s26, 0
      %p142 = por %p140, %p141
      %s144 = sadd.s32 %s143, 1
      %p147 = scmp.eq.s32.totalorder %s20, 1
      %p148 = scmp.ne.s32.totalorder %s143, %s145
      %p149 = scmp.eq.s32.totalorder %s20, 0
      %p150 = por %p148, %p149
      %p151 = scmp.ne.s32.totalorder %s143, %s145
      %p152 = scmp.eq.s32.totalorder %s25, 1
      %p153 = por %p151, %p152
      %p154 = scmp.ne.s32.totalorder %s145, %s146
      %p155 = scmp.eq.s32.totalorder %s25, 0
      %p156 = por %p154, %p155
      %p157 = scmp.ne.s32.totalorder %s145, %s146
      %p158 = scmp.eq.s32.totalorder %s26, 1
      %p159 = por %p157, %p158
      %p161 = scmp.ne.s32.totalorder %s146, %s160
      %p162 = scmp.eq.s32.totalorder %s26, 0
      %p163 = por %p161, %p162
      %s165 = sadd.s32 %s164, 1
      %p168 = scmp.eq.s32.totalorder %s20, 1
      %p169 = scmp.ne.s32.totalorder %s164, %s166
      %p170 = scmp.eq.s32.totalorder %s20, 0
      %p171 = por %p169, %p170
      %p172 = scmp.ne.s32.totalorder %s164, %s166
      %p173 = scmp.eq.s32.totalorder %s25, 1
      %p174 = por %p172, %p173
      %p175 = scmp.ne.s32.totalorder %s166, %s167
      %p176 = scmp.eq.s32.totalorder %s25, 0
      %p177 = por %p175, %p176
      %p178 = scmp.ne.s32.totalorder %s166, %s167
      %p179 = scmp.eq.s32.totalorder %s26, 1
      %p180 = por %p178, %p179
      %p182 = scmp.ne.s32.totalorder %s167, %s181
      %p183 = scmp.eq.s32.totalorder %s26, 0
      %p184 = por %p182, %p183
      %s186 = sadd.s32 %s185, 1
      %p189 = scmp.eq.s32.totalorder %s20, 1
      %p190 = scmp.ne.s32.totalorder %s185, %s187
      %p191 = scmp.eq.s32.totalorder %s20, 0
      %p192 = por %p190, %p191
      %p193 = scmp.ne.s32.totalorder %s185, %s187
      %p194 = scmp.eq.s32.totalorder %s25, 1
      %p195 = por %p193, %p194
      %p196 = scmp.ne.s32.totalorder %s187, %s188
      %p197 = scmp.eq.s32.totalorder %s25, 0
      %p198 = por %p196, %p197
      %p199 = scmp.ne.s32.totalorder %s187, %s188
      %p200 = scmp.eq.s32.totalorder %s26, 1
      %p201 = por %p199, %p200
      %p203 = scmp.ne.s32.totalorder %s188, %s202
      %p204 = scmp.eq.s32.totalorder %s26, 0
      %p205 = por %p203, %p204
      %s207 = sadd.s32 %s206, 1
      %p210 = scmp.eq.s32.totalorder %s20, 1
      %p211 = scmp.ne.s32.totalorder %s206, %s208
      %p212 = scmp.eq.s32.totalorder %s20, 0
      %p213 = por %p211, %p212
      %p214 = scmp.ne.s32.totalorder %s206, %s208
      %p215 = scmp.eq.s32.totalorder %s25, 1
      %p216 = por %p214, %p215
      %p217 = scmp.ne.s32.totalorder %s208, %s209
      %p218 = scmp.eq.s32.totalorder %s25, 0
      %p219 = por %p217, %p218
      %p220 = scmp.ne.s32.totalorder %s208, %s209
      %p221 = scmp.eq.s32.totalorder %s26, 1
      %p222 = por %p220, %p221
      %p224 = scmp.ne.s32.totalorder %s209, %s223
      %p225 = scmp.eq.s32.totalorder %s26, 0
      %p226 = por %p224, %p225
      %s227 = ssub.s32 %s20, %s27
      %p228 = scmp.eq.s32.totalorder %s227, 0
      %s230 = sadd.s32 %s229, 1
      %s231 = scalar_select %p228, %s229, %s230
      %p234 = pneg %p228
      %p235 = scmp.eq.s32.totalorder %s20, 1
      %p236 = por %p234, %p235
      %p237 = scmp.ne.s32.totalorder %s229, %s232
      %p238 = scmp.eq.s32.totalorder %s20, 0
      %p239 = por %p237, %p238
      %p240 = scmp.ne.s32.totalorder %s229, %s232
      %p241 = scmp.eq.s32.totalorder %s25, 1
      %p242 = por %p240, %p241
      %p243 = scmp.ne.s32.totalorder %s232, %s233
      %p244 = scmp.eq.s32.totalorder %s25, 0
      %p245 = por %p243, %p244
      %p246 = scmp.ne.s32.totalorder %s232, %s233
      %p247 = scmp.eq.s32.totalorder %s26, 1
      %p248 = por %p246, %p247
      %p250 = scmp.ne.s32.totalorder %s233, %s249
      %p251 = scmp.eq.s32.totalorder %s26, 0
      %p252 = por %p250, %p251
      %s253 = ssub.s32 %s20, %s27
      %p254 = scmp.eq.s32.totalorder %s253, 0
      %s256 = sadd.s32 %s255, 1
      %s257 = scalar_select %p254, %s255, %s256
      %p260 = pneg %p254
      %p261 = scmp.eq.s32.totalorder %s20, 1
      %p262 = por %p260, %p261
      %p263 = scmp.ne.s32.totalorder %s255, %s258
      %p264 = scmp.eq.s32.totalorder %s20, 0
      %p265 = por %p263, %p264
      %p266 = scmp.ne.s32.totalorder %s255, %s258
      %p267 = scmp.eq.s32.totalorder %s25, 1
      %p268 = por %p266, %p267
      %p269 = scmp.ne.s32.totalorder %s258, %s259
      %p270 = scmp.eq.s32.totalorder %s25, 0
      %p271 = por %p269, %p270
      %p272 = scmp.ne.s32.totalorder %s258, %s259
      %p273 = scmp.eq.s32.totalorder %s26, 1
      %p274 = por %p272, %p273
      %p276 = scmp.ne.s32.totalorder %s259, %s275
      %p277 = scmp.eq.s32.totalorder %s26, 0
      %p278 = por %p276, %p277
      %p279 = scmp.le.s32.totalorder 1, %s20
      %p280 = scmp.lt.s32.totalorder %s20, 3
      %p281 = pnand %p279, %p280
      %p282 = pneg %p281
      // Predicated region
      $region9: #{edge_readout_forward.1} parent=5 // pred_check
        _
      $region10: #{edge_readout_forward.1} parent=5 // pred_check_branch
        %284 = sbr.rel (%p281) target = $region12
      $region11: #{edge_readout_forward.1} parent=5 // pred_region
        %s285 = ssub.s32 %s20, 1
        // Predicated region
        $region13: #{edge_readout_forward.1} parent=11 // pred_check
          %p286 = pneg %p93
        $region14: #{edge_readout_forward.1} parent=11 // pred_check_branch
          %288 = sbr.rel (%p286) target = $region16
        $region15: #{edge_readout_forward.1} parent=11 // pred_region
          _
        $region16: #{edge_readout_forward.1} parent=11 // pred_fallthru
          _
        // Predicated region
        $region17: #{edge_readout_forward.1} parent=11 // pred_check
          %p289 = pneg %p114
        $region18: #{edge_readout_forward.1} parent=11 // pred_check_branch
          %291 = sbr.rel (%p289) target = $region20
        $region19: #{edge_readout_forward.1} parent=11 // pred_region
          _
        $region20: #{edge_readout_forward.1} parent=11 // pred_fallthru
          _
        // Predicated region
        $region21: #{edge_readout_forward.1} parent=11 // pred_check
          %p292 = pneg %p135
        $region22: #{edge_readout_forward.1} parent=11 // pred_check_branch
          %294 = sbr.rel (%p292) target = $region24
        $region23: #{edge_readout_forward.1} parent=11 // pred_region
          _
        $region24: #{edge_readout_forward.1} parent=11 // pred_fallthru
          _
        // Predicated region
        $region25: #{edge_readout_forward.1} parent=11 // pred_check
          %p295 = pneg %p156
        $region26: #{edge_readout_forward.1} parent=11 // pred_check_branch
          %297 = sbr.rel (%p295) target = $region28
        $region27: #{edge_readout_forward.1} parent=11 // pred_region
          _
        $region28: #{edge_readout_forward.1} parent=11 // pred_fallthru
          _
        // Predicated region
        $region29: #{edge_readout_forward.1} parent=11 // pred_check
          %p298 = pneg %p177
        $region30: #{edge_readout_forward.1} parent=11 // pred_check_branch
          %300 = sbr.rel (%p298) target = $region32
        $region31: #{edge_readout_forward.1} parent=11 // pred_region
          _
        $region32: #{edge_readout_forward.1} parent=11 // pred_fallthru
          _
        // Predicated region
        $region33: #{edge_readout_forward.1} parent=11 // pred_check
          %p301 = pneg %p198
        $region34: #{edge_readout_forward.1} parent=11 // pred_check_branch
          %303 = sbr.rel (%p301) target = $region36
        $region35: #{edge_readout_forward.1} parent=11 // pred_region
          _
        $region36: #{edge_readout_forward.1} parent=11 // pred_fallthru
          _
        // Predicated region
        $region37: #{edge_readout_forward.1} parent=11 // pred_check
          %p304 = pneg %p219
        $region38: #{edge_readout_forward.1} parent=11 // pred_check_branch
          %306 = sbr.rel (%p304) target = $region40
        $region39: #{edge_readout_forward.1} parent=11 // pred_region
          _
        $region40: #{edge_readout_forward.1} parent=11 // pred_fallthru
          _
      $region12: #{edge_readout_forward.1} parent=5 // pred_fallthru
        _
      %p307 = scmp.lt.s32.totalorder %s20, 2
      // Predicated region
      $region41: #{edge_readout_forward.1} parent=5 // pred_check
        %p308 = pneg %p307
      $region42: #{edge_readout_forward.1} parent=5 // pred_check_branch
        %310 = sbr.rel (%p308) target = $region44
      $region43: #{edge_readout_forward.1} parent=5 // pred_region
        // Predicated region
        $region45: #{edge_readout_forward.1} parent=43 // pred_check
          %p311 = pneg %p40
        $region46: #{edge_readout_forward.1} parent=43 // pred_check_branch
          %313 = sbr.rel (%p311) target = $region48
        $region47: #{edge_readout_forward.1} parent=43 // pred_region
          %s314 = sand.u32 %s30, 1
          %s315 = sand.u32 %s30, 1
          %s316 = smul.addr %s315, 192
          %s317 = scalar_lea.vmem [#allocation3], %s316
          %s318 = smul.u32 4, %s20
          %s319 = smul.addr %s318, 8
          %s320 = scalar_lea.vmem %s0, %s319
          // Predicated region
          $region49: #{edge_readout_forward.1} parent=47 // pred_check
            _
          $region50: #{edge_readout_forward.1} parent=47 // pred_check_branch
            %322 = sbr.rel (0) target = $region52
          $region51: #{edge_readout_forward.1} parent=47 // pred_region
            // Predicated region
            $region53: #{edge_readout_forward.1} parent=51 // pred_check
              _
            $region54: #{edge_readout_forward.1} parent=51 // pred_check_branch
              %324 = sbr.rel (0) target = $region56
            $region55: #{edge_readout_forward.1} parent=51 // pred_region
              loop: start=0, step=1, limit=1
              $region57: #{edge_readout_forward.1} parent=55 // loop_pre_header
                _
              $region58: #{edge_readout_forward.1} parent=55 // loop_header
                %s326 = sphi 0, %s330
                %p327 = scmp.ge.s32.totalorder %s326, 1
                %s331 = sphi %s320, %s320
                %s332 = sphi %s317, %s317
              $region59: #{edge_readout_forward.1} parent=55 // loop_header_branch
                %329 = sbr.rel (%p327) target = $region63
              $region60: #{edge_readout_forward.1} parent=55 // loop_body
                %v333 = vld [vmem:[%s331] sm:$0xff]
                %334 = vst [vmem:[%s332] sm:$0xff] %v333
                %v335 = vld [vmem:[%s331 + $0x8] sm:$0xff]
                %336 = vst [vmem:[%s332 + $0x8] sm:$0xff] %v335
                %v337 = vld [vmem:[%s331 + $0x10] sm:$0xff]
                %338 = vst [vmem:[%s332 + $0x10] sm:$0xff] %v337
                %v339 = vld [vmem:[%s331 + $0x18] sm:$0xff]
                %340 = vst [vmem:[%s332 + $0x18] sm:$0xff] %v339
                %v341 = vld [vmem:[%s331 + $0x40] sm:$0xff]
                %342 = vst [vmem:[%s332 + $0x20] sm:$0xff] %v341
                %v343 = vld [vmem:[%s331 + $0x48] sm:$0xff]
                %344 = vst [vmem:[%s332 + $0x28] sm:$0xff] %v343
                %v345 = vld [vmem:[%s331 + $0x50] sm:$0xff]
                %346 = vst [vmem:[%s332 + $0x30] sm:$0xff] %v345
                %v347 = vld [vmem:[%s331 + $0x58] sm:$0xff]
                %348 = vst [vmem:[%s332 + $0x38] sm:$0xff] %v347
                %v349 = vld [vmem:[%s331 + $0x80] sm:$0xff]
                %350 = vst [vmem:[%s332 + $0x40] sm:$0xff] %v349
                %v351 = vld [vmem:[%s331 + $0x88] sm:$0xff]
                %352 = vst [vmem:[%s332 + $0x48] sm:$0xff] %v351
                %v353 = vld [vmem:[%s331 + $0x90] sm:$0xff]
                %354 = vst [vmem:[%s332 + $0x50] sm:$0xff] %v353
                %v355 = vld [vmem:[%s331 + $0x98] sm:$0xff]
                %356 = vst [vmem:[%s332 + $0x58] sm:$0xff] %v355
                %v357 = vld [vmem:[%s331 + $0xc0] sm:$0xff]
                %358 = vst [vmem:[%s332 + $0x60] sm:$0xff] %v357
                %v359 = vld [vmem:[%s331 + $0xc8] sm:$0xff]
                %360 = vst [vmem:[%s332 + $0x68] sm:$0xff] %v359
                %v361 = vld [vmem:[%s331 + $0xd0] sm:$0xff]
                %362 = vst [vmem:[%s332 + $0x70] sm:$0xff] %v361
                %v363 = vld [vmem:[%s331 + $0xd8] sm:$0xff]
                %364 = vst [vmem:[%s332 + $0x78] sm:$0xff] %v363
                %v365 = vld [vmem:[%s331 + $0x100] sm:$0xff]
                %366 = vst [vmem:[%s332 + $0x80] sm:$0xff] %v365
                %v367 = vld [vmem:[%s331 + $0x108] sm:$0xff]
                %368 = vst [vmem:[%s332 + $0x88] sm:$0xff] %v367
                %v369 = vld [vmem:[%s331 + $0x110] sm:$0xff]
                %370 = vst [vmem:[%s332 + $0x90] sm:$0xff] %v369
                %v371 = vld [vmem:[%s331 + $0x118] sm:$0xff]
                %372 = vst [vmem:[%s332 + $0x98] sm:$0xff] %v371
                %v373 = vld [vmem:[%s331 + $0x140] sm:$0xff]
                %374 = vst [vmem:[%s332 + $0xa0] sm:$0xff] %v373
                %v375 = vld [vmem:[%s331 + $0x148] sm:$0xff]
                %376 = vst [vmem:[%s332 + $0xa8] sm:$0xff] %v375
                %v377 = vld [vmem:[%s331 + $0x150] sm:$0xff]
                %378 = vst [vmem:[%s332 + $0xb0] sm:$0xff] %v377
                %v379 = vld [vmem:[%s331 + $0x158] sm:$0xff]
                %380 = vst [vmem:[%s332 + $0xb8] sm:$0xff] %v379
              $region61: #{edge_readout_forward.1} parent=55 // loop_footer
                %s330 = sadd.s32 1, %s326
              $region62: #{edge_readout_forward.1} parent=55 // loop_footer_branch
                %325 = sbr.rel target = $region58
              $region63: #{edge_readout_forward.1} parent=55 // loop_exit
                _
            $region56: #{edge_readout_forward.1} parent=51 // pred_fallthru
              _
            // Predicated region
            $region64: #{edge_readout_forward.1} parent=51 // pred_check
              _
            $region65: #{edge_readout_forward.1} parent=51 // pred_check_branch
              %382 = sbr.rel target = $region67
            $region66: #{edge_readout_forward.1} parent=51 // pred_region
              _
            $region67: #{edge_readout_forward.1} parent=51 // pred_fallthru
              _
          $region52: #{edge_readout_forward.1} parent=47 // pred_fallthru
            _
          %383 = vnop
        $region48: #{edge_readout_forward.1} parent=43 // pred_fallthru
          _
        // Predicated region
        $region68: #{edge_readout_forward.1} parent=43 // pred_check
          %p384 = pneg %p66
        $region69: #{edge_readout_forward.1} parent=43 // pred_check_branch
          %386 = sbr.rel (%p384) target = $region71
        $region70: #{edge_readout_forward.1} parent=43 // pred_region
          %s387 = sand.u32 %s56, 1
          %s388 = sand.u32 %s56, 1
          %s389 = smul.addr %s388, 96
          %s390 = scalar_lea.vmem [#allocation4], %s389
          %s391 = smul.u32 4, %s20
          %s392 = smul.addr %s391, 8
          %s393 = scalar_lea.vmem %s1, %s392
          // Predicated region
          $region72: #{edge_readout_forward.1} parent=70 // pred_check
            _
          $region73: #{edge_readout_forward.1} parent=70 // pred_check_branch
            %395 = sbr.rel (0) target = $region75
          $region74: #{edge_readout_forward.1} parent=70 // pred_region
            // Predicated region
            $region76: #{edge_readout_forward.1} parent=74 // pred_check
              _
            $region77: #{edge_readout_forward.1} parent=74 // pred_check_branch
              %397 = sbr.rel (0) target = $region79
            $region78: #{edge_readout_forward.1} parent=74 // pred_region
              loop: start=0, step=1, limit=1
              $region80: #{edge_readout_forward.1} parent=78 // loop_pre_header
                _
              $region81: #{edge_readout_forward.1} parent=78 // loop_header
                %s399 = sphi 0, %s403
                %p400 = scmp.ge.s32.totalorder %s399, 1
                %s404 = sphi %s393, %s393
                %s405 = sphi %s390, %s390
              $region82: #{edge_readout_forward.1} parent=78 // loop_header_branch
                %402 = sbr.rel (%p400) target = $region86
              $region83: #{edge_readout_forward.1} parent=78 // loop_body
                %v406 = vld [vmem:[%s404] sm:$0xff]
                %407 = vst [vmem:[%s405] sm:$0xff] %v406
                %v408 = vld [vmem:[%s404 + $0x8] sm:$0xff]
                %409 = vst [vmem:[%s405 + $0x8] sm:$0xff] %v408
                %v410 = vld [vmem:[%s404 + $0x10] sm:$0xff]
                %411 = vst [vmem:[%s405 + $0x10] sm:$0xff] %v410
                %v412 = vld [vmem:[%s404 + $0x18] sm:$0xff]
                %413 = vst [vmem:[%s405 + $0x18] sm:$0xff] %v412
                %v414 = vld [vmem:[%s404 + $0x40] sm:$0xff]
                %415 = vst [vmem:[%s405 + $0x20] sm:$0xff] %v414
                %v416 = vld [vmem:[%s404 + $0x48] sm:$0xff]
                %417 = vst [vmem:[%s405 + $0x28] sm:$0xff] %v416
                %v418 = vld [vmem:[%s404 + $0x50] sm:$0xff]
                %419 = vst [vmem:[%s405 + $0x30] sm:$0xff] %v418
                %v420 = vld [vmem:[%s404 + $0x58] sm:$0xff]
                %421 = vst [vmem:[%s405 + $0x38] sm:$0xff] %v420
                %v422 = vld [vmem:[%s404 + $0x80] sm:$0xff]
                %423 = vst [vmem:[%s405 + $0x40] sm:$0xff] %v422
                %v424 = vld [vmem:[%s404 + $0x88] sm:$0xff]
                %425 = vst [vmem:[%s405 + $0x48] sm:$0xff] %v424
                %v426 = vld [vmem:[%s404 + $0x90] sm:$0xff]
                %427 = vst [vmem:[%s405 + $0x50] sm:$0xff] %v426
                %v428 = vld [vmem:[%s404 + $0x98] sm:$0xff]
                %429 = vst [vmem:[%s405 + $0x58] sm:$0xff] %v428
              $region84: #{edge_readout_forward.1} parent=78 // loop_footer
                %s403 = sadd.s32 1, %s399
              $region85: #{edge_readout_forward.1} parent=78 // loop_footer_branch
                %398 = sbr.rel target = $region81
              $region86: #{edge_readout_forward.1} parent=78 // loop_exit
                _
            $region79: #{edge_readout_forward.1} parent=74 // pred_fallthru
              _
            // Predicated region
            $region87: #{edge_readout_forward.1} parent=74 // pred_check
              _
            $region88: #{edge_readout_forward.1} parent=74 // pred_check_branch
              %431 = sbr.rel target = $region90
            $region89: #{edge_readout_forward.1} parent=74 // pred_region
              _
            $region90: #{edge_readout_forward.1} parent=74 // pred_fallthru
              _
          $region75: #{edge_readout_forward.1} parent=70 // pred_fallthru
            _
          %432 = vnop
        $region71: #{edge_readout_forward.1} parent=43 // pred_fallthru
          _
      $region44: #{edge_readout_forward.1} parent=5 // pred_fallthru
        _
      %p433 = scmp.le.s32.totalorder 1, %s20
      %p434 = scmp.lt.s32.totalorder %s20, 3
      %p435 = pnand %p433, %p434
      %p436 = pneg %p435
      // Predicated region
      $region91: #{edge_readout_forward.1} parent=5 // pred_check
        _
      $region92: #{edge_readout_forward.1} parent=5 // pred_check_branch
        %438 = sbr.rel (%p435) target = $region94
      $region93: #{edge_readout_forward.1} parent=5 // pred_region
        %s439 = ssub.s32 %s20, 1
        %s440 = sand.u32 %s33, 1
        %s441 = sand.u32 %s33, 1
        %s442 = smul.addr %s441, 192
        %s443 = scalar_lea.vmem [#allocation3], %s442
        // Predicated region
        $region95: #{edge_readout_forward.1} parent=93 // pred_check
          %p444 = pneg %p46
        $region96: #{edge_readout_forward.1} parent=93 // pred_check_branch
          %446 = sbr.rel (%p444) target = $region98
        $region97: #{edge_readout_forward.1} parent=93 // pred_region
          _
        $region98: #{edge_readout_forward.1} parent=93 // pred_fallthru
          _
        %s447 = sand.u32 %s59, 1
        %s448 = sand.u32 %s59, 1
        %s449 = smul.addr %s448, 96
        %s450 = scalar_lea.vmem [#allocation4], %s449
        // Predicated region
        $region99: #{edge_readout_forward.1} parent=93 // pred_check
          %p451 = pneg %p72
        $region100: #{edge_readout_forward.1} parent=93 // pred_check_branch
          %453 = sbr.rel (%p451) target = $region102
        $region101: #{edge_readout_forward.1} parent=93 // pred_region
          _
        $region102: #{edge_readout_forward.1} parent=93 // pred_fallthru
          _
        %s454 = sand.u32 %s33, 1
        %s455 = sand.u32 %s33, 1
        %s456 = smul.addr %s455, 192
        %s457 = scalar_lea.vmem [#allocation3], %s456
        %p458 = pneg %p46
        %p459 = pneg %p43
        %s460 = sand.u32 %s59, 1
        %s461 = sand.u32 %s59, 1
        %s462 = smul.addr %s461, 96
        %s463 = scalar_lea.vmem [#allocation4], %s462
        %p464 = pneg %p72
        %p465 = pneg %p69
        %p466 = pneg %p93
        %p467 = pneg %p90
        %p468 = pneg %p114
        %p469 = pneg %p111
        %p470 = pneg %p135
        %p471 = pneg %p132
        %p472 = pneg %p156
        %p473 = pneg %p153
        %p474 = pneg %p177
        %p475 = pneg %p174
        %p476 = pneg %p198
        %p477 = pneg %p195
        %p478 = pneg %p219
        %p479 = pneg %p216
        %p480 = pneg %p245
        %p481 = pneg %p242
        %s482 = sand.u32 %s232, 1
        %s483 = sand.u32 %s232, 1
        %s484 = smul.addr %s483, 96
        %s485 = scalar_lea.vmem [#allocation5], %s484
        %p486 = pneg %p271
        %p487 = pneg %p268
        %s488 = sand.u32 %s258, 1
        %s489 = scalar_lea.sflag [#allocation7], %s488
        %s490 = sand.u32 %s258, 1
        %s491 = smul.addr %s490, 32
        %s492 = scalar_lea.vmem [#allocation6], %s491
        %s493 = smul.u32 4, %s25
        %s494 = smul.u32 4, %s25
        %s495 = smul.u32 4, %s25
        %s496 = smul.u32 4, %s25
        %v497 = vld [vmem:[%s443] sm:$0xff]
        %v498 = vld [vmem:[%s443 + $0x8] sm:$0xff]
        %v499 = vld [vmem:[%s443 + $0x10] sm:$0xff]
        %v500 = vld [vmem:[%s443 + $0x18] sm:$0xff]
        %v501 = vld [vmem:[%s443 + $0x20] sm:$0xff]
        %v502 = vld [vmem:[%s443 + $0x28] sm:$0xff]
        %v503 = vld [vmem:[%s443 + $0x30] sm:$0xff]
        %v504 = vld [vmem:[%s443 + $0x38] sm:$0xff]
        %v505 = vld [vmem:[%s443 + $0x40] sm:$0xff]
        %v506 = vld [vmem:[%s443 + $0x48] sm:$0xff]
        %v507 = vld [vmem:[%s443 + $0x50] sm:$0xff]
        %v508 = vld [vmem:[%s443 + $0x58] sm:$0xff]
        %v509 = vld [vmem:[%s443 + $0x60] sm:$0xff]
        %v510 = vld [vmem:[%s443 + $0x68] sm:$0xff]
        %v511 = vld [vmem:[%s443 + $0x70] sm:$0xff]
        %v512 = vld [vmem:[%s443 + $0x78] sm:$0xff]
        %v513 = vld [vmem:[%s443 + $0x80] sm:$0xff]
        %v514 = vld [vmem:[%s443 + $0x88] sm:$0xff]
        %v515 = vld [vmem:[%s443 + $0x90] sm:$0xff]
        %v516 = vld [vmem:[%s443 + $0x98] sm:$0xff]
        %v517 = vld [vmem:[%s443 + $0xa0] sm:$0xff]
        %v518 = vld [vmem:[%s443 + $0xa8] sm:$0xff]
        %v519 = vld [vmem:[%s443 + $0xb0] sm:$0xff]
        %v520 = vld [vmem:[%s443 + $0xb8] sm:$0xff]
        %v521 = vld [vmem:[%s450] sm:$0xff]
        %v522 = vld [vmem:[%s450 + $0x8] sm:$0xff]
        %v523 = vld [vmem:[%s450 + $0x10] sm:$0xff]
        %v524 = vld [vmem:[%s450 + $0x18] sm:$0xff]
        %v525 = vld [vmem:[%s450 + $0x20] sm:$0xff]
        %v526 = vld [vmem:[%s450 + $0x28] sm:$0xff]
        %v527 = vld [vmem:[%s450 + $0x30] sm:$0xff]
        %v528 = vld [vmem:[%s450 + $0x38] sm:$0xff]
        %v529 = vld [vmem:[%s450 + $0x40] sm:$0x7]
        %v530 = vld [vmem:[%s450 + $0x48] sm:$0x7]
        %v531 = vld [vmem:[%s450 + $0x50] sm:$0x7]
        %v532 = vld [vmem:[%s450 + $0x58] sm:$0x7]
        %v533 = vlaneseq
        %v534 = vshrl.u32 %v533, 7
        %v535 = vsub.s32 0, %v534
        %v536 = vrot.slane %v497, %v535
        %v537 = vlaneseq
        %v538 = vshrl.u32 %v537, 7
        %v539 = vsub.s32 0, %v538
        %v540 = vrot.slane %v498, %v539
        %v541 = vlaneseq
        %v542 = vshrl.u32 %v541, 7
        %v543 = vsub.s32 0, %v542
        %v544 = vrot.slane %v499, %v543
        %v545 = vlaneseq
        %v546 = vshrl.u32 %v545, 7
        %v547 = vsub.s32 0, %v546
        %v548 = vrot.slane %v500, %v547
        %v549 = vlaneseq
        %v550 = vshrl.u32 %v549, 7
        %v551 = vsub.s32 0, %v550
        %v552 = vrot.slane %v505, %v551
        %v553 = vlaneseq
        %v554 = vshrl.u32 %v553, 7
        %v555 = vsub.s32 0, %v554
        %v556 = vrot.slane %v506, %v555
        %v557 = vlaneseq
        %v558 = vshrl.u32 %v557, 7
        %v559 = vsub.s32 0, %v558
        %v560 = vrot.slane %v507, %v559
        %v561 = vlaneseq
        %v562 = vshrl.u32 %v561, 7
        %v563 = vsub.s32 0, %v562
        %v564 = vrot.slane %v508, %v563
        %v565 = vlaneseq
        %v566 = vshrl.u32 %v565, 7
        %v567 = vsub.s32 0, %v566
        %v568 = vrot.slane %v513, %v567
        %v569 = vlaneseq
        %v570 = vshrl.u32 %v569, 7
        %v571 = vsub.s32 0, %v570
        %v572 = vrot.slane %v514, %v571
        %v573 = vlaneseq
        %v574 = vshrl.u32 %v573, 7
        %v575 = vsub.s32 0, %v574
        %v576 = vrot.slane %v515, %v575
        %v577 = vlaneseq
        %v578 = vshrl.u32 %v577, 7
        %v579 = vsub.s32 0, %v578
        %v580 = vrot.slane %v516, %v579
        %v581 = vmul.f32 %v536, %v497
        %v582 = vmul.f32 %v540, %v498
        %v583 = vmul.f32 %v544, %v499
        %v584 = vmul.f32 %v548, %v500
        %v585 = vmul.f32 %v536, %v501
        %v586 = vmul.f32 %v540, %v502
        %v587 = vmul.f32 %v544, %v503
        %v588 = vmul.f32 %v548, %v504
        %v589 = vmul.f32 %v552, %v505
        %v590 = vmul.f32 %v556, %v506
        %v591 = vmul.f32 %v560, %v507
        %v592 = vmul.f32 %v564, %v508
        %v593 = vmul.f32 %v552, %v509
        %v594 = vmul.f32 %v556, %v510
        %v595 = vmul.f32 %v560, %v511
        %v596 = vmul.f32 %v564, %v512
        %v597 = vmul.f32 %v568, %v513
        %v598 = vmul.f32 %v572, %v514
        %v599 = vmul.f32 %v576, %v515
        %v600 = vmul.f32 %v580, %v516
        %v601 = vmul.f32 %v568, %v517
        %v602 = vmul.f32 %v572, %v518
        %v603 = vmul.f32 %v576, %v519
        %v604 = vmul.f32 %v580, %v520
        %v605 = vadd.f32 %v581, %v589
        %v606 = vadd.f32 %v605, %v597
        %v607 = vadd.f32 %v582, %v590
        %v608 = vadd.f32 %v607, %v598
        %v609 = vadd.f32 %v583, %v591
        %v610 = vadd.f32 %v609, %v599
        %v611 = vadd.f32 %v584, %v592
        %v612 = vadd.f32 %v611, %v600
        %v613 = vadd.f32 %v585, %v593
        %v614 = vadd.f32 %v613, %v601
        %v615 = vadd.f32 %v586, %v594
        %v616 = vadd.f32 %v615, %v602
        %v617 = vadd.f32 %v587, %v595
        %v618 = vadd.f32 %v617, %v603
        %v619 = vadd.f32 %v588, %v596
        %v620 = vadd.f32 %v619, %v604
        %621 = vst [vmem:[#allocation2] sm:$0xff] %v606
        %622 = vst [vmem:[#allocation2 + $0x8] sm:$0xff] %v608
        %623 = vst [vmem:[#allocation2 + $0x10] sm:$0xff] %v610
        %624 = vst [vmem:[#allocation2 + $0x18] sm:$0xff] %v612
        %625 = vst [vmem:[#allocation2 + $0x20] sm:$0xff] %v614
        %626 = vst [vmem:[#allocation2 + $0x28] sm:$0xff] %v616
        %627 = vst [vmem:[#allocation2 + $0x30] sm:$0xff] %v618
        %628 = vst [vmem:[#allocation2 + $0x38] sm:$0xff] %v620
        %v629 = vlaneseq
        %v630 = vshrl.u32 %v629, 7
        %v631 = vsub.s32 1, %v630
        %v632 = vrot.slane %v497, %v631
        %v633 = vlaneseq
        %v634 = vshrl.u32 %v633, 7
        %v635 = vsub.s32 1, %v634
        %v636 = vrot.slane %v498, %v635
        %v637 = vlaneseq
        %v638 = vshrl.u32 %v637, 7
        %v639 = vsub.s32 1, %v638
        %v640 = vrot.slane %v499, %v639
        %v641 = vlaneseq
        %v642 = vshrl.u32 %v641, 7
        %v643 = vsub.s32 1, %v642
        %v644 = vrot.slane %v500, %v643
        %v645 = vlaneseq
        %v646 = vshrl.u32 %v645, 7
        %v647 = vsub.s32 1, %v646
        %v648 = vrot.slane %v505, %v647
        %v649 = vlaneseq
        %v650 = vshrl.u32 %v649, 7
        %v651 = vsub.s32 1, %v650
        %v652 = vrot.slane %v506, %v651
        %v653 = vlaneseq
        %v654 = vshrl.u32 %v653, 7
        %v655 = vsub.s32 1, %v654
        %v656 = vrot.slane %v507, %v655
        %v657 = vlaneseq
        %v658 = vshrl.u32 %v657, 7
        %v659 = vsub.s32 1, %v658
        %v660 = vrot.slane %v508, %v659
        %v661 = vlaneseq
        %v662 = vshrl.u32 %v661, 7
        %v663 = vsub.s32 1, %v662
        %v664 = vrot.slane %v513, %v663
        %v665 = vlaneseq
        %v666 = vshrl.u32 %v665, 7
        %v667 = vsub.s32 1, %v666
        %v668 = vrot.slane %v514, %v667
        %v669 = vlaneseq
        %v670 = vshrl.u32 %v669, 7
        %v671 = vsub.s32 1, %v670
        %v672 = vrot.slane %v515, %v671
        %v673 = vlaneseq
        %v674 = vshrl.u32 %v673, 7
        %v675 = vsub.s32 1, %v674
        %v676 = vrot.slane %v516, %v675
        %v677 = vmul.f32 %v632, %v497
        %v678 = vmul.f32 %v636, %v498
        %v679 = vmul.f32 %v640, %v499
        %v680 = vmul.f32 %v644, %v500
        %v681 = vmul.f32 %v632, %v501
        %v682 = vmul.f32 %v636, %v502
        %v683 = vmul.f32 %v640, %v503
        %v684 = vmul.f32 %v644, %v504
        %v685 = vmul.f32 %v648, %v505
        %v686 = vmul.f32 %v652, %v506
        %v687 = vmul.f32 %v656, %v507
        %v688 = vmul.f32 %v660, %v508
        %v689 = vmul.f32 %v648, %v509
        %v690 = vmul.f32 %v652, %v510
        %v691 = vmul.f32 %v656, %v511
        %v692 = vmul.f32 %v660, %v512
        %v693 = vmul.f32 %v664, %v513
        %v694 = vmul.f32 %v668, %v514
        %v695 = vmul.f32 %v672, %v515
        %v696 = vmul.f32 %v676, %v516
        %v697 = vmul.f32 %v664, %v517
        %v698 = vmul.f32 %v668, %v518
        %v699 = vmul.f32 %v672, %v519
        %v700 = vmul.f32 %v676, %v520
        %v701 = vadd.f32 %v677, %v685
        %v702 = vadd.f32 %v701, %v693
        %v703 = vadd.f32 %v678, %v686
        %v704 = vadd.f32 %v703, %v694
        %v705 = vadd.f32 %v679, %v687
        %v706 = vadd.f32 %v705, %v695
        %v707 = vadd.f32 %v680, %v688
        %v708 = vadd.f32 %v707, %v696
        %v709 = vadd.f32 %v681, %v689
        %v710 = vadd.f32 %v709, %v697
        %v711 = vadd.f32 %v682, %v690
        %v712 = vadd.f32 %v711, %v698
        %v713 = vadd.f32 %v683, %v691
        %v714 = vadd.f32 %v713, %v699
        %v715 = vadd.f32 %v684, %v692
        %v716 = vadd.f32 %v715, %v700
        %717 = vst [vmem:[#allocation2 + $0x40] sm:$0xff] %v702
        %718 = vst [vmem:[#allocation2 + $0x48] sm:$0xff] %v704
        %719 = vst [vmem:[#allocation2 + $0x50] sm:$0xff] %v706
        %720 = vst [vmem:[#allocation2 + $0x58] sm:$0xff] %v708
        %721 = vst [vmem:[#allocation2 + $0x60] sm:$0xff] %v710
        %722 = vst [vmem:[#allocation2 + $0x68] sm:$0xff] %v712
        %723 = vst [vmem:[#allocation2 + $0x70] sm:$0xff] %v714
        %724 = vst [vmem:[#allocation2 + $0x78] sm:$0xff] %v716
        %v725 = vlaneseq
        %v726 = vshrl.u32 %v725, 7
        %v727 = vsub.s32 2, %v726
        %v728 = vrot.slane %v497, %v727
        %v729 = vlaneseq
        %v730 = vshrl.u32 %v729, 7
        %v731 = vsub.s32 2, %v730
        %v732 = vrot.slane %v498, %v731
        %v733 = vlaneseq
        %v734 = vshrl.u32 %v733, 7
        %v735 = vsub.s32 2, %v734
        %v736 = vrot.slane %v499, %v735
        %v737 = vlaneseq
        %v738 = vshrl.u32 %v737, 7
        %v739 = vsub.s32 2, %v738
        %v740 = vrot.slane %v500, %v739
        %v741 = vlaneseq
        %v742 = vshrl.u32 %v741, 7
        %v743 = vsub.s32 2, %v742
        %v744 = vrot.slane %v505, %v743
        %v745 = vlaneseq
        %v746 = vshrl.u32 %v745, 7
        %v747 = vsub.s32 2, %v746
        %v748 = vrot.slane %v506, %v747
        %v749 = vlaneseq
        %v750 = vshrl.u32 %v749, 7
        %v751 = vsub.s32 2, %v750
        %v752 = vrot.slane %v507, %v751
        %v753 = vlaneseq
        %v754 = vshrl.u32 %v753, 7
        %v755 = vsub.s32 2, %v754
        %v756 = vrot.slane %v508, %v755
        %v757 = vlaneseq
        %v758 = vshrl.u32 %v757, 7
        %v759 = vsub.s32 2, %v758
        %v760 = vrot.slane %v513, %v759
        %v761 = vlaneseq
        %v762 = vshrl.u32 %v761, 7
        %v763 = vsub.s32 2, %v762
        %v764 = vrot.slane %v514, %v763
        %v765 = vlaneseq
        %v766 = vshrl.u32 %v765, 7
        %v767 = vsub.s32 2, %v766
        %v768 = vrot.slane %v515, %v767
        %v769 = vlaneseq
        %v770 = vshrl.u32 %v769, 7
        %v771 = vsub.s32 2, %v770
        %v772 = vrot.slane %v516, %v771
        %v773 = vmul.f32 %v728, %v497
        %v774 = vmul.f32 %v732, %v498
        %v775 = vmul.f32 %v736, %v499
        %v776 = vmul.f32 %v740, %v500
        %v777 = vmul.f32 %v728, %v501
        %v778 = vmul.f32 %v732, %v502
        %v779 = vmul.f32 %v736, %v503
        %v780 = vmul.f32 %v740, %v504
        %v781 = vmul.f32 %v744, %v505
        %v782 = vmul.f32 %v748, %v506
        %v783 = vmul.f32 %v752, %v507
        %v784 = vmul.f32 %v756, %v508
        %v785 = vmul.f32 %v744, %v509
        %v786 = vmul.f32 %v748, %v510
        %v787 = vmul.f32 %v752, %v511
        %v788 = vmul.f32 %v756, %v512
        %v789 = vmul.f32 %v760, %v513
        %v790 = vmul.f32 %v764, %v514
        %v791 = vmul.f32 %v768, %v515
        %v792 = vmul.f32 %v772, %v516
        %v793 = vmul.f32 %v760, %v517
        %v794 = vmul.f32 %v764, %v518
        %v795 = vmul.f32 %v768, %v519
        %v796 = vmul.f32 %v772, %v520
        %v797 = vadd.f32 %v773, %v781
        %v798 = vadd.f32 %v797, %v789
        %v799 = vadd.f32 %v774, %v782
        %v800 = vadd.f32 %v799, %v790
        %v801 = vadd.f32 %v775, %v783
        %v802 = vadd.f32 %v801, %v791
        %v803 = vadd.f32 %v776, %v784
        %v804 = vadd.f32 %v803, %v792
        %v805 = vadd.f32 %v777, %v785
        %v806 = vadd.f32 %v805, %v793
        %v807 = vadd.f32 %v778, %v786
        %v808 = vadd.f32 %v807, %v794
        %v809 = vadd.f32 %v779, %v787
        %v810 = vadd.f32 %v809, %v795
        %v811 = vadd.f32 %v780, %v788
        %v812 = vadd.f32 %v811, %v796
        %813 = vst [vmem:[#allocation2 + $0x80] sm:$0xff] %v798
        %814 = vst [vmem:[#allocation2 + $0x88] sm:$0xff] %v800
        %815 = vst [vmem:[#allocation2 + $0x90] sm:$0xff] %v802
        %816 = vst [vmem:[#allocation2 + $0x98] sm:$0xff] %v804
        %817 = vst [vmem:[#allocation2 + $0xa0] sm:$0xff] %v806
        %818 = vst [vmem:[#allocation2 + $0xa8] sm:$0xff] %v808
        %819 = vst [vmem:[#allocation2 + $0xb0] sm:$0xff] %v810
        %820 = vst [vmem:[#allocation2 + $0xb8] sm:$0xff] %v812
        %v821 = vlaneseq
        %v822 = vshrl.u32 %v821, 7
        %v823 = vsub.s32 3, %v822
        %v824 = vrot.slane %v497, %v823
        %v825 = vlaneseq
        %v826 = vshrl.u32 %v825, 7
        %v827 = vsub.s32 3, %v826
        %v828 = vrot.slane %v498, %v827
        %v829 = vlaneseq
        %v830 = vshrl.u32 %v829, 7
        %v831 = vsub.s32 3, %v830
        %v832 = vrot.slane %v499, %v831
        %v833 = vlaneseq
        %v834 = vshrl.u32 %v833, 7
        %v835 = vsub.s32 3, %v834
        %v836 = vrot.slane %v500, %v835
        %v837 = vlaneseq
        %v838 = vshrl.u32 %v837, 7
        %v839 = vsub.s32 3, %v838
        %v840 = vrot.slane %v505, %v839
        %v841 = vlaneseq
        %v842 = vshrl.u32 %v841, 7
        %v843 = vsub.s32 3, %v842
        %v844 = vrot.slane %v506, %v843
        %v845 = vlaneseq
        %v846 = vshrl.u32 %v845, 7
        %v847 = vsub.s32 3, %v846
        %v848 = vrot.slane %v507, %v847
        %v849 = vlaneseq
        %v850 = vshrl.u32 %v849, 7
        %v851 = vsub.s32 3, %v850
        %v852 = vrot.slane %v508, %v851
        %v853 = vlaneseq
        %v854 = vshrl.u32 %v853, 7
        %v855 = vsub.s32 3, %v854
        %v856 = vrot.slane %v513, %v855
        %v857 = vlaneseq
        %v858 = vshrl.u32 %v857, 7
        %v859 = vsub.s32 3, %v858
        %v860 = vrot.slane %v514, %v859
        %v861 = vlaneseq
        %v862 = vshrl.u32 %v861, 7
        %v863 = vsub.s32 3, %v862
        %v864 = vrot.slane %v515, %v863
        %v865 = vlaneseq
        %v866 = vshrl.u32 %v865, 7
        %v867 = vsub.s32 3, %v866
        %v868 = vrot.slane %v516, %v867
        %v869 = vmul.f32 %v824, %v497
        %v870 = vmul.f32 %v828, %v498
        %v871 = vmul.f32 %v832, %v499
        %v872 = vmul.f32 %v836, %v500
        %v873 = vmul.f32 %v824, %v501
        %v874 = vmul.f32 %v828, %v502
        %v875 = vmul.f32 %v832, %v503
        %v876 = vmul.f32 %v836, %v504
        %v877 = vmul.f32 %v840, %v505
        %v878 = vmul.f32 %v844, %v506
        %v879 = vmul.f32 %v848, %v507
        %v880 = vmul.f32 %v852, %v508
        %v881 = vmul.f32 %v840, %v509
        %v882 = vmul.f32 %v844, %v510
        %v883 = vmul.f32 %v848, %v511
        %v884 = vmul.f32 %v852, %v512
        %v885 = vmul.f32 %v856, %v513
        %v886 = vmul.f32 %v860, %v514
        %v887 = vmul.f32 %v864, %v515
        %v888 = vmul.f32 %v868, %v516
        %v889 = vmul.f32 %v856, %v517
        %v890 = vmul.f32 %v860, %v518
        %v891 = vmul.f32 %v864, %v519
        %v892 = vmul.f32 %v868, %v520
        %v893 = vadd.f32 %v869, %v877
        %v894 = vadd.f32 %v893, %v885
        %v895 = vadd.f32 %v870, %v878
        %v896 = vadd.f32 %v895, %v886
        %v897 = vadd.f32 %v871, %v879
        %v898 = vadd.f32 %v897, %v887
        %v899 = vadd.f32 %v872, %v880
        %v900 = vadd.f32 %v899, %v888
        %v901 = vadd.f32 %v873, %v881
        %v902 = vadd.f32 %v901, %v889
        %v903 = vadd.f32 %v874, %v882
        %v904 = vadd.f32 %v903, %v890
        %v905 = vadd.f32 %v875, %v883
        %v906 = vadd.f32 %v905, %v891
        %v907 = vadd.f32 %v876, %v884
        %v908 = vadd.f32 %v907, %v892
        %909 = vst [vmem:[#allocation2 + $0xc0] sm:$0xff] %v894
        %910 = vst [vmem:[#allocation2 + $0xc8] sm:$0xff] %v896
        %911 = vst [vmem:[#allocation2 + $0xd0] sm:$0xff] %v898
        %912 = vst [vmem:[#allocation2 + $0xd8] sm:$0xff] %v900
        %913 = vst [vmem:[#allocation2 + $0xe0] sm:$0xff] %v902
        %914 = vst [vmem:[#allocation2 + $0xe8] sm:$0xff] %v904
        %915 = vst [vmem:[#allocation2 + $0xf0] sm:$0xff] %v906
        %916 = vst [vmem:[#allocation2 + $0xf8] sm:$0xff] %v908
        %v917 = vlaneseq
        %v918 = vshrl.u32 %v917, 7
        %v919 = vsub.s32 4, %v918
        %v920 = vrot.slane %v497, %v919
        %v921 = vlaneseq
        %v922 = vshrl.u32 %v921, 7
        %v923 = vsub.s32 4, %v922
        %v924 = vrot.slane %v498, %v923
        %v925 = vlaneseq
        %v926 = vshrl.u32 %v925, 7
        %v927 = vsub.s32 4, %v926
        %v928 = vrot.slane %v499, %v927
        %v929 = vlaneseq
        %v930 = vshrl.u32 %v929, 7
        %v931 = vsub.s32 4, %v930
        %v932 = vrot.slane %v500, %v931
        %v933 = vlaneseq
        %v934 = vshrl.u32 %v933, 7
        %v935 = vsub.s32 4, %v934
        %v936 = vrot.slane %v505, %v935
        %v937 = vlaneseq
        %v938 = vshrl.u32 %v937, 7
        %v939 = vsub.s32 4, %v938
        %v940 = vrot.slane %v506, %v939
        %v941 = vlaneseq
        %v942 = vshrl.u32 %v941, 7
        %v943 = vsub.s32 4, %v942
        %v944 = vrot.slane %v507, %v943
        %v945 = vlaneseq
        %v946 = vshrl.u32 %v945, 7
        %v947 = vsub.s32 4, %v946
        %v948 = vrot.slane %v508, %v947
        %v949 = vlaneseq
        %v950 = vshrl.u32 %v949, 7
        %v951 = vsub.s32 4, %v950
        %v952 = vrot.slane %v513, %v951
        %v953 = vlaneseq
        %v954 = vshrl.u32 %v953, 7
        %v955 = vsub.s32 4, %v954
        %v956 = vrot.slane %v514, %v955
        %v957 = vlaneseq
        %v958 = vshrl.u32 %v957, 7
        %v959 = vsub.s32 4, %v958
        %v960 = vrot.slane %v515, %v959
        %v961 = vlaneseq
        %v962 = vshrl.u32 %v961, 7
        %v963 = vsub.s32 4, %v962
        %v964 = vrot.slane %v516, %v963
        %v965 = vmul.f32 %v920, %v497
        %v966 = vmul.f32 %v924, %v498
        %v967 = vmul.f32 %v928, %v499
        %v968 = vmul.f32 %v932, %v500
        %v969 = vmul.f32 %v920, %v501
        %v970 = vmul.f32 %v924, %v502
        %v971 = vmul.f32 %v928, %v503
        %v972 = vmul.f32 %v932, %v504
        %v973 = vmul.f32 %v936, %v505
        %v974 = vmul.f32 %v940, %v506
        %v975 = vmul.f32 %v944, %v507
        %v976 = vmul.f32 %v948, %v508
        %v977 = vmul.f32 %v936, %v509
        %v978 = vmul.f32 %v940, %v510
        %v979 = vmul.f32 %v944, %v511
        %v980 = vmul.f32 %v948, %v512
        %v981 = vmul.f32 %v952, %v513
        %v982 = vmul.f32 %v956, %v514
        %v983 = vmul.f32 %v960, %v515
        %v984 = vmul.f32 %v964, %v516
        %v985 = vmul.f32 %v952, %v517
        %v986 = vmul.f32 %v956, %v518
        %v987 = vmul.f32 %v960, %v519
        %v988 = vmul.f32 %v964, %v520
        %v989 = vadd.f32 %v965, %v973
        %v990 = vadd.f32 %v989, %v981
        %v991 = vadd.f32 %v966, %v974
        %v992 = vadd.f32 %v991, %v982
        %v993 = vadd.f32 %v967, %v975
        %v994 = vadd.f32 %v993, %v983
        %v995 = vadd.f32 %v968, %v976
        %v996 = vadd.f32 %v995, %v984
        %v997 = vadd.f32 %v969, %v977
        %v998 = vadd.f32 %v997, %v985
        %v999 = vadd.f32 %v970, %v978
        %v1000 = vadd.f32 %v999, %v986
        %v1001 = vadd.f32 %v971, %v979
        %v1002 = vadd.f32 %v1001, %v987
        %v1003 = vadd.f32 %v972, %v980
        %v1004 = vadd.f32 %v1003, %v988
        %1005 = vst [vmem:[#allocation2 + $0x100] sm:$0xff] %v990
        %1006 = vst [vmem:[#allocation2 + $0x108] sm:$0xff] %v992
        %1007 = vst [vmem:[#allocation2 + $0x110] sm:$0xff] %v994
        %1008 = vst [vmem:[#allocation2 + $0x118] sm:$0xff] %v996
        %1009 = vst [vmem:[#allocation2 + $0x120] sm:$0xff] %v998
        %1010 = vst [vmem:[#allocation2 + $0x128] sm:$0xff] %v1000
        %1011 = vst [vmem:[#allocation2 + $0x130] sm:$0xff] %v1002
        %1012 = vst [vmem:[#allocation2 + $0x138] sm:$0xff] %v1004
        %v1013 = vlaneseq
        %v1014 = vshrl.u32 %v1013, 7
        %v1015 = vsub.s32 5, %v1014
        %v1016 = vrot.slane %v497, %v1015
        %v1017 = vlaneseq
        %v1018 = vshrl.u32 %v1017, 7
        %v1019 = vsub.s32 5, %v1018
        %v1020 = vrot.slane %v498, %v1019
        %v1021 = vlaneseq
        %v1022 = vshrl.u32 %v1021, 7
        %v1023 = vsub.s32 5, %v1022
        %v1024 = vrot.slane %v499, %v1023
        %v1025 = vlaneseq
        %v1026 = vshrl.u32 %v1025, 7
        %v1027 = vsub.s32 5, %v1026
        %v1028 = vrot.slane %v500, %v1027
        %v1029 = vlaneseq
        %v1030 = vshrl.u32 %v1029, 7
        %v1031 = vsub.s32 5, %v1030
        %v1032 = vrot.slane %v505, %v1031
        %v1033 = vlaneseq
        %v1034 = vshrl.u32 %v1033, 7
        %v1035 = vsub.s32 5, %v1034
        %v1036 = vrot.slane %v506, %v1035
        %v1037 = vlaneseq
        %v1038 = vshrl.u32 %v1037, 7
        %v1039 = vsub.s32 5, %v1038
        %v1040 = vrot.slane %v507, %v1039
        %v1041 = vlaneseq
        %v1042 = vshrl.u32 %v1041, 7
        %v1043 = vsub.s32 5, %v1042
        %v1044 = vrot.slane %v508, %v1043
        %v1045 = vlaneseq
        %v1046 = vshrl.u32 %v1045, 7
        %v1047 = vsub.s32 5, %v1046
        %v1048 = vrot.slane %v513, %v1047
        %v1049 = vlaneseq
        %v1050 = vshrl.u32 %v1049, 7
        %v1051 = vsub.s32 5, %v1050
        %v1052 = vrot.slane %v514, %v1051
        %v1053 = vlaneseq
        %v1054 = vshrl.u32 %v1053, 7
        %v1055 = vsub.s32 5, %v1054
        %v1056 = vrot.slane %v515, %v1055
        %v1057 = vlaneseq
        %v1058 = vshrl.u32 %v1057, 7
        %v1059 = vsub.s32 5, %v1058
        %v1060 = vrot.slane %v516, %v1059
        %v1061 = vmul.f32 %v1016, %v497
        %v1062 = vmul.f32 %v1020, %v498
        %v1063 = vmul.f32 %v1024, %v499
        %v1064 = vmul.f32 %v1028, %v500
        %v1065 = vmul.f32 %v1016, %v501
        %v1066 = vmul.f32 %v1020, %v502
        %v1067 = vmul.f32 %v1024, %v503
        %v1068 = vmul.f32 %v1028, %v504
        %v1069 = vmul.f32 %v1032, %v505
        %v1070 = vmul.f32 %v1036, %v506
        %v1071 = vmul.f32 %v1040, %v507
        %v1072 = vmul.f32 %v1044, %v508
        %v1073 = vmul.f32 %v1032, %v509
        %v1074 = vmul.f32 %v1036, %v510
        %v1075 = vmul.f32 %v1040, %v511
        %v1076 = vmul.f32 %v1044, %v512
        %v1077 = vmul.f32 %v1048, %v513
        %v1078 = vmul.f32 %v1052, %v514
        %v1079 = vmul.f32 %v1056, %v515
        %v1080 = vmul.f32 %v1060, %v516
        %v1081 = vmul.f32 %v1048, %v517
        %v1082 = vmul.f32 %v1052, %v518
        %v1083 = vmul.f32 %v1056, %v519
        %v1084 = vmul.f32 %v1060, %v520
        %v1085 = vadd.f32 %v1061, %v1069
        %v1086 = vadd.f32 %v1085, %v1077
        %v1087 = vadd.f32 %v1062, %v1070
        %v1088 = vadd.f32 %v1087, %v1078
        %v1089 = vadd.f32 %v1063, %v1071
        %v1090 = vadd.f32 %v1089, %v1079
        %v1091 = vadd.f32 %v1064, %v1072
        %v1092 = vadd.f32 %v1091, %v1080
        %v1093 = vadd.f32 %v1065, %v1073
        %v1094 = vadd.f32 %v1093, %v1081
        %v1095 = vadd.f32 %v1066, %v1074
        %v1096 = vadd.f32 %v1095, %v1082
        %v1097 = vadd.f32 %v1067, %v1075
        %v1098 = vadd.f32 %v1097, %v1083
        %v1099 = vadd.f32 %v1068, %v1076
        %v1100 = vadd.f32 %v1099, %v1084
        %1101 = vst [vmem:[#allocation2 + $0x140] sm:$0xff] %v1086
        %1102 = vst [vmem:[#allocation2 + $0x148] sm:$0xff] %v1088
        %1103 = vst [vmem:[#allocation2 + $0x150] sm:$0xff] %v1090
        %1104 = vst [vmem:[#allocation2 + $0x158] sm:$0xff] %v1092
        %1105 = vst [vmem:[#allocation2 + $0x160] sm:$0xff] %v1094
        %1106 = vst [vmem:[#allocation2 + $0x168] sm:$0xff] %v1096
        %1107 = vst [vmem:[#allocation2 + $0x170] sm:$0xff] %v1098
        %1108 = vst [vmem:[#allocation2 + $0x178] sm:$0xff] %v1100
        %v1109 = vlaneseq
        %v1110 = vshrl.u32 %v1109, 7
        %v1111 = vsub.s32 6, %v1110
        %v1112 = vrot.slane %v497, %v1111
        %v1113 = vlaneseq
        %v1114 = vshrl.u32 %v1113, 7
        %v1115 = vsub.s32 6, %v1114
        %v1116 = vrot.slane %v498, %v1115
        %v1117 = vlaneseq
        %v1118 = vshrl.u32 %v1117, 7
        %v1119 = vsub.s32 6, %v1118
        %v1120 = vrot.slane %v499, %v1119
        %v1121 = vlaneseq
        %v1122 = vshrl.u32 %v1121, 7
        %v1123 = vsub.s32 6, %v1122
        %v1124 = vrot.slane %v500, %v1123
        %v1125 = vlaneseq
        %v1126 = vshrl.u32 %v1125, 7
        %v1127 = vsub.s32 6, %v1126
        %v1128 = vrot.slane %v505, %v1127
        %v1129 = vlaneseq
        %v1130 = vshrl.u32 %v1129, 7
        %v1131 = vsub.s32 6, %v1130
        %v1132 = vrot.slane %v506, %v1131
        %v1133 = vlaneseq
        %v1134 = vshrl.u32 %v1133, 7
        %v1135 = vsub.s32 6, %v1134
        %v1136 = vrot.slane %v507, %v1135
        %v1137 = vlaneseq
        %v1138 = vshrl.u32 %v1137, 7
        %v1139 = vsub.s32 6, %v1138
        %v1140 = vrot.slane %v508, %v1139
        %v1141 = vlaneseq
        %v1142 = vshrl.u32 %v1141, 7
        %v1143 = vsub.s32 6, %v1142
        %v1144 = vrot.slane %v513, %v1143
        %v1145 = vlaneseq
        %v1146 = vshrl.u32 %v1145, 7
        %v1147 = vsub.s32 6, %v1146
        %v1148 = vrot.slane %v514, %v1147
        %v1149 = vlaneseq
        %v1150 = vshrl.u32 %v1149, 7
        %v1151 = vsub.s32 6, %v1150
        %v1152 = vrot.slane %v515, %v1151
        %v1153 = vlaneseq
        %v1154 = vshrl.u32 %v1153, 7
        %v1155 = vsub.s32 6, %v1154
        %v1156 = vrot.slane %v516, %v1155
        %v1157 = vmul.f32 %v1112, %v497
        %v1158 = vmul.f32 %v1116, %v498
        %v1159 = vmul.f32 %v1120, %v499
        %v1160 = vmul.f32 %v1124, %v500
        %v1161 = vmul.f32 %v1112, %v501
        %v1162 = vmul.f32 %v1116, %v502
        %v1163 = vmul.f32 %v1120, %v503
        %v1164 = vmul.f32 %v1124, %v504
        %v1165 = vmul.f32 %v1128, %v505
        %v1166 = vmul.f32 %v1132, %v506
        %v1167 = vmul.f32 %v1136, %v507
        %v1168 = vmul.f32 %v1140, %v508
        %v1169 = vmul.f32 %v1128, %v509
        %v1170 = vmul.f32 %v1132, %v510
        %v1171 = vmul.f32 %v1136, %v511
        %v1172 = vmul.f32 %v1140, %v512
        %v1173 = vmul.f32 %v1144, %v513
        %v1174 = vmul.f32 %v1148, %v514
        %v1175 = vmul.f32 %v1152, %v515
        %v1176 = vmul.f32 %v1156, %v516
        %v1177 = vmul.f32 %v1144, %v517
        %v1178 = vmul.f32 %v1148, %v518
        %v1179 = vmul.f32 %v1152, %v519
        %v1180 = vmul.f32 %v1156, %v520
        %v1181 = vadd.f32 %v1157, %v1165
        %v1182 = vadd.f32 %v1181, %v1173
        %v1183 = vadd.f32 %v1158, %v1166
        %v1184 = vadd.f32 %v1183, %v1174
        %v1185 = vadd.f32 %v1159, %v1167
        %v1186 = vadd.f32 %v1185, %v1175
        %v1187 = vadd.f32 %v1160, %v1168
        %v1188 = vadd.f32 %v1187, %v1176
        %v1189 = vadd.f32 %v1161, %v1169
        %v1190 = vadd.f32 %v1189, %v1177
        %v1191 = vadd.f32 %v1162, %v1170
        %v1192 = vadd.f32 %v1191, %v1178
        %v1193 = vadd.f32 %v1163, %v1171
        %v1194 = vadd.f32 %v1193, %v1179
        %v1195 = vadd.f32 %v1164, %v1172
        %v1196 = vadd.f32 %v1195, %v1180
        %1197 = vst [vmem:[#allocation2 + $0x180] sm:$0xff] %v1182
        %1198 = vst [vmem:[#allocation2 + $0x188] sm:$0xff] %v1184
        %1199 = vst [vmem:[#allocation2 + $0x190] sm:$0xff] %v1186
        %1200 = vst [vmem:[#allocation2 + $0x198] sm:$0xff] %v1188
        %1201 = vst [vmem:[#allocation2 + $0x1a0] sm:$0xff] %v1190
        %1202 = vst [vmem:[#allocation2 + $0x1a8] sm:$0xff] %v1192
        %1203 = vst [vmem:[#allocation2 + $0x1b0] sm:$0xff] %v1194
        %1204 = vst [vmem:[#allocation2 + $0x1b8] sm:$0xff] %v1196
        %v1205 = vlaneseq
        %v1206 = vshrl.u32 %v1205, 7
        %v1207 = vsub.s32 7, %v1206
        %v1208 = vrot.slane %v497, %v1207
        %v1209 = vlaneseq
        %v1210 = vshrl.u32 %v1209, 7
        %v1211 = vsub.s32 7, %v1210
        %v1212 = vrot.slane %v498, %v1211
        %v1213 = vlaneseq
        %v1214 = vshrl.u32 %v1213, 7
        %v1215 = vsub.s32 7, %v1214
        %v1216 = vrot.slane %v499, %v1215
        %v1217 = vlaneseq
        %v1218 = vshrl.u32 %v1217, 7
        %v1219 = vsub.s32 7, %v1218
        %v1220 = vrot.slane %v500, %v1219
        %v1221 = vlaneseq
        %v1222 = vshrl.u32 %v1221, 7
        %v1223 = vsub.s32 7, %v1222
        %v1224 = vrot.slane %v505, %v1223
        %v1225 = vlaneseq
        %v1226 = vshrl.u32 %v1225, 7
        %v1227 = vsub.s32 7, %v1226
        %v1228 = vrot.slane %v506, %v1227
        %v1229 = vlaneseq
        %v1230 = vshrl.u32 %v1229, 7
        %v1231 = vsub.s32 7, %v1230
        %v1232 = vrot.slane %v507, %v1231
        %v1233 = vlaneseq
        %v1234 = vshrl.u32 %v1233, 7
        %v1235 = vsub.s32 7, %v1234
        %v1236 = vrot.slane %v508, %v1235
        %v1237 = vlaneseq
        %v1238 = vshrl.u32 %v1237, 7
        %v1239 = vsub.s32 7, %v1238
        %v1240 = vrot.slane %v513, %v1239
        %v1241 = vlaneseq
        %v1242 = vshrl.u32 %v1241, 7
        %v1243 = vsub.s32 7, %v1242
        %v1244 = vrot.slane %v514, %v1243
        %v1245 = vlaneseq
        %v1246 = vshrl.u32 %v1245, 7
        %v1247 = vsub.s32 7, %v1246
        %v1248 = vrot.slane %v515, %v1247
        %v1249 = vlaneseq
        %v1250 = vshrl.u32 %v1249, 7
        %v1251 = vsub.s32 7, %v1250
        %v1252 = vrot.slane %v516, %v1251
        %v1253 = vmul.f32 %v1208, %v497
        %v1254 = vmul.f32 %v1212, %v498
        %v1255 = vmul.f32 %v1216, %v499
        %v1256 = vmul.f32 %v1220, %v500
        %v1257 = vmul.f32 %v1208, %v501
        %v1258 = vmul.f32 %v1212, %v502
        %v1259 = vmul.f32 %v1216, %v503
        %v1260 = vmul.f32 %v1220, %v504
        %v1261 = vmul.f32 %v1224, %v505
        %v1262 = vmul.f32 %v1228, %v506
        %v1263 = vmul.f32 %v1232, %v507
        %v1264 = vmul.f32 %v1236, %v508
        %v1265 = vmul.f32 %v1224, %v509
        %v1266 = vmul.f32 %v1228, %v510
        %v1267 = vmul.f32 %v1232, %v511
        %v1268 = vmul.f32 %v1236, %v512
        %v1269 = vmul.f32 %v1240, %v513
        %v1270 = vmul.f32 %v1244, %v514
        %v1271 = vmul.f32 %v1248, %v515
        %v1272 = vmul.f32 %v1252, %v516
        %v1273 = vmul.f32 %v1240, %v517
        %v1274 = vmul.f32 %v1244, %v518
        %v1275 = vmul.f32 %v1248, %v519
        %v1276 = vmul.f32 %v1252, %v520
        %v1277 = vadd.f32 %v1253, %v1261
        %v1278 = vadd.f32 %v1277, %v1269
        %v1279 = vadd.f32 %v1254, %v1262
        %v1280 = vadd.f32 %v1279, %v1270
        %v1281 = vadd.f32 %v1255, %v1263
        %v1282 = vadd.f32 %v1281, %v1271
        %v1283 = vadd.f32 %v1256, %v1264
        %v1284 = vadd.f32 %v1283, %v1272
        %v1285 = vadd.f32 %v1257, %v1265
        %v1286 = vadd.f32 %v1285, %v1273
        %v1287 = vadd.f32 %v1258, %v1266
        %v1288 = vadd.f32 %v1287, %v1274
        %v1289 = vadd.f32 %v1259, %v1267
        %v1290 = vadd.f32 %v1289, %v1275
        %v1291 = vadd.f32 %v1260, %v1268
        %v1292 = vadd.f32 %v1291, %v1276
        %1293 = vst [vmem:[#allocation2 + $0x1c0] sm:$0xff] %v1278
        %1294 = vst [vmem:[#allocation2 + $0x1c8] sm:$0xff] %v1280
        %1295 = vst [vmem:[#allocation2 + $0x1d0] sm:$0xff] %v1282
        %1296 = vst [vmem:[#allocation2 + $0x1d8] sm:$0xff] %v1284
        %1297 = vst [vmem:[#allocation2 + $0x1e0] sm:$0xff] %v1286
        %1298 = vst [vmem:[#allocation2 + $0x1e8] sm:$0xff] %v1288
        %1299 = vst [vmem:[#allocation2 + $0x1f0] sm:$0xff] %v1290
        %1300 = vst [vmem:[#allocation2 + $0x1f8] sm:$0xff] %v1292
        %v1301 = vlaneseq
        %v1302 = vshrl.u32 %v1301, 7
        %v1303 = vsub.s32 0, %v1302
        %v1304 = vrot.slane %v501, %v1303
        %v1305 = vlaneseq
        %v1306 = vshrl.u32 %v1305, 7
        %v1307 = vsub.s32 0, %v1306
        %v1308 = vrot.slane %v502, %v1307
        %v1309 = vlaneseq
        %v1310 = vshrl.u32 %v1309, 7
        %v1311 = vsub.s32 0, %v1310
        %v1312 = vrot.slane %v503, %v1311
        %v1313 = vlaneseq
        %v1314 = vshrl.u32 %v1313, 7
        %v1315 = vsub.s32 0, %v1314
        %v1316 = vrot.slane %v504, %v1315
        %v1317 = vlaneseq
        %v1318 = vshrl.u32 %v1317, 7
        %v1319 = vsub.s32 0, %v1318
        %v1320 = vrot.slane %v509, %v1319
        %v1321 = vlaneseq
        %v1322 = vshrl.u32 %v1321, 7
        %v1323 = vsub.s32 0, %v1322
        %v1324 = vrot.slane %v510, %v1323
        %v1325 = vlaneseq
        %v1326 = vshrl.u32 %v1325, 7
        %v1327 = vsub.s32 0, %v1326
        %v1328 = vrot.slane %v511, %v1327
        %v1329 = vlaneseq
        %v1330 = vshrl.u32 %v1329, 7
        %v1331 = vsub.s32 0, %v1330
        %v1332 = vrot.slane %v512, %v1331
        %v1333 = vlaneseq
        %v1334 = vshrl.u32 %v1333, 7
        %v1335 = vsub.s32 0, %v1334
        %v1336 = vrot.slane %v517, %v1335
        %v1337 = vlaneseq
        %v1338 = vshrl.u32 %v1337, 7
        %v1339 = vsub.s32 0, %v1338
        %v1340 = vrot.slane %v518, %v1339
        %v1341 = vlaneseq
        %v1342 = vshrl.u32 %v1341, 7
        %v1343 = vsub.s32 0, %v1342
        %v1344 = vrot.slane %v519, %v1343
        %v1345 = vlaneseq
        %v1346 = vshrl.u32 %v1345, 7
        %v1347 = vsub.s32 0, %v1346
        %v1348 = vrot.slane %v520, %v1347
        %v1349 = vmul.f32 %v1304, %v497
        %v1350 = vmul.f32 %v1308, %v498
        %v1351 = vmul.f32 %v1312, %v499
        %v1352 = vmul.f32 %v1316, %v500
        %v1353 = vmul.f32 %v1304, %v501
        %v1354 = vmul.f32 %v1308, %v502
        %v1355 = vmul.f32 %v1312, %v503
        %v1356 = vmul.f32 %v1316, %v504
        %v1357 = vmul.f32 %v1320, %v505
        %v1358 = vmul.f32 %v1324, %v506
        %v1359 = vmul.f32 %v1328, %v507
        %v1360 = vmul.f32 %v1332, %v508
        %v1361 = vmul.f32 %v1320, %v509
        %v1362 = vmul.f32 %v1324, %v510
        %v1363 = vmul.f32 %v1328, %v511
        %v1364 = vmul.f32 %v1332, %v512
        %v1365 = vmul.f32 %v1336, %v513
        %v1366 = vmul.f32 %v1340, %v514
        %v1367 = vmul.f32 %v1344, %v515
        %v1368 = vmul.f32 %v1348, %v516
        %v1369 = vmul.f32 %v1336, %v517
        %v1370 = vmul.f32 %v1340, %v518
        %v1371 = vmul.f32 %v1344, %v519
        %v1372 = vmul.f32 %v1348, %v520
        %v1373 = vadd.f32 %v1349, %v1357
        %v1374 = vadd.f32 %v1373, %v1365
        %v1375 = vadd.f32 %v1350, %v1358
        %v1376 = vadd.f32 %v1375, %v1366
        %v1377 = vadd.f32 %v1351, %v1359
        %v1378 = vadd.f32 %v1377, %v1367
        %v1379 = vadd.f32 %v1352, %v1360
        %v1380 = vadd.f32 %v1379, %v1368
        %v1381 = vadd.f32 %v1353, %v1361
        %v1382 = vadd.f32 %v1381, %v1369
        %v1383 = vadd.f32 %v1354, %v1362
        %v1384 = vadd.f32 %v1383, %v1370
        %v1385 = vadd.f32 %v1355, %v1363
        %v1386 = vadd.f32 %v1385, %v1371
        %v1387 = vadd.f32 %v1356, %v1364
        %v1388 = vadd.f32 %v1387, %v1372
        %1389 = vst [vmem:[#allocation2 + $0x200] sm:$0xff] %v1374
        %1390 = vst [vmem:[#allocation2 + $0x208] sm:$0xff] %v1376
        %1391 = vst [vmem:[#allocation2 + $0x210] sm:$0xff] %v1378
        %1392 = vst [vmem:[#allocation2 + $0x218] sm:$0xff] %v1380
        %1393 = vst [vmem:[#allocation2 + $0x220] sm:$0xff] %v1382
        %1394 = vst [vmem:[#allocation2 + $0x228] sm:$0xff] %v1384
        %1395 = vst [vmem:[#allocation2 + $0x230] sm:$0xff] %v1386
        %1396 = vst [vmem:[#allocation2 + $0x238] sm:$0xff] %v1388
        %v1397 = vlaneseq
        %v1398 = vshrl.u32 %v1397, 7
        %v1399 = vsub.s32 1, %v1398
        %v1400 = vrot.slane %v501, %v1399
        %v1401 = vlaneseq
        %v1402 = vshrl.u32 %v1401, 7
        %v1403 = vsub.s32 1, %v1402
        %v1404 = vrot.slane %v502, %v1403
        %v1405 = vlaneseq
        %v1406 = vshrl.u32 %v1405, 7
        %v1407 = vsub.s32 1, %v1406
        %v1408 = vrot.slane %v503, %v1407
        %v1409 = vlaneseq
        %v1410 = vshrl.u32 %v1409, 7
        %v1411 = vsub.s32 1, %v1410
        %v1412 = vrot.slane %v504, %v1411
        %v1413 = vlaneseq
        %v1414 = vshrl.u32 %v1413, 7
        %v1415 = vsub.s32 1, %v1414
        %v1416 = vrot.slane %v509, %v1415
        %v1417 = vlaneseq
        %v1418 = vshrl.u32 %v1417, 7
        %v1419 = vsub.s32 1, %v1418
        %v1420 = vrot.slane %v510, %v1419
        %v1421 = vlaneseq
        %v1422 = vshrl.u32 %v1421, 7
        %v1423 = vsub.s32 1, %v1422
        %v1424 = vrot.slane %v511, %v1423
        %v1425 = vlaneseq
        %v1426 = vshrl.u32 %v1425, 7
        %v1427 = vsub.s32 1, %v1426
        %v1428 = vrot.slane %v512, %v1427
        %v1429 = vlaneseq
        %v1430 = vshrl.u32 %v1429, 7
        %v1431 = vsub.s32 1, %v1430
        %v1432 = vrot.slane %v517, %v1431
        %v1433 = vlaneseq
        %v1434 = vshrl.u32 %v1433, 7
        %v1435 = vsub.s32 1, %v1434
        %v1436 = vrot.slane %v518, %v1435
        %v1437 = vlaneseq
        %v1438 = vshrl.u32 %v1437, 7
        %v1439 = vsub.s32 1, %v1438
        %v1440 = vrot.slane %v519, %v1439
        %v1441 = vlaneseq
        %v1442 = vshrl.u32 %v1441, 7
        %v1443 = vsub.s32 1, %v1442
        %v1444 = vrot.slane %v520, %v1443
        %v1445 = vmul.f32 %v1400, %v497
        %v1446 = vmul.f32 %v1404, %v498
        %v1447 = vmul.f32 %v1408, %v499
        %v1448 = vmul.f32 %v1412, %v500
        %v1449 = vmul.f32 %v1400, %v501
        %v1450 = vmul.f32 %v1404, %v502
        %v1451 = vmul.f32 %v1408, %v503
        %v1452 = vmul.f32 %v1412, %v504
        %v1453 = vmul.f32 %v1416, %v505
        %v1454 = vmul.f32 %v1420, %v506
        %v1455 = vmul.f32 %v1424, %v507
        %v1456 = vmul.f32 %v1428, %v508
        %v1457 = vmul.f32 %v1416, %v509
        %v1458 = vmul.f32 %v1420, %v510
        %v1459 = vmul.f32 %v1424, %v511
        %v1460 = vmul.f32 %v1428, %v512
        %v1461 = vmul.f32 %v1432, %v513
        %v1462 = vmul.f32 %v1436, %v514
        %v1463 = vmul.f32 %v1440, %v515
        %v1464 = vmul.f32 %v1444, %v516
        %v1465 = vmul.f32 %v1432, %v517
        %v1466 = vmul.f32 %v1436, %v518
        %v1467 = vmul.f32 %v1440, %v519
        %v1468 = vmul.f32 %v1444, %v520
        %v1469 = vadd.f32 %v1445, %v1453
        %v1470 = vadd.f32 %v1469, %v1461
        %v1471 = vadd.f32 %v1446, %v1454
        %v1472 = vadd.f32 %v1471, %v1462
        %v1473 = vadd.f32 %v1447, %v1455
        %v1474 = vadd.f32 %v1473, %v1463
        %v1475 = vadd.f32 %v1448, %v1456
        %v1476 = vadd.f32 %v1475, %v1464
        %v1477 = vadd.f32 %v1449, %v1457
        %v1478 = vadd.f32 %v1477, %v1465
        %v1479 = vadd.f32 %v1450, %v1458
        %v1480 = vadd.f32 %v1479, %v1466
        %v1481 = vadd.f32 %v1451, %v1459
        %v1482 = vadd.f32 %v1481, %v1467
        %v1483 = vadd.f32 %v1452, %v1460
        %v1484 = vadd.f32 %v1483, %v1468
        %1485 = vst [vmem:[#allocation2 + $0x240] sm:$0xff] %v1470
        %1486 = vst [vmem:[#allocation2 + $0x248] sm:$0xff] %v1472
        %1487 = vst [vmem:[#allocation2 + $0x250] sm:$0xff] %v1474
        %1488 = vst [vmem:[#allocation2 + $0x258] sm:$0xff] %v1476
        %1489 = vst [vmem:[#allocation2 + $0x260] sm:$0xff] %v1478
        %1490 = vst [vmem:[#allocation2 + $0x268] sm:$0xff] %v1480
        %1491 = vst [vmem:[#allocation2 + $0x270] sm:$0xff] %v1482
        %1492 = vst [vmem:[#allocation2 + $0x278] sm:$0xff] %v1484
        %v1493 = vlaneseq
        %v1494 = vshrl.u32 %v1493, 7
        %v1495 = vsub.s32 2, %v1494
        %v1496 = vrot.slane %v501, %v1495
        %v1497 = vlaneseq
        %v1498 = vshrl.u32 %v1497, 7
        %v1499 = vsub.s32 2, %v1498
        %v1500 = vrot.slane %v502, %v1499
        %v1501 = vlaneseq
        %v1502 = vshrl.u32 %v1501, 7
        %v1503 = vsub.s32 2, %v1502
        %v1504 = vrot.slane %v503, %v1503
        %v1505 = vlaneseq
        %v1506 = vshrl.u32 %v1505, 7
        %v1507 = vsub.s32 2, %v1506
        %v1508 = vrot.slane %v504, %v1507
        %v1509 = vlaneseq
        %v1510 = vshrl.u32 %v1509, 7
        %v1511 = vsub.s32 2, %v1510
        %v1512 = vrot.slane %v509, %v1511
        %v1513 = vlaneseq
        %v1514 = vshrl.u32 %v1513, 7
        %v1515 = vsub.s32 2, %v1514
        %v1516 = vrot.slane %v510, %v1515
        %v1517 = vlaneseq
        %v1518 = vshrl.u32 %v1517, 7
        %v1519 = vsub.s32 2, %v1518
        %v1520 = vrot.slane %v511, %v1519
        %v1521 = vlaneseq
        %v1522 = vshrl.u32 %v1521, 7
        %v1523 = vsub.s32 2, %v1522
        %v1524 = vrot.slane %v512, %v1523
        %v1525 = vlaneseq
        %v1526 = vshrl.u32 %v1525, 7
        %v1527 = vsub.s32 2, %v1526
        %v1528 = vrot.slane %v517, %v1527
        %v1529 = vlaneseq
        %v1530 = vshrl.u32 %v1529, 7
        %v1531 = vsub.s32 2, %v1530
        %v1532 = vrot.slane %v518, %v1531
        %v1533 = vlaneseq
        %v1534 = vshrl.u32 %v1533, 7
        %v1535 = vsub.s32 2, %v1534
        %v1536 = vrot.slane %v519, %v1535
        %v1537 = vlaneseq
        %v1538 = vshrl.u32 %v1537, 7
        %v1539 = vsub.s32 2, %v1538
        %v1540 = vrot.slane %v520, %v1539
        %v1541 = vmul.f32 %v1496, %v497
        %v1542 = vmul.f32 %v1500, %v498
        %v1543 = vmul.f32 %v1504, %v499
        %v1544 = vmul.f32 %v1508, %v500
        %v1545 = vmul.f32 %v1496, %v501
        %v1546 = vmul.f32 %v1500, %v502
        %v1547 = vmul.f32 %v1504, %v503
        %v1548 = vmul.f32 %v1508, %v504
        %v1549 = vmul.f32 %v1512, %v505
        %v1550 = vmul.f32 %v1516, %v506
        %v1551 = vmul.f32 %v1520, %v507
        %v1552 = vmul.f32 %v1524, %v508
        %v1553 = vmul.f32 %v1512, %v509
        %v1554 = vmul.f32 %v1516, %v510
        %v1555 = vmul.f32 %v1520, %v511
        %v1556 = vmul.f32 %v1524, %v512
        %v1557 = vmul.f32 %v1528, %v513
        %v1558 = vmul.f32 %v1532, %v514
        %v1559 = vmul.f32 %v1536, %v515
        %v1560 = vmul.f32 %v1540, %v516
        %v1561 = vmul.f32 %v1528, %v517
        %v1562 = vmul.f32 %v1532, %v518
        %v1563 = vmul.f32 %v1536, %v519
        %v1564 = vmul.f32 %v1540, %v520
        %v1565 = vadd.f32 %v1541, %v1549
        %v1566 = vadd.f32 %v1565, %v1557
        %v1567 = vadd.f32 %v1542, %v1550
        %v1568 = vadd.f32 %v1567, %v1558
        %v1569 = vadd.f32 %v1543, %v1551
        %v1570 = vadd.f32 %v1569, %v1559
        %v1571 = vadd.f32 %v1544, %v1552
        %v1572 = vadd.f32 %v1571, %v1560
        %v1573 = vadd.f32 %v1545, %v1553
        %v1574 = vadd.f32 %v1573, %v1561
        %v1575 = vadd.f32 %v1546, %v1554
        %v1576 = vadd.f32 %v1575, %v1562
        %v1577 = vadd.f32 %v1547, %v1555
        %v1578 = vadd.f32 %v1577, %v1563
        %v1579 = vadd.f32 %v1548, %v1556
        %v1580 = vadd.f32 %v1579, %v1564
        %1581 = vst [vmem:[#allocation2 + $0x280] sm:$0xff] %v1566
        %1582 = vst [vmem:[#allocation2 + $0x288] sm:$0xff] %v1568
        %1583 = vst [vmem:[#allocation2 + $0x290] sm:$0xff] %v1570
        %1584 = vst [vmem:[#allocation2 + $0x298] sm:$0xff] %v1572
        %1585 = vst [vmem:[#allocation2 + $0x2a0] sm:$0xff] %v1574
        %1586 = vst [vmem:[#allocation2 + $0x2a8] sm:$0xff] %v1576
        %1587 = vst [vmem:[#allocation2 + $0x2b0] sm:$0xff] %v1578
        %1588 = vst [vmem:[#allocation2 + $0x2b8] sm:$0xff] %v1580
        %v1589 = vlaneseq
        %v1590 = vshrl.u32 %v1589, 7
        %v1591 = vsub.s32 3, %v1590
        %v1592 = vrot.slane %v501, %v1591
        %v1593 = vlaneseq
        %v1594 = vshrl.u32 %v1593, 7
        %v1595 = vsub.s32 3, %v1594
        %v1596 = vrot.slane %v502, %v1595
        %v1597 = vlaneseq
        %v1598 = vshrl.u32 %v1597, 7
        %v1599 = vsub.s32 3, %v1598
        %v1600 = vrot.slane %v503, %v1599
        %v1601 = vlaneseq
        %v1602 = vshrl.u32 %v1601, 7
        %v1603 = vsub.s32 3, %v1602
        %v1604 = vrot.slane %v504, %v1603
        %v1605 = vlaneseq
        %v1606 = vshrl.u32 %v1605, 7
        %v1607 = vsub.s32 3, %v1606
        %v1608 = vrot.slane %v509, %v1607
        %v1609 = vlaneseq
        %v1610 = vshrl.u32 %v1609, 7
        %v1611 = vsub.s32 3, %v1610
        %v1612 = vrot.slane %v510, %v1611
        %v1613 = vlaneseq
        %v1614 = vshrl.u32 %v1613, 7
        %v1615 = vsub.s32 3, %v1614
        %v1616 = vrot.slane %v511, %v1615
        %v1617 = vlaneseq
        %v1618 = vshrl.u32 %v1617, 7
        %v1619 = vsub.s32 3, %v1618
        %v1620 = vrot.slane %v512, %v1619
        %v1621 = vlaneseq
        %v1622 = vshrl.u32 %v1621, 7
        %v1623 = vsub.s32 3, %v1622
        %v1624 = vrot.slane %v517, %v1623
        %v1625 = vlaneseq
        %v1626 = vshrl.u32 %v1625, 7
        %v1627 = vsub.s32 3, %v1626
        %v1628 = vrot.slane %v518, %v1627
        %v1629 = vlaneseq
        %v1630 = vshrl.u32 %v1629, 7
        %v1631 = vsub.s32 3, %v1630
        %v1632 = vrot.slane %v519, %v1631
        %v1633 = vlaneseq
        %v1634 = vshrl.u32 %v1633, 7
        %v1635 = vsub.s32 3, %v1634
        %v1636 = vrot.slane %v520, %v1635
        %v1637 = vmul.f32 %v1592, %v497
        %v1638 = vmul.f32 %v1596, %v498
        %v1639 = vmul.f32 %v1600, %v499
        %v1640 = vmul.f32 %v1604, %v500
        %v1641 = vmul.f32 %v1592, %v501
        %v1642 = vmul.f32 %v1596, %v502
        %v1643 = vmul.f32 %v1600, %v503
        %v1644 = vmul.f32 %v1604, %v504
        %v1645 = vmul.f32 %v1608, %v505
        %v1646 = vmul.f32 %v1612, %v506
        %v1647 = vmul.f32 %v1616, %v507
        %v1648 = vmul.f32 %v1620, %v508
        %v1649 = vmul.f32 %v1608, %v509
        %v1650 = vmul.f32 %v1612, %v510
        %v1651 = vmul.f32 %v1616, %v511
        %v1652 = vmul.f32 %v1620, %v512
        %v1653 = vmul.f32 %v1624, %v513
        %v1654 = vmul.f32 %v1628, %v514
        %v1655 = vmul.f32 %v1632, %v515
        %v1656 = vmul.f32 %v1636, %v516
        %v1657 = vmul.f32 %v1624, %v517
        %v1658 = vmul.f32 %v1628, %v518
        %v1659 = vmul.f32 %v1632, %v519
        %v1660 = vmul.f32 %v1636, %v520
        %v1661 = vadd.f32 %v1637, %v1645
        %v1662 = vadd.f32 %v1661, %v1653
        %v1663 = vadd.f32 %v1638, %v1646
        %v1664 = vadd.f32 %v1663, %v1654
        %v1665 = vadd.f32 %v1639, %v1647
        %v1666 = vadd.f32 %v1665, %v1655
        %v1667 = vadd.f32 %v1640, %v1648
        %v1668 = vadd.f32 %v1667, %v1656
        %v1669 = vadd.f32 %v1641, %v1649
        %v1670 = vadd.f32 %v1669, %v1657
        %v1671 = vadd.f32 %v1642, %v1650
        %v1672 = vadd.f32 %v1671, %v1658
        %v1673 = vadd.f32 %v1643, %v1651
        %v1674 = vadd.f32 %v1673, %v1659
        %v1675 = vadd.f32 %v1644, %v1652
        %v1676 = vadd.f32 %v1675, %v1660
        %1677 = vst [vmem:[#allocation2 + $0x2c0] sm:$0xff] %v1662
        %1678 = vst [vmem:[#allocation2 + $0x2c8] sm:$0xff] %v1664
        %1679 = vst [vmem:[#allocation2 + $0x2d0] sm:$0xff] %v1666
        %1680 = vst [vmem:[#allocation2 + $0x2d8] sm:$0xff] %v1668
        %1681 = vst [vmem:[#allocation2 + $0x2e0] sm:$0xff] %v1670
        %1682 = vst [vmem:[#allocation2 + $0x2e8] sm:$0xff] %v1672
        %1683 = vst [vmem:[#allocation2 + $0x2f0] sm:$0xff] %v1674
        %1684 = vst [vmem:[#allocation2 + $0x2f8] sm:$0xff] %v1676
        %v1685 = vlaneseq
        %v1686 = vshrl.u32 %v1685, 7
        %v1687 = vsub.s32 4, %v1686
        %v1688 = vrot.slane %v501, %v1687
        %v1689 = vlaneseq
        %v1690 = vshrl.u32 %v1689, 7
        %v1691 = vsub.s32 4, %v1690
        %v1692 = vrot.slane %v502, %v1691
        %v1693 = vlaneseq
        %v1694 = vshrl.u32 %v1693, 7
        %v1695 = vsub.s32 4, %v1694
        %v1696 = vrot.slane %v503, %v1695
        %v1697 = vlaneseq
        %v1698 = vshrl.u32 %v1697, 7
        %v1699 = vsub.s32 4, %v1698
        %v1700 = vrot.slane %v504, %v1699
        %v1701 = vlaneseq
        %v1702 = vshrl.u32 %v1701, 7
        %v1703 = vsub.s32 4, %v1702
        %v1704 = vrot.slane %v509, %v1703
        %v1705 = vlaneseq
        %v1706 = vshrl.u32 %v1705, 7
        %v1707 = vsub.s32 4, %v1706
        %v1708 = vrot.slane %v510, %v1707
        %v1709 = vlaneseq
        %v1710 = vshrl.u32 %v1709, 7
        %v1711 = vsub.s32 4, %v1710
        %v1712 = vrot.slane %v511, %v1711
        %v1713 = vlaneseq
        %v1714 = vshrl.u32 %v1713, 7
        %v1715 = vsub.s32 4, %v1714
        %v1716 = vrot.slane %v512, %v1715
        %v1717 = vlaneseq
        %v1718 = vshrl.u32 %v1717, 7
        %v1719 = vsub.s32 4, %v1718
        %v1720 = vrot.slane %v517, %v1719
        %v1721 = vlaneseq
        %v1722 = vshrl.u32 %v1721, 7
        %v1723 = vsub.s32 4, %v1722
        %v1724 = vrot.slane %v518, %v1723
        %v1725 = vlaneseq
        %v1726 = vshrl.u32 %v1725, 7
        %v1727 = vsub.s32 4, %v1726
        %v1728 = vrot.slane %v519, %v1727
        %v1729 = vlaneseq
        %v1730 = vshrl.u32 %v1729, 7
        %v1731 = vsub.s32 4, %v1730
        %v1732 = vrot.slane %v520, %v1731
        %v1733 = vmul.f32 %v1688, %v497
        %v1734 = vmul.f32 %v1692, %v498
        %v1735 = vmul.f32 %v1696, %v499
        %v1736 = vmul.f32 %v1700, %v500
        %v1737 = vmul.f32 %v1688, %v501
        %v1738 = vmul.f32 %v1692, %v502
        %v1739 = vmul.f32 %v1696, %v503
        %v1740 = vmul.f32 %v1700, %v504
        %v1741 = vmul.f32 %v1704, %v505
        %v1742 = vmul.f32 %v1708, %v506
        %v1743 = vmul.f32 %v1712, %v507
        %v1744 = vmul.f32 %v1716, %v508
        %v1745 = vmul.f32 %v1704, %v509
        %v1746 = vmul.f32 %v1708, %v510
        %v1747 = vmul.f32 %v1712, %v511
        %v1748 = vmul.f32 %v1716, %v512
        %v1749 = vmul.f32 %v1720, %v513
        %v1750 = vmul.f32 %v1724, %v514
        %v1751 = vmul.f32 %v1728, %v515
        %v1752 = vmul.f32 %v1732, %v516
        %v1753 = vmul.f32 %v1720, %v517
        %v1754 = vmul.f32 %v1724, %v518
        %v1755 = vmul.f32 %v1728, %v519
        %v1756 = vmul.f32 %v1732, %v520
        %v1757 = vadd.f32 %v1733, %v1741
        %v1758 = vadd.f32 %v1757, %v1749
        %v1759 = vadd.f32 %v1734, %v1742
        %v1760 = vadd.f32 %v1759, %v1750
        %v1761 = vadd.f32 %v1735, %v1743
        %v1762 = vadd.f32 %v1761, %v1751
        %v1763 = vadd.f32 %v1736, %v1744
        %v1764 = vadd.f32 %v1763, %v1752
        %v1765 = vadd.f32 %v1737, %v1745
        %v1766 = vadd.f32 %v1765, %v1753
        %v1767 = vadd.f32 %v1738, %v1746
        %v1768 = vadd.f32 %v1767, %v1754
        %v1769 = vadd.f32 %v1739, %v1747
        %v1770 = vadd.f32 %v1769, %v1755
        %v1771 = vadd.f32 %v1740, %v1748
        %v1772 = vadd.f32 %v1771, %v1756
        %1773 = vst [vmem:[#allocation2 + $0x300] sm:$0xff] %v1758
        %1774 = vst [vmem:[#allocation2 + $0x308] sm:$0xff] %v1760
        %1775 = vst [vmem:[#allocation2 + $0x310] sm:$0xff] %v1762
        %1776 = vst [vmem:[#allocation2 + $0x318] sm:$0xff] %v1764
        %1777 = vst [vmem:[#allocation2 + $0x320] sm:$0xff] %v1766
        %1778 = vst [vmem:[#allocation2 + $0x328] sm:$0xff] %v1768
        %1779 = vst [vmem:[#allocation2 + $0x330] sm:$0xff] %v1770
        %1780 = vst [vmem:[#allocation2 + $0x338] sm:$0xff] %v1772
        %v1781 = vlaneseq
        %v1782 = vshrl.u32 %v1781, 7
        %v1783 = vsub.s32 5, %v1782
        %v1784 = vrot.slane %v501, %v1783
        %v1785 = vlaneseq
        %v1786 = vshrl.u32 %v1785, 7
        %v1787 = vsub.s32 5, %v1786
        %v1788 = vrot.slane %v502, %v1787
        %v1789 = vlaneseq
        %v1790 = vshrl.u32 %v1789, 7
        %v1791 = vsub.s32 5, %v1790
        %v1792 = vrot.slane %v503, %v1791
        %v1793 = vlaneseq
        %v1794 = vshrl.u32 %v1793, 7
        %v1795 = vsub.s32 5, %v1794
        %v1796 = vrot.slane %v504, %v1795
        %v1797 = vlaneseq
        %v1798 = vshrl.u32 %v1797, 7
        %v1799 = vsub.s32 5, %v1798
        %v1800 = vrot.slane %v509, %v1799
        %v1801 = vlaneseq
        %v1802 = vshrl.u32 %v1801, 7
        %v1803 = vsub.s32 5, %v1802
        %v1804 = vrot.slane %v510, %v1803
        %v1805 = vlaneseq
        %v1806 = vshrl.u32 %v1805, 7
        %v1807 = vsub.s32 5, %v1806
        %v1808 = vrot.slane %v511, %v1807
        %v1809 = vlaneseq
        %v1810 = vshrl.u32 %v1809, 7
        %v1811 = vsub.s32 5, %v1810
        %v1812 = vrot.slane %v512, %v1811
        %v1813 = vlaneseq
        %v1814 = vshrl.u32 %v1813, 7
        %v1815 = vsub.s32 5, %v1814
        %v1816 = vrot.slane %v517, %v1815
        %v1817 = vlaneseq
        %v1818 = vshrl.u32 %v1817, 7
        %v1819 = vsub.s32 5, %v1818
        %v1820 = vrot.slane %v518, %v1819
        %v1821 = vlaneseq
        %v1822 = vshrl.u32 %v1821, 7
        %v1823 = vsub.s32 5, %v1822
        %v1824 = vrot.slane %v519, %v1823
        %v1825 = vlaneseq
        %v1826 = vshrl.u32 %v1825, 7
        %v1827 = vsub.s32 5, %v1826
        %v1828 = vrot.slane %v520, %v1827
        %v1829 = vmul.f32 %v1784, %v497
        %v1830 = vmul.f32 %v1788, %v498
        %v1831 = vmul.f32 %v1792, %v499
        %v1832 = vmul.f32 %v1796, %v500
        %v1833 = vmul.f32 %v1784, %v501
        %v1834 = vmul.f32 %v1788, %v502
        %v1835 = vmul.f32 %v1792, %v503
        %v1836 = vmul.f32 %v1796, %v504
        %v1837 = vmul.f32 %v1800, %v505
        %v1838 = vmul.f32 %v1804, %v506
        %v1839 = vmul.f32 %v1808, %v507
        %v1840 = vmul.f32 %v1812, %v508
        %v1841 = vmul.f32 %v1800, %v509
        %v1842 = vmul.f32 %v1804, %v510
        %v1843 = vmul.f32 %v1808, %v511
        %v1844 = vmul.f32 %v1812, %v512
        %v1845 = vmul.f32 %v1816, %v513
        %v1846 = vmul.f32 %v1820, %v514
        %v1847 = vmul.f32 %v1824, %v515
        %v1848 = vmul.f32 %v1828, %v516
        %v1849 = vmul.f32 %v1816, %v517
        %v1850 = vmul.f32 %v1820, %v518
        %v1851 = vmul.f32 %v1824, %v519
        %v1852 = vmul.f32 %v1828, %v520
        %v1853 = vadd.f32 %v1829, %v1837
        %v1854 = vadd.f32 %v1853, %v1845
        %v1855 = vadd.f32 %v1830, %v1838
        %v1856 = vadd.f32 %v1855, %v1846
        %v1857 = vadd.f32 %v1831, %v1839
        %v1858 = vadd.f32 %v1857, %v1847
        %v1859 = vadd.f32 %v1832, %v1840
        %v1860 = vadd.f32 %v1859, %v1848
        %v1861 = vadd.f32 %v1833, %v1841
        %v1862 = vadd.f32 %v1861, %v1849
        %v1863 = vadd.f32 %v1834, %v1842
        %v1864 = vadd.f32 %v1863, %v1850
        %v1865 = vadd.f32 %v1835, %v1843
        %v1866 = vadd.f32 %v1865, %v1851
        %v1867 = vadd.f32 %v1836, %v1844
        %v1868 = vadd.f32 %v1867, %v1852
        %1869 = vst [vmem:[#allocation2 + $0x340] sm:$0xff] %v1854
        %1870 = vst [vmem:[#allocation2 + $0x348] sm:$0xff] %v1856
        %1871 = vst [vmem:[#allocation2 + $0x350] sm:$0xff] %v1858
        %1872 = vst [vmem:[#allocation2 + $0x358] sm:$0xff] %v1860
        %1873 = vst [vmem:[#allocation2 + $0x360] sm:$0xff] %v1862
        %1874 = vst [vmem:[#allocation2 + $0x368] sm:$0xff] %v1864
        %1875 = vst [vmem:[#allocation2 + $0x370] sm:$0xff] %v1866
        %1876 = vst [vmem:[#allocation2 + $0x378] sm:$0xff] %v1868
        %v1877 = vlaneseq
        %v1878 = vshrl.u32 %v1877, 7
        %v1879 = vsub.s32 6, %v1878
        %v1880 = vrot.slane %v501, %v1879
        %v1881 = vlaneseq
        %v1882 = vshrl.u32 %v1881, 7
        %v1883 = vsub.s32 6, %v1882
        %v1884 = vrot.slane %v502, %v1883
        %v1885 = vlaneseq
        %v1886 = vshrl.u32 %v1885, 7
        %v1887 = vsub.s32 6, %v1886
        %v1888 = vrot.slane %v503, %v1887
        %v1889 = vlaneseq
        %v1890 = vshrl.u32 %v1889, 7
        %v1891 = vsub.s32 6, %v1890
        %v1892 = vrot.slane %v504, %v1891
        %v1893 = vlaneseq
        %v1894 = vshrl.u32 %v1893, 7
        %v1895 = vsub.s32 6, %v1894
        %v1896 = vrot.slane %v509, %v1895
        %v1897 = vlaneseq
        %v1898 = vshrl.u32 %v1897, 7
        %v1899 = vsub.s32 6, %v1898
        %v1900 = vrot.slane %v510, %v1899
        %v1901 = vlaneseq
        %v1902 = vshrl.u32 %v1901, 7
        %v1903 = vsub.s32 6, %v1902
        %v1904 = vrot.slane %v511, %v1903
        %v1905 = vlaneseq
        %v1906 = vshrl.u32 %v1905, 7
        %v1907 = vsub.s32 6, %v1906
        %v1908 = vrot.slane %v512, %v1907
        %v1909 = vlaneseq
        %v1910 = vshrl.u32 %v1909, 7
        %v1911 = vsub.s32 6, %v1910
        %v1912 = vrot.slane %v517, %v1911
        %v1913 = vlaneseq
        %v1914 = vshrl.u32 %v1913, 7
        %v1915 = vsub.s32 6, %v1914
        %v1916 = vrot.slane %v518, %v1915
        %v1917 = vlaneseq
        %v1918 = vshrl.u32 %v1917, 7
        %v1919 = vsub.s32 6, %v1918
        %v1920 = vrot.slane %v519, %v1919
        %v1921 = vlaneseq
        %v1922 = vshrl.u32 %v1921, 7
        %v1923 = vsub.s32 6, %v1922
        %v1924 = vrot.slane %v520, %v1923
        %v1925 = vmul.f32 %v1880, %v497
        %v1926 = vmul.f32 %v1884, %v498
        %v1927 = vmul.f32 %v1888, %v499
        %v1928 = vmul.f32 %v1892, %v500
        %v1929 = vmul.f32 %v1880, %v501
        %v1930 = vmul.f32 %v1884, %v502
        %v1931 = vmul.f32 %v1888, %v503
        %v1932 = vmul.f32 %v1892, %v504
        %v1933 = vmul.f32 %v1896, %v505
        %v1934 = vmul.f32 %v1900, %v506
        %v1935 = vmul.f32 %v1904, %v507
        %v1936 = vmul.f32 %v1908, %v508
        %v1937 = vmul.f32 %v1896, %v509
        %v1938 = vmul.f32 %v1900, %v510
        %v1939 = vmul.f32 %v1904, %v511
        %v1940 = vmul.f32 %v1908, %v512
        %v1941 = vmul.f32 %v1912, %v513
        %v1942 = vmul.f32 %v1916, %v514
        %v1943 = vmul.f32 %v1920, %v515
        %v1944 = vmul.f32 %v1924, %v516
        %v1945 = vmul.f32 %v1912, %v517
        %v1946 = vmul.f32 %v1916, %v518
        %v1947 = vmul.f32 %v1920, %v519
        %v1948 = vmul.f32 %v1924, %v520
        %v1949 = vadd.f32 %v1925, %v1933
        %v1950 = vadd.f32 %v1949, %v1941
        %v1951 = vadd.f32 %v1926, %v1934
        %v1952 = vadd.f32 %v1951, %v1942
        %v1953 = vadd.f32 %v1927, %v1935
        %v1954 = vadd.f32 %v1953, %v1943
        %v1955 = vadd.f32 %v1928, %v1936
        %v1956 = vadd.f32 %v1955, %v1944
        %v1957 = vadd.f32 %v1929, %v1937
        %v1958 = vadd.f32 %v1957, %v1945
        %v1959 = vadd.f32 %v1930, %v1938
        %v1960 = vadd.f32 %v1959, %v1946
        %v1961 = vadd.f32 %v1931, %v1939
        %v1962 = vadd.f32 %v1961, %v1947
        %v1963 = vadd.f32 %v1932, %v1940
        %v1964 = vadd.f32 %v1963, %v1948
        %1965 = vst [vmem:[#allocation2 + $0x380] sm:$0xff] %v1950
        %1966 = vst [vmem:[#allocation2 + $0x388] sm:$0xff] %v1952
        %1967 = vst [vmem:[#allocation2 + $0x390] sm:$0xff] %v1954
        %1968 = vst [vmem:[#allocation2 + $0x398] sm:$0xff] %v1956
        %1969 = vst [vmem:[#allocation2 + $0x3a0] sm:$0xff] %v1958
        %1970 = vst [vmem:[#allocation2 + $0x3a8] sm:$0xff] %v1960
        %1971 = vst [vmem:[#allocation2 + $0x3b0] sm:$0xff] %v1962
        %1972 = vst [vmem:[#allocation2 + $0x3b8] sm:$0xff] %v1964
        %v1973 = vlaneseq
        %v1974 = vshrl.u32 %v1973, 7
        %v1975 = vsub.s32 7, %v1974
        %v1976 = vrot.slane %v501, %v1975
        %v1977 = vlaneseq
        %v1978 = vshrl.u32 %v1977, 7
        %v1979 = vsub.s32 7, %v1978
        %v1980 = vrot.slane %v502, %v1979
        %v1981 = vlaneseq
        %v1982 = vshrl.u32 %v1981, 7
        %v1983 = vsub.s32 7, %v1982
        %v1984 = vrot.slane %v503, %v1983
        %v1985 = vlaneseq
        %v1986 = vshrl.u32 %v1985, 7
        %v1987 = vsub.s32 7, %v1986
        %v1988 = vrot.slane %v504, %v1987
        %v1989 = vlaneseq
        %v1990 = vshrl.u32 %v1989, 7
        %v1991 = vsub.s32 7, %v1990
        %v1992 = vrot.slane %v509, %v1991
        %v1993 = vlaneseq
        %v1994 = vshrl.u32 %v1993, 7
        %v1995 = vsub.s32 7, %v1994
        %v1996 = vrot.slane %v510, %v1995
        %v1997 = vlaneseq
        %v1998 = vshrl.u32 %v1997, 7
        %v1999 = vsub.s32 7, %v1998
        %v2000 = vrot.slane %v511, %v1999
        %v2001 = vlaneseq
        %v2002 = vshrl.u32 %v2001, 7
        %v2003 = vsub.s32 7, %v2002
        %v2004 = vrot.slane %v512, %v2003
        %v2005 = vlaneseq
        %v2006 = vshrl.u32 %v2005, 7
        %v2007 = vsub.s32 7, %v2006
        %v2008 = vrot.slane %v517, %v2007
        %v2009 = vlaneseq
        %v2010 = vshrl.u32 %v2009, 7
        %v2011 = vsub.s32 7, %v2010
        %v2012 = vrot.slane %v518, %v2011
        %v2013 = vlaneseq
        %v2014 = vshrl.u32 %v2013, 7
        %v2015 = vsub.s32 7, %v2014
        %v2016 = vrot.slane %v519, %v2015
        %v2017 = vlaneseq
        %v2018 = vshrl.u32 %v2017, 7
        %v2019 = vsub.s32 7, %v2018
        %v2020 = vrot.slane %v520, %v2019
        %v2021 = vmul.f32 %v1976, %v497
        %v2022 = vmul.f32 %v1980, %v498
        %v2023 = vmul.f32 %v1984, %v499
        %v2024 = vmul.f32 %v1988, %v500
        %v2025 = vmul.f32 %v1976, %v501
        %v2026 = vmul.f32 %v1980, %v502
        %v2027 = vmul.f32 %v1984, %v503
        %v2028 = vmul.f32 %v1988, %v504
        %v2029 = vmul.f32 %v1992, %v505
        %v2030 = vmul.f32 %v1996, %v506
        %v2031 = vmul.f32 %v2000, %v507
        %v2032 = vmul.f32 %v2004, %v508
        %v2033 = vmul.f32 %v1992, %v509
        %v2034 = vmul.f32 %v1996, %v510
        %v2035 = vmul.f32 %v2000, %v511
        %v2036 = vmul.f32 %v2004, %v512
        %v2037 = vmul.f32 %v2008, %v513
        %v2038 = vmul.f32 %v2012, %v514
        %v2039 = vmul.f32 %v2016, %v515
        %v2040 = vmul.f32 %v2020, %v516
        %v2041 = vmul.f32 %v2008, %v517
        %v2042 = vmul.f32 %v2012, %v518
        %v2043 = vmul.f32 %v2016, %v519
        %v2044 = vmul.f32 %v2020, %v520
        %v2045 = vadd.f32 %v2021, %v2029
        %v2046 = vadd.f32 %v2045, %v2037
        %v2047 = vadd.f32 %v2022, %v2030
        %v2048 = vadd.f32 %v2047, %v2038
        %v2049 = vadd.f32 %v2023, %v2031
        %v2050 = vadd.f32 %v2049, %v2039
        %v2051 = vadd.f32 %v2024, %v2032
        %v2052 = vadd.f32 %v2051, %v2040
        %v2053 = vadd.f32 %v2025, %v2033
        %v2054 = vadd.f32 %v2053, %v2041
        %v2055 = vadd.f32 %v2026, %v2034
        %v2056 = vadd.f32 %v2055, %v2042
        %v2057 = vadd.f32 %v2027, %v2035
        %v2058 = vadd.f32 %v2057, %v2043
        %v2059 = vadd.f32 %v2028, %v2036
        %v2060 = vadd.f32 %v2059, %v2044
        %2061 = vst [vmem:[#allocation2 + $0x3c0] sm:$0xff] %v2046
        %2062 = vst [vmem:[#allocation2 + $0x3c8] sm:$0xff] %v2048
        %2063 = vst [vmem:[#allocation2 + $0x3d0] sm:$0xff] %v2050
        %2064 = vst [vmem:[#allocation2 + $0x3d8] sm:$0xff] %v2052
        %2065 = vst [vmem:[#allocation2 + $0x3e0] sm:$0xff] %v2054
        %2066 = vst [vmem:[#allocation2 + $0x3e8] sm:$0xff] %v2056
        %2067 = vst [vmem:[#allocation2 + $0x3f0] sm:$0xff] %v2058
        %2068 = vst [vmem:[#allocation2 + $0x3f8] sm:$0xff] %v2060
        %v2069 = vld [vmem:[#allocation2] sm:$0xff]
        %v2070 = vld [vmem:[#allocation2 + $0x8] sm:$0xff]
        %v2071 = vld [vmem:[#allocation2 + $0x10] sm:$0xff]
        %v2072 = vld [vmem:[#allocation2 + $0x18] sm:$0xff]
        %v2073 = vld [vmem:[#allocation2 + $0x20] sm:$0xff]
        %v2074 = vld [vmem:[#allocation2 + $0x28] sm:$0xff]
        %v2075 = vld [vmem:[#allocation2 + $0x30] sm:$0xff]
        %v2076 = vld [vmem:[#allocation2 + $0x38] sm:$0xff]
        %v2077 = vld [vmem:[#allocation2 + $0x40] sm:$0xff]
        %v2078 = vld [vmem:[#allocation2 + $0x48] sm:$0xff]
        %v2079 = vld [vmem:[#allocation2 + $0x50] sm:$0xff]
        %v2080 = vld [vmem:[#allocation2 + $0x58] sm:$0xff]
        %v2081 = vld [vmem:[#allocation2 + $0x60] sm:$0xff]
        %v2082 = vld [vmem:[#allocation2 + $0x68] sm:$0xff]
        %v2083 = vld [vmem:[#allocation2 + $0x70] sm:$0xff]
        %v2084 = vld [vmem:[#allocation2 + $0x78] sm:$0xff]
        %v2085 = vld [vmem:[#allocation2 + $0x80] sm:$0xff]
        %v2086 = vld [vmem:[#allocation2 + $0x88] sm:$0xff]
        %v2087 = vld [vmem:[#allocation2 + $0x90] sm:$0xff]
        %v2088 = vld [vmem:[#allocation2 + $0x98] sm:$0xff]
        %v2089 = vld [vmem:[#allocation2 + $0xa0] sm:$0xff]
        %v2090 = vld [vmem:[#allocation2 + $0xa8] sm:$0xff]
        %v2091 = vld [vmem:[#allocation2 + $0xb0] sm:$0xff]
        %v2092 = vld [vmem:[#allocation2 + $0xb8] sm:$0xff]
        %v2093 = vld [vmem:[#allocation2 + $0xc0] sm:$0xff]
        %v2094 = vld [vmem:[#allocation2 + $0xc8] sm:$0xff]
        %v2095 = vld [vmem:[#allocation2 + $0xd0] sm:$0xff]
        %v2096 = vld [vmem:[#allocation2 + $0xd8] sm:$0xff]
        %v2097 = vld [vmem:[#allocation2 + $0xe0] sm:$0xff]
        %v2098 = vld [vmem:[#allocation2 + $0xe8] sm:$0xff]
        %v2099 = vld [vmem:[#allocation2 + $0xf0] sm:$0xff]
        %v2100 = vld [vmem:[#allocation2 + $0xf8] sm:$0xff]
        %v2101 = vld [vmem:[#allocation2 + $0x100] sm:$0xff]
        %v2102 = vld [vmem:[#allocation2 + $0x108] sm:$0xff]
        %v2103 = vld [vmem:[#allocation2 + $0x110] sm:$0xff]
        %v2104 = vld [vmem:[#allocation2 + $0x118] sm:$0xff]
        %v2105 = vld [vmem:[#allocation2 + $0x120] sm:$0xff]
        %v2106 = vld [vmem:[#allocation2 + $0x128] sm:$0xff]
        %v2107 = vld [vmem:[#allocation2 + $0x130] sm:$0xff]
        %v2108 = vld [vmem:[#allocation2 + $0x138] sm:$0xff]
        %v2109 = vld [vmem:[#allocation2 + $0x140] sm:$0xff]
        %v2110 = vld [vmem:[#allocation2 + $0x148] sm:$0xff]
        %v2111 = vld [vmem:[#allocation2 + $0x150] sm:$0xff]
        %v2112 = vld [vmem:[#allocation2 + $0x158] sm:$0xff]
        %v2113 = vld [vmem:[#allocation2 + $0x160] sm:$0xff]
        %v2114 = vld [vmem:[#allocation2 + $0x168] sm:$0xff]
        %v2115 = vld [vmem:[#allocation2 + $0x170] sm:$0xff]
        %v2116 = vld [vmem:[#allocation2 + $0x178] sm:$0xff]
        %v2117 = vld [vmem:[#allocation2 + $0x180] sm:$0xff]
        %v2118 = vld [vmem:[#allocation2 + $0x188] sm:$0xff]
        %v2119 = vld [vmem:[#allocation2 + $0x190] sm:$0xff]
        %v2120 = vld [vmem:[#allocation2 + $0x198] sm:$0xff]
        %v2121 = vld [vmem:[#allocation2 + $0x1a0] sm:$0xff]
        %v2122 = vld [vmem:[#allocation2 + $0x1a8] sm:$0xff]
        %v2123 = vld [vmem:[#allocation2 + $0x1b0] sm:$0xff]
        %v2124 = vld [vmem:[#allocation2 + $0x1b8] sm:$0xff]
        %v2125 = vld [vmem:[#allocation2 + $0x1c0] sm:$0xff]
        %v2126 = vld [vmem:[#allocation2 + $0x1c8] sm:$0xff]
        %v2127 = vld [vmem:[#allocation2 + $0x1d0] sm:$0xff]
        %v2128 = vld [vmem:[#allocation2 + $0x1d8] sm:$0xff]
        %v2129 = vld [vmem:[#allocation2 + $0x1e0] sm:$0xff]
        %v2130 = vld [vmem:[#allocation2 + $0x1e8] sm:$0xff]
        %v2131 = vld [vmem:[#allocation2 + $0x1f0] sm:$0xff]
        %v2132 = vld [vmem:[#allocation2 + $0x1f8] sm:$0xff]
        %v2133 = vld [vmem:[#allocation2 + $0x200] sm:$0xff]
        %v2134 = vld [vmem:[#allocation2 + $0x208] sm:$0xff]
        %v2135 = vld [vmem:[#allocation2 + $0x210] sm:$0xff]
        %v2136 = vld [vmem:[#allocation2 + $0x218] sm:$0xff]
        %v2137 = vld [vmem:[#allocation2 + $0x220] sm:$0xff]
        %v2138 = vld [vmem:[#allocation2 + $0x228] sm:$0xff]
        %v2139 = vld [vmem:[#allocation2 + $0x230] sm:$0xff]
        %v2140 = vld [vmem:[#allocation2 + $0x238] sm:$0xff]
        %v2141 = vld [vmem:[#allocation2 + $0x240] sm:$0xff]
        %v2142 = vld [vmem:[#allocation2 + $0x248] sm:$0xff]
        %v2143 = vld [vmem:[#allocation2 + $0x250] sm:$0xff]
        %v2144 = vld [vmem:[#allocation2 + $0x258] sm:$0xff]
        %v2145 = vld [vmem:[#allocation2 + $0x260] sm:$0xff]
        %v2146 = vld [vmem:[#allocation2 + $0x268] sm:$0xff]
        %v2147 = vld [vmem:[#allocation2 + $0x270] sm:$0xff]
        %v2148 = vld [vmem:[#allocation2 + $0x278] sm:$0xff]
        %v2149 = vld [vmem:[#allocation2 + $0x280] sm:$0xff]
        %v2150 = vld [vmem:[#allocation2 + $0x288] sm:$0xff]
        %v2151 = vld [vmem:[#allocation2 + $0x290] sm:$0xff]
        %v2152 = vld [vmem:[#allocation2 + $0x298] sm:$0xff]
        %v2153 = vld [vmem:[#allocation2 + $0x2a0] sm:$0xff]
        %v2154 = vld [vmem:[#allocation2 + $0x2a8] sm:$0xff]
        %v2155 = vld [vmem:[#allocation2 + $0x2b0] sm:$0xff]
        %v2156 = vld [vmem:[#allocation2 + $0x2b8] sm:$0xff]
        %v2157 = vld [vmem:[#allocation2 + $0x2c0] sm:$0xff]
        %v2158 = vld [vmem:[#allocation2 + $0x2c8] sm:$0xff]
        %v2159 = vld [vmem:[#allocation2 + $0x2d0] sm:$0xff]
        %v2160 = vld [vmem:[#allocation2 + $0x2d8] sm:$0xff]
        %v2161 = vld [vmem:[#allocation2 + $0x2e0] sm:$0xff]
        %v2162 = vld [vmem:[#allocation2 + $0x2e8] sm:$0xff]
        %v2163 = vld [vmem:[#allocation2 + $0x2f0] sm:$0xff]
        %v2164 = vld [vmem:[#allocation2 + $0x2f8] sm:$0xff]
        %v2165 = vld [vmem:[#allocation2 + $0x300] sm:$0xff]
        %v2166 = vld [vmem:[#allocation2 + $0x308] sm:$0xff]
        %v2167 = vld [vmem:[#allocation2 + $0x310] sm:$0xff]
        %v2168 = vld [vmem:[#allocation2 + $0x318] sm:$0xff]
        %v2169 = vld [vmem:[#allocation2 + $0x320] sm:$0xff]
        %v2170 = vld [vmem:[#allocation2 + $0x328] sm:$0xff]
        %v2171 = vld [vmem:[#allocation2 + $0x330] sm:$0xff]
        %v2172 = vld [vmem:[#allocation2 + $0x338] sm:$0xff]
        %v2173 = vld [vmem:[#allocation2 + $0x340] sm:$0xff]
        %v2174 = vld [vmem:[#allocation2 + $0x348] sm:$0xff]
        %v2175 = vld [vmem:[#allocation2 + $0x350] sm:$0xff]
        %v2176 = vld [vmem:[#allocation2 + $0x358] sm:$0xff]
        %v2177 = vld [vmem:[#allocation2 + $0x360] sm:$0xff]
        %v2178 = vld [vmem:[#allocation2 + $0x368] sm:$0xff]
        %v2179 = vld [vmem:[#allocation2 + $0x370] sm:$0xff]
        %v2180 = vld [vmem:[#allocation2 + $0x378] sm:$0xff]
        %v2181 = vld [vmem:[#allocation2 + $0x380] sm:$0xff]
        %v2182 = vld [vmem:[#allocation2 + $0x388] sm:$0xff]
        %v2183 = vld [vmem:[#allocation2 + $0x390] sm:$0xff]
        %v2184 = vld [vmem:[#allocation2 + $0x398] sm:$0xff]
        %v2185 = vld [vmem:[#allocation2 + $0x3a0] sm:$0xff]
        %v2186 = vld [vmem:[#allocation2 + $0x3a8] sm:$0xff]
        %v2187 = vld [vmem:[#allocation2 + $0x3b0] sm:$0xff]
        %v2188 = vld [vmem:[#allocation2 + $0x3b8] sm:$0xff]
        %v2189 = vld [vmem:[#allocation2 + $0x3c0] sm:$0xff]
        %v2190 = vld [vmem:[#allocation2 + $0x3c8] sm:$0xff]
        %v2191 = vld [vmem:[#allocation2 + $0x3d0] sm:$0xff]
        %v2192 = vld [vmem:[#allocation2 + $0x3d8] sm:$0xff]
        %v2193 = vld [vmem:[#allocation2 + $0x3e0] sm:$0xff]
        %v2194 = vld [vmem:[#allocation2 + $0x3e8] sm:$0xff]
        %v2195 = vld [vmem:[#allocation2 + $0x3f0] sm:$0xff]
        %v2196 = vld [vmem:[#allocation2 + $0x3f8] sm:$0xff]
        %v2197 = vmul.f32 %v2069, %v2069
        %v2198 = vmul.f32 %v2070, %v2070
        %v2199 = vmul.f32 %v2071, %v2071
        %v2200 = vmul.f32 %v2072, %v2072
        %v2201 = vmul.f32 %v2073, %v2073
        %v2202 = vmul.f32 %v2074, %v2074
        %v2203 = vmul.f32 %v2075, %v2075
        %v2204 = vmul.f32 %v2076, %v2076
        %v2205 = vmul.f32 %v2077, %v2077
        %v2206 = vmul.f32 %v2078, %v2078
        %v2207 = vmul.f32 %v2079, %v2079
        %v2208 = vmul.f32 %v2080, %v2080
        %v2209 = vmul.f32 %v2081, %v2081
        %v2210 = vmul.f32 %v2082, %v2082
        %v2211 = vmul.f32 %v2083, %v2083
        %v2212 = vmul.f32 %v2084, %v2084
        %v2213 = vmul.f32 %v2085, %v2085
        %v2214 = vmul.f32 %v2086, %v2086
        %v2215 = vmul.f32 %v2087, %v2087
        %v2216 = vmul.f32 %v2088, %v2088
        %v2217 = vmul.f32 %v2089, %v2089
        %v2218 = vmul.f32 %v2090, %v2090
        %v2219 = vmul.f32 %v2091, %v2091
        %v2220 = vmul.f32 %v2092, %v2092
        %v2221 = vmul.f32 %v2093, %v2093
        %v2222 = vmul.f32 %v2094, %v2094
        %v2223 = vmul.f32 %v2095, %v2095
        %v2224 = vmul.f32 %v2096, %v2096
        %v2225 = vmul.f32 %v2097, %v2097
        %v2226 = vmul.f32 %v2098, %v2098
        %v2227 = vmul.f32 %v2099, %v2099
        %v2228 = vmul.f32 %v2100, %v2100
        %v2229 = vmul.f32 %v2101, %v2101
        %v2230 = vmul.f32 %v2102, %v2102
        %v2231 = vmul.f32 %v2103, %v2103
        %v2232 = vmul.f32 %v2104, %v2104
        %v2233 = vmul.f32 %v2105, %v2105
        %v2234 = vmul.f32 %v2106, %v2106
        %v2235 = vmul.f32 %v2107, %v2107
        %v2236 = vmul.f32 %v2108, %v2108
        %v2237 = vmul.f32 %v2109, %v2109
        %v2238 = vmul.f32 %v2110, %v2110
        %v2239 = vmul.f32 %v2111, %v2111
        %v2240 = vmul.f32 %v2112, %v2112
        %v2241 = vmul.f32 %v2113, %v2113
        %v2242 = vmul.f32 %v2114, %v2114
        %v2243 = vmul.f32 %v2115, %v2115
        %v2244 = vmul.f32 %v2116, %v2116
        %v2245 = vmul.f32 %v2117, %v2117
        %v2246 = vmul.f32 %v2118, %v2118
        %v2247 = vmul.f32 %v2119, %v2119
        %v2248 = vmul.f32 %v2120, %v2120
        %v2249 = vmul.f32 %v2121, %v2121
        %v2250 = vmul.f32 %v2122, %v2122
        %v2251 = vmul.f32 %v2123, %v2123
        %v2252 = vmul.f32 %v2124, %v2124
        %v2253 = vmul.f32 %v2125, %v2125
        %v2254 = vmul.f32 %v2126, %v2126
        %v2255 = vmul.f32 %v2127, %v2127
        %v2256 = vmul.f32 %v2128, %v2128
        %v2257 = vmul.f32 %v2129, %v2129
        %v2258 = vmul.f32 %v2130, %v2130
        %v2259 = vmul.f32 %v2131, %v2131
        %v2260 = vmul.f32 %v2132, %v2132
        %v2261 = vmul.f32 %v2133, %v2133
        %v2262 = vmul.f32 %v2134, %v2134
        %v2263 = vmul.f32 %v2135, %v2135
        %v2264 = vmul.f32 %v2136, %v2136
        %v2265 = vmul.f32 %v2137, %v2137
        %v2266 = vmul.f32 %v2138, %v2138
        %v2267 = vmul.f32 %v2139, %v2139
        %v2268 = vmul.f32 %v2140, %v2140
        %v2269 = vmul.f32 %v2141, %v2141
        %v2270 = vmul.f32 %v2142, %v2142
        %v2271 = vmul.f32 %v2143, %v2143
        %v2272 = vmul.f32 %v2144, %v2144
        %v2273 = vmul.f32 %v2145, %v2145
        %v2274 = vmul.f32 %v2146, %v2146
        %v2275 = vmul.f32 %v2147, %v2147
        %v2276 = vmul.f32 %v2148, %v2148
        %v2277 = vmul.f32 %v2149, %v2149
        %v2278 = vmul.f32 %v2150, %v2150
        %v2279 = vmul.f32 %v2151, %v2151
        %v2280 = vmul.f32 %v2152, %v2152
        %v2281 = vmul.f32 %v2153, %v2153
        %v2282 = vmul.f32 %v2154, %v2154
        %v2283 = vmul.f32 %v2155, %v2155
        %v2284 = vmul.f32 %v2156, %v2156
        %v2285 = vmul.f32 %v2157, %v2157
        %v2286 = vmul.f32 %v2158, %v2158
        %v2287 = vmul.f32 %v2159, %v2159
        %v2288 = vmul.f32 %v2160, %v2160
        %v2289 = vmul.f32 %v2161, %v2161
        %v2290 = vmul.f32 %v2162, %v2162
        %v2291 = vmul.f32 %v2163, %v2163
        %v2292 = vmul.f32 %v2164, %v2164
        %v2293 = vmul.f32 %v2165, %v2165
        %v2294 = vmul.f32 %v2166, %v2166
        %v2295 = vmul.f32 %v2167, %v2167
        %v2296 = vmul.f32 %v2168, %v2168
        %v2297 = vmul.f32 %v2169, %v2169
        %v2298 = vmul.f32 %v2170, %v2170
        %v2299 = vmul.f32 %v2171, %v2171
        %v2300 = vmul.f32 %v2172, %v2172
        %v2301 = vmul.f32 %v2173, %v2173
        %v2302 = vmul.f32 %v2174, %v2174
        %v2303 = vmul.f32 %v2175, %v2175
        %v2304 = vmul.f32 %v2176, %v2176
        %v2305 = vmul.f32 %v2177, %v2177
        %v2306 = vmul.f32 %v2178, %v2178
        %v2307 = vmul.f32 %v2179, %v2179
        %v2308 = vmul.f32 %v2180, %v2180
        %v2309 = vmul.f32 %v2181, %v2181
        %v2310 = vmul.f32 %v2182, %v2182
        %v2311 = vmul.f32 %v2183, %v2183
        %v2312 = vmul.f32 %v2184, %v2184
        %v2313 = vmul.f32 %v2185, %v2185
        %v2314 = vmul.f32 %v2186, %v2186
        %v2315 = vmul.f32 %v2187, %v2187
        %v2316 = vmul.f32 %v2188, %v2188
        %v2317 = vmul.f32 %v2189, %v2189
        %v2318 = vmul.f32 %v2190, %v2190
        %v2319 = vmul.f32 %v2191, %v2191
        %v2320 = vmul.f32 %v2192, %v2192
        %v2321 = vmul.f32 %v2193, %v2193
        %v2322 = vmul.f32 %v2194, %v2194
        %v2323 = vmul.f32 %v2195, %v2195
        %v2324 = vmul.f32 %v2196, %v2196
        %v2325 = vadd.f32 %v2197, %v2201
        %v2326 = vadd.f32 %v2325, %v2205
        %v2327 = vadd.f32 %v2326, %v2209
        %v2328 = vadd.f32 %v2327, %v2213
        %v2329 = vadd.f32 %v2328, %v2217
        %v2330 = vadd.f32 %v2329, %v2221
        %v2331 = vadd.f32 %v2330, %v2225
        %v2332 = vadd.f32 %v2331, %v2229
        %v2333 = vadd.f32 %v2332, %v2233
        %v2334 = vadd.f32 %v2333, %v2237
        %v2335 = vadd.f32 %v2334, %v2241
        %v2336 = vadd.f32 %v2335, %v2245
        %v2337 = vadd.f32 %v2336, %v2249
        %v2338 = vadd.f32 %v2337, %v2253
        %v2339 = vadd.f32 %v2338, %v2257
        %v2340 = vadd.f32 %v2339, %v2261
        %v2341 = vadd.f32 %v2340, %v2265
        %v2342 = vadd.f32 %v2341, %v2269
        %v2343 = vadd.f32 %v2342, %v2273
        %v2344 = vadd.f32 %v2343, %v2277
        %v2345 = vadd.f32 %v2344, %v2281
        %v2346 = vadd.f32 %v2345, %v2285
        %v2347 = vadd.f32 %v2346, %v2289
        %v2348 = vadd.f32 %v2347, %v2293
        %v2349 = vadd.f32 %v2348, %v2297
        %v2350 = vadd.f32 %v2349, %v2301
        %v2351 = vadd.f32 %v2350, %v2305
        %v2352 = vadd.f32 %v2351, %v2309
        %v2353 = vadd.f32 %v2352, %v2313
        %v2354 = vadd.f32 %v2353, %v2317
        %v2355 = vadd.f32 %v2354, %v2321
        %v2356 = vrot.slane %v2355, 4
        %v2357 = vadd.f32 %v2355, %v2356
        %v2358 = vrot.slane %v2357, 2
        %v2359 = vadd.f32 %v2357, %v2358
        %v2360 = vrot.slane %v2359, 1
        %v2361 = vadd.f32 %v2359, %v2360
        %v2362 = vadd.f32 %v2198, %v2202
        %v2363 = vadd.f32 %v2362, %v2206
        %v2364 = vadd.f32 %v2363, %v2210
        %v2365 = vadd.f32 %v2364, %v2214
        %v2366 = vadd.f32 %v2365, %v2218
        %v2367 = vadd.f32 %v2366, %v2222
        %v2368 = vadd.f32 %v2367, %v2226
        %v2369 = vadd.f32 %v2368, %v2230
        %v2370 = vadd.f32 %v2369, %v2234
        %v2371 = vadd.f32 %v2370, %v2238
        %v2372 = vadd.f32 %v2371, %v2242
        %v2373 = vadd.f32 %v2372, %v2246
        %v2374 = vadd.f32 %v2373, %v2250
        %v2375 = vadd.f32 %v2374, %v2254
        %v2376 = vadd.f32 %v2375, %v2258
        %v2377 = vadd.f32 %v2376, %v2262
        %v2378 = vadd.f32 %v2377, %v2266
        %v2379 = vadd.f32 %v2378, %v2270
        %v2380 = vadd.f32 %v2379, %v2274
        %v2381 = vadd.f32 %v2380, %v2278
        %v2382 = vadd.f32 %v2381, %v2282
        %v2383 = vadd.f32 %v2382, %v2286
        %v2384 = vadd.f32 %v2383, %v2290
        %v2385 = vadd.f32 %v2384, %v2294
        %v2386 = vadd.f32 %v2385, %v2298
        %v2387 = vadd.f32 %v2386, %v2302
        %v2388 = vadd.f32 %v2387, %v2306
        %v2389 = vadd.f32 %v2388, %v2310
        %v2390 = vadd.f32 %v2389, %v2314
        %v2391 = vadd.f32 %v2390, %v2318
        %v2392 = vadd.f32 %v2391, %v2322
        %v2393 = vrot.slane %v2392, 4
        %v2394 = vadd.f32 %v2392, %v2393
        %v2395 = vrot.slane %v2394, 2
        %v2396 = vadd.f32 %v2394, %v2395
        %v2397 = vrot.slane %v2396, 1
        %v2398 = vadd.f32 %v2396, %v2397
        %v2399 = vadd.f32 %v2199, %v2203
        %v2400 = vadd.f32 %v2399, %v2207
        %v2401 = vadd.f32 %v2400, %v2211
        %v2402 = vadd.f32 %v2401, %v2215
        %v2403 = vadd.f32 %v2402, %v2219
        %v2404 = vadd.f32 %v2403, %v2223
        %v2405 = vadd.f32 %v2404, %v2227
        %v2406 = vadd.f32 %v2405, %v2231
        %v2407 = vadd.f32 %v2406, %v2235
        %v2408 = vadd.f32 %v2407, %v2239
        %v2409 = vadd.f32 %v2408, %v2243
        %v2410 = vadd.f32 %v2409, %v2247
        %v2411 = vadd.f32 %v2410, %v2251
        %v2412 = vadd.f32 %v2411, %v2255
        %v2413 = vadd.f32 %v2412, %v2259
        %v2414 = vadd.f32 %v2413, %v2263
        %v2415 = vadd.f32 %v2414, %v2267
        %v2416 = vadd.f32 %v2415, %v2271
        %v2417 = vadd.f32 %v2416, %v2275
        %v2418 = vadd.f32 %v2417, %v2279
        %v2419 = vadd.f32 %v2418, %v2283
        %v2420 = vadd.f32 %v2419, %v2287
        %v2421 = vadd.f32 %v2420, %v2291
        %v2422 = vadd.f32 %v2421, %v2295
        %v2423 = vadd.f32 %v2422, %v2299
        %v2424 = vadd.f32 %v2423, %v2303
        %v2425 = vadd.f32 %v2424, %v2307
        %v2426 = vadd.f32 %v2425, %v2311
        %v2427 = vadd.f32 %v2426, %v2315
        %v2428 = vadd.f32 %v2427, %v2319
        %v2429 = vadd.f32 %v2428, %v2323
        %v2430 = vrot.slane %v2429, 4
        %v2431 = vadd.f32 %v2429, %v2430
        %v2432 = vrot.slane %v2431, 2
        %v2433 = vadd.f32 %v2431, %v2432
        %v2434 = vrot.slane %v2433, 1
        %v2435 = vadd.f32 %v2433, %v2434
        %v2436 = vadd.f32 %v2200, %v2204
        %v2437 = vadd.f32 %v2436, %v2208
        %v2438 = vadd.f32 %v2437, %v2212
        %v2439 = vadd.f32 %v2438, %v2216
        %v2440 = vadd.f32 %v2439, %v2220
        %v2441 = vadd.f32 %v2440, %v2224
        %v2442 = vadd.f32 %v2441, %v2228
        %v2443 = vadd.f32 %v2442, %v2232
        %v2444 = vadd.f32 %v2443, %v2236
        %v2445 = vadd.f32 %v2444, %v2240
        %v2446 = vadd.f32 %v2445, %v2244
        %v2447 = vadd.f32 %v2446, %v2248
        %v2448 = vadd.f32 %v2447, %v2252
        %v2449 = vadd.f32 %v2448, %v2256
        %v2450 = vadd.f32 %v2449, %v2260
        %v2451 = vadd.f32 %v2450, %v2264
        %v2452 = vadd.f32 %v2451, %v2268
        %v2453 = vadd.f32 %v2452, %v2272
        %v2454 = vadd.f32 %v2453, %v2276
        %v2455 = vadd.f32 %v2454, %v2280
        %v2456 = vadd.f32 %v2455, %v2284
        %v2457 = vadd.f32 %v2456, %v2288
        %v2458 = vadd.f32 %v2457, %v2292
        %v2459 = vadd.f32 %v2458, %v2296
        %v2460 = vadd.f32 %v2459, %v2300
        %v2461 = vadd.f32 %v2460, %v2304
        %v2462 = vadd.f32 %v2461, %v2308
        %v2463 = vadd.f32 %v2462, %v2312
        %v2464 = vadd.f32 %v2463, %v2316
        %v2465 = vadd.f32 %v2464, %v2320
        %v2466 = vadd.f32 %v2465, %v2324
        %v2467 = vrot.slane %v2466, 4
        %v2468 = vadd.f32 %v2466, %v2467
        %v2469 = vrot.slane %v2468, 2
        %v2470 = vadd.f32 %v2468, %v2469
        %v2471 = vrot.slane %v2470, 1
        %v2472 = vadd.f32 %v2470, %v2471
        %v2473 = vrsqrt.pop %v2361
        %v2474 = vmul.f32 %v2361, %v2473
        %vm2475 = vcmp.eq.f32.partialorder %v2361, inf
        %v2476 = vsel %vm2475, %v2361, %v2474
        %vm2477 = vcmp.eq.f32.partialorder %v2361, 0.0
        %v2478 = vand.u32 %v2361, 2147483648
        %v2479 = vsel %vm2477, %v2478, %v2476
        %v2480 = vrsqrt.pop %v2398
        %v2481 = vmul.f32 %v2398, %v2480
        %vm2482 = vcmp.eq.f32.partialorder %v2398, inf
        %v2483 = vsel %vm2482, %v2398, %v2481
        %vm2484 = vcmp.eq.f32.partialorder %v2398, 0.0
        %v2485 = vand.u32 %v2398, 2147483648
        %v2486 = vsel %vm2484, %v2485, %v2483
        %v2487 = vrsqrt.pop %v2435
        %v2488 = vmul.f32 %v2435, %v2487
        %vm2489 = vcmp.eq.f32.partialorder %v2435, inf
        %v2490 = vsel %vm2489, %v2435, %v2488
        %vm2491 = vcmp.eq.f32.partialorder %v2435, 0.0
        %v2492 = vand.u32 %v2435, 2147483648
        %v2493 = vsel %vm2491, %v2492, %v2490
        %v2494 = vrsqrt.pop %v2472
        %v2495 = vmul.f32 %v2472, %v2494
        %vm2496 = vcmp.eq.f32.partialorder %v2472, inf
        %v2497 = vsel %vm2496, %v2472, %v2495
        %vm2498 = vcmp.eq.f32.partialorder %v2472, 0.0
        %v2499 = vand.u32 %v2472, 2147483648
        %v2500 = vsel %vm2498, %v2499, %v2497
        %v2501 = vmax.f32 %v2479, 1e-12
        %v2502 = vmax.f32 %v2486, 1e-12
        %v2503 = vmax.f32 %v2493, 1e-12
        %v2504 = vmax.f32 %v2500, 1e-12
        %v2505 = vrcp.pop %v2501
        %v2506 = vmul.f32 1.0, %v2505
        %v2507 = vrcp.pop %v2502
        %v2508 = vmul.f32 1.0, %v2507
        %v2509 = vrcp.pop %v2503
        %v2510 = vmul.f32 1.0, %v2509
        %v2511 = vrcp.pop %v2504
        %v2512 = vmul.f32 1.0, %v2511
        %v2513 = vmul.f32 %v2069, %v2506
        %v2514 = vmul.f32 %v2070, %v2508
        %v2515 = vmul.f32 %v2071, %v2510
        %v2516 = vmul.f32 %v2072, %v2512
        %v2517 = vmul.f32 %v2073, %v2506
        %v2518 = vmul.f32 %v2074, %v2508
        %v2519 = vmul.f32 %v2075, %v2510
        %v2520 = vmul.f32 %v2076, %v2512
        %v2521 = vmul.f32 %v2077, %v2506
        %v2522 = vmul.f32 %v2078, %v2508
        %v2523 = vmul.f32 %v2079, %v2510
        %v2524 = vmul.f32 %v2080, %v2512
        %v2525 = vmul.f32 %v2081, %v2506
        %v2526 = vmul.f32 %v2082, %v2508
        %v2527 = vmul.f32 %v2083, %v2510
        %v2528 = vmul.f32 %v2084, %v2512
        %v2529 = vmul.f32 %v2085, %v2506
        %v2530 = vmul.f32 %v2086, %v2508
        %v2531 = vmul.f32 %v2087, %v2510
        %v2532 = vmul.f32 %v2088, %v2512
        %v2533 = vmul.f32 %v2089, %v2506
        %v2534 = vmul.f32 %v2090, %v2508
        %v2535 = vmul.f32 %v2091, %v2510
        %v2536 = vmul.f32 %v2092, %v2512
        %v2537 = vmul.f32 %v2093, %v2506
        %v2538 = vmul.f32 %v2094, %v2508
        %v2539 = vmul.f32 %v2095, %v2510
        %v2540 = vmul.f32 %v2096, %v2512
        %v2541 = vmul.f32 %v2097, %v2506
        %v2542 = vmul.f32 %v2098, %v2508
        %v2543 = vmul.f32 %v2099, %v2510
        %v2544 = vmul.f32 %v2100, %v2512
        %v2545 = vmul.f32 %v2101, %v2506
        %v2546 = vmul.f32 %v2102, %v2508
        %v2547 = vmul.f32 %v2103, %v2510
        %v2548 = vmul.f32 %v2104, %v2512
        %v2549 = vmul.f32 %v2105, %v2506
        %v2550 = vmul.f32 %v2106, %v2508
        %v2551 = vmul.f32 %v2107, %v2510
        %v2552 = vmul.f32 %v2108, %v2512
        %v2553 = vmul.f32 %v2109, %v2506
        %v2554 = vmul.f32 %v2110, %v2508
        %v2555 = vmul.f32 %v2111, %v2510
        %v2556 = vmul.f32 %v2112, %v2512
        %v2557 = vmul.f32 %v2113, %v2506
        %v2558 = vmul.f32 %v2114, %v2508
        %v2559 = vmul.f32 %v2115, %v2510
        %v2560 = vmul.f32 %v2116, %v2512
        %v2561 = vmul.f32 %v2117, %v2506
        %v2562 = vmul.f32 %v2118, %v2508
        %v2563 = vmul.f32 %v2119, %v2510
        %v2564 = vmul.f32 %v2120, %v2512
        %v2565 = vmul.f32 %v2121, %v2506
        %v2566 = vmul.f32 %v2122, %v2508
        %v2567 = vmul.f32 %v2123, %v2510
        %v2568 = vmul.f32 %v2124, %v2512
        %v2569 = vmul.f32 %v2125, %v2506
        %v2570 = vmul.f32 %v2126, %v2508
        %v2571 = vmul.f32 %v2127, %v2510
        %v2572 = vmul.f32 %v2128, %v2512
        %v2573 = vmul.f32 %v2129, %v2506
        %v2574 = vmul.f32 %v2130, %v2508
        %v2575 = vmul.f32 %v2131, %v2510
        %v2576 = vmul.f32 %v2132, %v2512
        %v2577 = vmul.f32 %v2133, %v2506
        %v2578 = vmul.f32 %v2134, %v2508
        %v2579 = vmul.f32 %v2135, %v2510
        %v2580 = vmul.f32 %v2136, %v2512
        %v2581 = vmul.f32 %v2137, %v2506
        %v2582 = vmul.f32 %v2138, %v2508
        %v2583 = vmul.f32 %v2139, %v2510
        %v2584 = vmul.f32 %v2140, %v2512
        %v2585 = vmul.f32 %v2141, %v2506
        %v2586 = vmul.f32 %v2142, %v2508
        %v2587 = vmul.f32 %v2143, %v2510
        %v2588 = vmul.f32 %v2144, %v2512
        %v2589 = vmul.f32 %v2145, %v2506
        %v2590 = vmul.f32 %v2146, %v2508
        %v2591 = vmul.f32 %v2147, %v2510
        %v2592 = vmul.f32 %v2148, %v2512
        %v2593 = vmul.f32 %v2149, %v2506
        %v2594 = vmul.f32 %v2150, %v2508
        %v2595 = vmul.f32 %v2151, %v2510
        %v2596 = vmul.f32 %v2152, %v2512
        %v2597 = vmul.f32 %v2153, %v2506
        %v2598 = vmul.f32 %v2154, %v2508
        %v2599 = vmul.f32 %v2155, %v2510
        %v2600 = vmul.f32 %v2156, %v2512
        %v2601 = vmul.f32 %v2157, %v2506
        %v2602 = vmul.f32 %v2158, %v2508
        %v2603 = vmul.f32 %v2159, %v2510
        %v2604 = vmul.f32 %v2160, %v2512
        %v2605 = vmul.f32 %v2161, %v2506
        %v2606 = vmul.f32 %v2162, %v2508
        %v2607 = vmul.f32 %v2163, %v2510
        %v2608 = vmul.f32 %v2164, %v2512
        %v2609 = vmul.f32 %v2165, %v2506
        %v2610 = vmul.f32 %v2166, %v2508
        %v2611 = vmul.f32 %v2167, %v2510
        %v2612 = vmul.f32 %v2168, %v2512
        %v2613 = vmul.f32 %v2169, %v2506
        %v2614 = vmul.f32 %v2170, %v2508
        %v2615 = vmul.f32 %v2171, %v2510
        %v2616 = vmul.f32 %v2172, %v2512
        %v2617 = vmul.f32 %v2173, %v2506
        %v2618 = vmul.f32 %v2174, %v2508
        %v2619 = vmul.f32 %v2175, %v2510
        %v2620 = vmul.f32 %v2176, %v2512
        %v2621 = vmul.f32 %v2177, %v2506
        %v2622 = vmul.f32 %v2178, %v2508
        %v2623 = vmul.f32 %v2179, %v2510
        %v2624 = vmul.f32 %v2180, %v2512
        %v2625 = vmul.f32 %v2181, %v2506
        %v2626 = vmul.f32 %v2182, %v2508
        %v2627 = vmul.f32 %v2183, %v2510
        %v2628 = vmul.f32 %v2184, %v2512
        %v2629 = vmul.f32 %v2185, %v2506
        %v2630 = vmul.f32 %v2186, %v2508
        %v2631 = vmul.f32 %v2187, %v2510
        %v2632 = vmul.f32 %v2188, %v2512
        %v2633 = vmul.f32 %v2189, %v2506
        %v2634 = vmul.f32 %v2190, %v2508
        %v2635 = vmul.f32 %v2191, %v2510
        %v2636 = vmul.f32 %v2192, %v2512
        %v2637 = vmul.f32 %v2193, %v2506
        %v2638 = vmul.f32 %v2194, %v2508
        %v2639 = vmul.f32 %v2195, %v2510
        %v2640 = vmul.f32 %v2196, %v2512
        %v2641 = vld [vmem:[%s2] sm:$0xff]
        %v2642 = vld [vmem:[%s2 + $0x8] sm:$0xff]
        %v2643 = vld [vmem:[%s3] sm:$0xff]
        %vm2644 = vcmask 154624
        %v2646 = vsel %vm2644, %v2643, 0
        %vm2648 = vcmask 1042432
        %v2650 = vsel %vm2648, %v529, 0
        %v2653 = vsel %vm2648, %v530, 0
        %v2656 = vsel %vm2648, %v531, 0
        %v2659 = vsel %vm2648, %v532, 0
        %2661 = vmatprep.subr.mxu0 %v522
        %2662 = vmatpush1.msra.mxu0 %v521
        %2663 = vmatprep.subr.mxu0 %v526
        %2664 = vmatpush1.msra.mxu0 %v525
        %2665 = vmatprep.subr.mxu0 %v2653
        %2666 = vmatpush1.msra.mxu0 %v2650
        %2667 = vmatprep.subr.mxu0 0.0
        %2668 = vmatpush1.msra.mxu0 0.0
        %2669 = vmatprep.subr.mxu0 0.0
        %2670 = vmatpush1.msra.mxu0 0.0
        %2671 = vmatprep.subr.mxu0 0.0
        %2672 = vmatpush1.msra.mxu0 0.0
        %2673 = vmatprep.subr.mxu0 0.0
        %2674 = vmatpush1.msra.mxu0 0.0
        %2675 = vmatprep.subr.mxu0 0.0
        %2676 = vmatpush1.msra.mxu0 0.0
        %2677 = vmatprep.subr.mxu0 0.0
        %2678 = vmatpush1.msra.mxu0 0.0
        %2679 = vmatprep.subr.mxu0 0.0
        %2680 = vmatpush1.msra.mxu0 0.0
        %2681 = vmatprep.subr.mxu0 0.0
        %2682 = vmatpush1.msra.mxu0 0.0
        %2683 = vmatprep.subr.mxu0 0.0
        %2684 = vmatpush1.msra.mxu0 0.0
        %2685 = vmatprep.subr.mxu0 0.0
        %2686 = vmatpush1.msra.mxu0 0.0
        %2687 = vmatprep.subr.mxu0 0.0
        %2688 = vmatpush1.msra.mxu0 0.0
        %2689 = vmatprep.subr.mxu0 0.0
        %2690 = vmatpush1.msra.mxu0 0.0
        %2691 = vmatprep.subr.mxu0 0.0
        %2692 = vmatpush1.msra.mxu0 0.0
        %2693 = vmatprep.subr.mxu0 0.0
        %2694 = vmatpush1.msra.mxu0 0.0
        %2695 = vmatprep.subr.mxu0 0.0
        %2696 = vmatpush1.msra.mxu0 0.0
        %2697 = vmatprep.subr.mxu0 0.0
        %2698 = vmatpush1.msra.mxu0 0.0
        %2699 = vmatprep.subr.mxu0 0.0
        %2700 = vmatpush1.msra.mxu0 0.0
        %2701 = vmatprep.subr.mxu0 0.0
        %2702 = vmatpush1.msra.mxu0 0.0
        %2703 = vmatprep.subr.mxu0 0.0
        %2704 = vmatpush1.msra.mxu0 0.0
        %2705 = vmatprep.subr.mxu0 0.0
        %2706 = vmatpush1.msra.mxu0 0.0
        %2707 = vmatprep.subr.mxu0 0.0
        %2708 = vmatpush1.msra.mxu0 0.0
        %2709 = vmatprep.subr.mxu0 0.0
        %2710 = vmatpush1.msra.mxu0 0.0
        %2711 = vmatprep.subr.mxu0 0.0
        %2712 = vmatpush1.msra.mxu0 0.0
        %2713 = vmatprep.subr.mxu0 0.0
        %2714 = vmatpush1.msra.mxu0 0.0
        %2715 = vmatprep.subr.mxu0 0.0
        %2716 = vmatpush1.msra.mxu0 0.0
        %2717 = vmatprep.subr.mxu0 0.0
        %2718 = vmatpush1.msra.mxu0 0.0
        %2719 = vmatprep.subr.mxu0 0.0
        %2720 = vmatpush1.msra.mxu0 0.0
        %2721 = vmatprep.subr.mxu0 0.0
        %2722 = vmatpush1.msra.mxu0 0.0
        %2723 = vmatprep.subr.mxu0 0.0
        %2724 = vmatpush1.msra.mxu0 0.0
        %2725 = vmatprep.mubr.f32.mxu0 0.0
        %2726 = vmatmul.mubr.f32.gmra.mrb[0].mxu0 %v2646
        %v2727 = vpop.f32.mrb[0].mxu0
        %v2728 = vadd.f32 0.0, %v2727
        %v2729 = vpop.f32.mrb[0].mxu0
        %v2730 = vadd.f32 0.0, %v2729
        %2731 = vdwg.mxu0
        %2732 = vmatprep.subr.mxu0 %v524
        %2733 = vmatpush1.msra.mxu0 %v523
        %2734 = vmatprep.subr.mxu0 %v528
        %2735 = vmatpush1.msra.mxu0 %v527
        %2736 = vmatprep.subr.mxu0 %v2659
        %2737 = vmatpush1.msra.mxu0 %v2656
        %2738 = vmatprep.subr.mxu0 0.0
        %2739 = vmatpush1.msra.mxu0 0.0
        %2740 = vmatprep.subr.mxu0 0.0
        %2741 = vmatpush1.msra.mxu0 0.0
        %2742 = vmatprep.subr.mxu0 0.0
        %2743 = vmatpush1.msra.mxu0 0.0
        %2744 = vmatprep.subr.mxu0 0.0
        %2745 = vmatpush1.msra.mxu0 0.0
        %2746 = vmatprep.subr.mxu0 0.0
        %2747 = vmatpush1.msra.mxu0 0.0
        %2748 = vmatprep.subr.mxu0 0.0
        %2749 = vmatpush1.msra.mxu0 0.0
        %2750 = vmatprep.subr.mxu0 0.0
        %2751 = vmatpush1.msra.mxu0 0.0
        %2752 = vmatprep.subr.mxu0 0.0
        %2753 = vmatpush1.msra.mxu0 0.0
        %2754 = vmatprep.subr.mxu0 0.0
        %2755 = vmatpush1.msra.mxu0 0.0
        %2756 = vmatprep.subr.mxu0 0.0
        %2757 = vmatpush1.msra.mxu0 0.0
        %2758 = vmatprep.subr.mxu0 0.0
        %2759 = vmatpush1.msra.mxu0 0.0
        %2760 = vmatprep.subr.mxu0 0.0
        %2761 = vmatpush1.msra.mxu0 0.0
        %2762 = vmatprep.subr.mxu0 0.0
        %2763 = vmatpush1.msra.mxu0 0.0
        %2764 = vmatprep.subr.mxu0 0.0
        %2765 = vmatpush1.msra.mxu0 0.0
        %2766 = vmatprep.subr.mxu0 0.0
        %2767 = vmatpush1.msra.mxu0 0.0
        %2768 = vmatprep.subr.mxu0 0.0
        %2769 = vmatpush1.msra.mxu0 0.0
        %2770 = vmatprep.subr.mxu0 0.0
        %2771 = vmatpush1.msra.mxu0 0.0
        %2772 = vmatprep.subr.mxu0 0.0
        %2773 = vmatpush1.msra.mxu0 0.0
        %2774 = vmatprep.subr.mxu0 0.0
        %2775 = vmatpush1.msra.mxu0 0.0
        %2776 = vmatprep.subr.mxu0 0.0
        %2777 = vmatpush1.msra.mxu0 0.0
        %2778 = vmatprep.subr.mxu0 0.0
        %2779 = vmatpush1.msra.mxu0 0.0
        %2780 = vmatprep.subr.mxu0 0.0
        %2781 = vmatpush1.msra.mxu0 0.0
        %2782 = vmatprep.subr.mxu0 0.0
        %2783 = vmatpush1.msra.mxu0 0.0
        %2784 = vmatprep.subr.mxu0 0.0
        %2785 = vmatpush1.msra.mxu0 0.0
        %2786 = vmatprep.subr.mxu0 0.0
        %2787 = vmatpush1.msra.mxu0 0.0
        %2788 = vmatprep.subr.mxu0 0.0
        %2789 = vmatpush1.msra.mxu0 0.0
        %2790 = vmatprep.subr.mxu0 0.0
        %2791 = vmatpush1.msra.mxu0 0.0
        %2792 = vmatprep.subr.mxu0 0.0
        %2793 = vmatpush1.msra.mxu0 0.0
        %2794 = vmatprep.subr.mxu0 0.0
        %2795 = vmatpush1.msra.mxu0 0.0
        %2796 = vmatprep.mubr.f32.mxu0 0.0
        %2797 = vmatmul.mubr.f32.gmra.mrb[0].mxu0 %v2646
        %v2798 = vpop.f32.mrb[0].mxu0
        %v2799 = vadd.f32 0.0, %v2798
        %v2800 = vpop.f32.mrb[0].mxu0
        %v2801 = vadd.f32 0.0, %v2800
        %2802 = vdwg.mxu0
        %2803 = vmatprep.subr.mxu0 %v2514
        %2804 = vmatpush1.msra.mxu0 %v2513
        %2805 = vmatprep.subr.mxu0 %v2518
        %2806 = vmatpush1.msra.mxu0 %v2517
        %2807 = vmatprep.subr.mxu0 %v2522
        %2808 = vmatpush1.msra.mxu0 %v2521
        %2809 = vmatprep.subr.mxu0 %v2526
        %2810 = vmatpush1.msra.mxu0 %v2525
        %2811 = vmatprep.subr.mxu0 %v2530
        %2812 = vmatpush1.msra.mxu0 %v2529
        %2813 = vmatprep.subr.mxu0 %v2534
        %2814 = vmatpush1.msra.mxu0 %v2533
        %2815 = vmatprep.subr.mxu0 %v2538
        %2816 = vmatpush1.msra.mxu0 %v2537
        %2817 = vmatprep.subr.mxu0 %v2542
        %2818 = vmatpush1.msra.mxu0 %v2541
        %2819 = vmatprep.subr.mxu0 %v2546
        %2820 = vmatpush1.msra.mxu0 %v2545
        %2821 = vmatprep.subr.mxu0 %v2550
        %2822 = vmatpush1.msra.mxu0 %v2549
        %2823 = vmatprep.subr.mxu0 %v2554
        %2824 = vmatpush1.msra.mxu0 %v2553
        %2825 = vmatprep.subr.mxu0 %v2558
        %2826 = vmatpush1.msra.mxu0 %v2557
        %2827 = vmatprep.subr.mxu0 %v2562
        %2828 = vmatpush1.msra.mxu0 %v2561
        %2829 = vmatprep.subr.mxu0 %v2566
        %2830 = vmatpush1.msra.mxu0 %v2565
        %2831 = vmatprep.subr.mxu0 %v2570
        %2832 = vmatpush1.msra.mxu0 %v2569
        %2833 = vmatprep.subr.mxu0 %v2574
        %2834 = vmatpush1.msra.mxu0 %v2573
        %2835 = vmatprep.subr.mxu0 %v2578
        %2836 = vmatpush1.msra.mxu0 %v2577
        %2837 = vmatprep.subr.mxu0 %v2582
        %2838 = vmatpush1.msra.mxu0 %v2581
        %2839 = vmatprep.subr.mxu0 %v2586
        %2840 = vmatpush1.msra.mxu0 %v2585
        %2841 = vmatprep.subr.mxu0 %v2590
        %2842 = vmatpush1.msra.mxu0 %v2589
        %2843 = vmatprep.subr.mxu0 %v2594
        %2844 = vmatpush1.msra.mxu0 %v2593
        %2845 = vmatprep.subr.mxu0 %v2598
        %2846 = vmatpush1.msra.mxu0 %v2597
        %2847 = vmatprep.subr.mxu0 %v2602
        %2848 = vmatpush1.msra.mxu0 %v2601
        %2849 = vmatprep.subr.mxu0 %v2606
        %2850 = vmatpush1.msra.mxu0 %v2605
        %2851 = vmatprep.subr.mxu0 %v2610
        %2852 = vmatpush1.msra.mxu0 %v2609
        %2853 = vmatprep.subr.mxu0 %v2614
        %2854 = vmatpush1.msra.mxu0 %v2613
        %2855 = vmatprep.subr.mxu0 %v2618
        %2856 = vmatpush1.msra.mxu0 %v2617
        %2857 = vmatprep.subr.mxu0 %v2622
        %2858 = vmatpush1.msra.mxu0 %v2621
        %2859 = vmatprep.subr.mxu0 %v2626
        %2860 = vmatpush1.msra.mxu0 %v2625
        %2861 = vmatprep.subr.mxu0 %v2630
        %2862 = vmatpush1.msra.mxu0 %v2629
        %2863 = vmatprep.subr.mxu0 %v2634
        %2864 = vmatpush1.msra.mxu0 %v2633
        %2865 = vmatprep.subr.mxu0 %v2638
        %2866 = vmatpush1.msra.mxu0 %v2637
        %2867 = vmatprep.mubr.f32.mxu0 %v2642
        %2868 = vmatmul.mubr.f32.gmra.mrb[0].mxu0 %v2641
        %v2869 = vpop.f32.mrb[0].mxu0
        %v2870 = vadd.f32 %v2728, %v2869
        %v2871 = vpop.f32.mrb[0].mxu0
        %v2872 = vadd.f32 %v2730, %v2871
        %2873 = vdwg.mxu0
        %2874 = vmatprep.subr.mxu0 %v2516
        %2875 = vmatpush1.msra.mxu0 %v2515
        %2876 = vmatprep.subr.mxu0 %v2520
        %2877 = vmatpush1.msra.mxu0 %v2519
        %2878 = vmatprep.subr.mxu0 %v2524
        %2879 = vmatpush1.msra.mxu0 %v2523
        %2880 = vmatprep.subr.mxu0 %v2528
        %2881 = vmatpush1.msra.mxu0 %v2527
        %2882 = vmatprep.subr.mxu0 %v2532
        %2883 = vmatpush1.msra.mxu0 %v2531
        %2884 = vmatprep.subr.mxu0 %v2536
        %2885 = vmatpush1.msra.mxu0 %v2535
        %2886 = vmatprep.subr.mxu0 %v2540
        %2887 = vmatpush1.msra.mxu0 %v2539
        %2888 = vmatprep.subr.mxu0 %v2544
        %2889 = vmatpush1.msra.mxu0 %v2543
        %2890 = vmatprep.subr.mxu0 %v2548
        %2891 = vmatpush1.msra.mxu0 %v2547
        %2892 = vmatprep.subr.mxu0 %v2552
        %2893 = vmatpush1.msra.mxu0 %v2551
        %2894 = vmatprep.subr.mxu0 %v2556
        %2895 = vmatpush1.msra.mxu0 %v2555
        %2896 = vmatprep.subr.mxu0 %v2560
        %2897 = vmatpush1.msra.mxu0 %v2559
        %2898 = vmatprep.subr.mxu0 %v2564
        %2899 = vmatpush1.msra.mxu0 %v2563
        %2900 = vmatprep.subr.mxu0 %v2568
        %2901 = vmatpush1.msra.mxu0 %v2567
        %2902 = vmatprep.subr.mxu0 %v2572
        %2903 = vmatpush1.msra.mxu0 %v2571
        %2904 = vmatprep.subr.mxu0 %v2576
        %2905 = vmatpush1.msra.mxu0 %v2575
        %2906 = vmatprep.subr.mxu0 %v2580
        %2907 = vmatpush1.msra.mxu0 %v2579
        %2908 = vmatprep.subr.mxu0 %v2584
        %2909 = vmatpush1.msra.mxu0 %v2583
        %2910 = vmatprep.subr.mxu0 %v2588
        %2911 = vmatpush1.msra.mxu0 %v2587
        %2912 = vmatprep.subr.mxu0 %v2592
        %2913 = vmatpush1.msra.mxu0 %v2591
        %2914 = vmatprep.subr.mxu0 %v2596
        %2915 = vmatpush1.msra.mxu0 %v2595
        %2916 = vmatprep.subr.mxu0 %v2600
        %2917 = vmatpush1.msra.mxu0 %v2599
        %2918 = vmatprep.subr.mxu0 %v2604
        %2919 = vmatpush1.msra.mxu0 %v2603
        %2920 = vmatprep.subr.mxu0 %v2608
        %2921 = vmatpush1.msra.mxu0 %v2607
        %2922 = vmatprep.subr.mxu0 %v2612
        %2923 = vmatpush1.msra.mxu0 %v2611
        %2924 = vmatprep.subr.mxu0 %v2616
        %2925 = vmatpush1.msra.mxu0 %v2615
        %2926 = vmatprep.subr.mxu0 %v2620
        %2927 = vmatpush1.msra.mxu0 %v2619
        %2928 = vmatprep.subr.mxu0 %v2624
        %2929 = vmatpush1.msra.mxu0 %v2623
        %2930 = vmatprep.subr.mxu0 %v2628
        %2931 = vmatpush1.msra.mxu0 %v2627
        %2932 = vmatprep.subr.mxu0 %v2632
        %2933 = vmatpush1.msra.mxu0 %v2631
        %2934 = vmatprep.subr.mxu0 %v2636
        %2935 = vmatpush1.msra.mxu0 %v2635
        %2936 = vmatprep.subr.mxu0 %v2640
        %2937 = vmatpush1.msra.mxu0 %v2639
        %2938 = vmatprep.mubr.f32.mxu0 %v2642
        %2939 = vmatmul.mubr.f32.gmra.mrb[0].mxu0 %v2641
        %v2940 = vpop.f32.mrb[0].mxu0
        %v2941 = vadd.f32 %v2799, %v2940
        %v2942 = vpop.f32.mrb[0].mxu0
        %v2943 = vadd.f32 %v2801, %v2942
        %2944 = vdwg.mxu0
        %v2945 = vld [vmem:[%s4] sm:$0xff]
        %2947 = vset.pattern.permute.xlu0 0
        %2948 = vperm.xlu0 %2947, %v2945
        %v2949 = vpop.permute.xlu0 %2948
        %v2951 = vadd.f32 %v2870, %v2949
        %v2952 = vadd.f32 %v2872, %v2949
        %v2953 = vadd.f32 %v2941, %v2949
        %v2954 = vadd.f32 %v2943, %v2949
        %v2955 = vsub.f32 0.0, %v2951
        %v2956 = vsub.f32 0.0, %v2952
        %v2957 = vsub.f32 0.0, %v2953
        %v2958 = vsub.f32 0.0, %v2954
        %v2959 = vmul.f32 %v2955, 1.442695
        %v2960 = vpow.pop %v2959
        %v2961 = vmul.f32 %v2956, 1.442695
        %v2962 = vpow.pop %v2961
        %v2963 = vmul.f32 %v2957, 1.442695
        %v2964 = vpow.pop %v2963
        %v2965 = vmul.f32 %v2958, 1.442695
        %v2966 = vpow.pop %v2965
        %v2967 = vadd.f32 %v2960, 1.0
        %v2968 = vadd.f32 %v2962, 1.0
        %v2969 = vadd.f32 %v2964, 1.0
        %v2970 = vadd.f32 %v2966, 1.0
        %v2971 = vrcp.pop %v2967
        %v2972 = vmul.f32 1.0, %v2971
        %v2973 = vrcp.pop %v2968
        %v2974 = vmul.f32 1.0, %v2973
        %v2975 = vrcp.pop %v2969
        %v2976 = vmul.f32 1.0, %v2975
        %v2977 = vrcp.pop %v2970
        %v2978 = vmul.f32 1.0, %v2977
        %v2979 = vmul.f32 %v2951, %v2972
        %v2980 = vmul.f32 %v2952, %v2974
        %v2981 = vmul.f32 %v2953, %v2976
        %v2982 = vmul.f32 %v2954, %v2978
        %v2983 = vld [vmem:[%s5] sm:$0xff]
        %v2984 = vld [vmem:[%s6] sm:$0xff]
        %2986 = vset.pattern.permute.xlu0 0
        %2987 = vperm.xlu0 %2986, %v2984
        %v2988 = vpop.permute.xlu0 %2987
        %vm2990 = vcmask 64512
        %v2992 = vsel %vm2990, %v2983, 0
        %2994 = vmatprep.subr.mxu0 %v2980
        %2995 = vmatpush1.msra.mxu0 %v2979
        %2996 = vmatprep.subr.mxu0 0.0
        %2997 = vmatpush1.msra.mxu0 0.0
        %2998 = vmatprep.subr.mxu0 0.0
        %2999 = vmatpush1.msra.mxu0 0.0
        %3000 = vmatprep.subr.mxu0 0.0
        %3001 = vmatpush1.msra.mxu0 0.0
        %3002 = vmatprep.subr.mxu0 0.0
        %3003 = vmatpush1.msra.mxu0 0.0
        %3004 = vmatprep.subr.mxu0 0.0
        %3005 = vmatpush1.msra.mxu0 0.0
        %3006 = vmatprep.subr.mxu0 0.0
        %3007 = vmatpush1.msra.mxu0 0.0
        %3008 = vmatprep.subr.mxu0 0.0
        %3009 = vmatpush1.msra.mxu0 0.0
        %3010 = vmatprep.subr.mxu0 0.0
        %3011 = vmatpush1.msra.mxu0 0.0
        %3012 = vmatprep.subr.mxu0 0.0
        %3013 = vmatpush1.msra.mxu0 0.0
        %3014 = vmatprep.subr.mxu0 0.0
        %3015 = vmatpush1.msra.mxu0 0.0
        %3016 = vmatprep.subr.mxu0 0.0
        %3017 = vmatpush1.msra.mxu0 0.0
        %3018 = vmatprep.subr.mxu0 0.0
        %3019 = vmatpush1.msra.mxu0 0.0
        %3020 = vmatprep.subr.mxu0 0.0
        %3021 = vmatpush1.msra.mxu0 0.0
        %3022 = vmatprep.subr.mxu0 0.0
        %3023 = vmatpush1.msra.mxu0 0.0
        %3024 = vmatprep.subr.mxu0 0.0
        %3025 = vmatpush1.msra.mxu0 0.0
        %3026 = vmatprep.subr.mxu0 0.0
        %3027 = vmatpush1.msra.mxu0 0.0
        %3028 = vmatprep.subr.mxu0 0.0
        %3029 = vmatpush1.msra.mxu0 0.0
        %3030 = vmatprep.subr.mxu0 0.0
        %3031 = vmatpush1.msra.mxu0 0.0
        %3032 = vmatprep.subr.mxu0 0.0
        %3033 = vmatpush1.msra.mxu0 0.0
        %3034 = vmatprep.subr.mxu0 0.0
        %3035 = vmatpush1.msra.mxu0 0.0
        %3036 = vmatprep.subr.mxu0 0.0
        %3037 = vmatpush1.msra.mxu0 0.0
        %3038 = vmatprep.subr.mxu0 0.0
        %3039 = vmatpush1.msra.mxu0 0.0
        %3040 = vmatprep.subr.mxu0 0.0
        %3041 = vmatpush1.msra.mxu0 0.0
        %3042 = vmatprep.subr.mxu0 0.0
        %3043 = vmatpush1.msra.mxu0 0.0
        %3044 = vmatprep.subr.mxu0 0.0
        %3045 = vmatpush1.msra.mxu0 0.0
        %3046 = vmatprep.subr.mxu0 0.0
        %3047 = vmatpush1.msra.mxu0 0.0
        %3048 = vmatprep.subr.mxu0 0.0
        %3049 = vmatpush1.msra.mxu0 0.0
        %3050 = vmatprep.subr.mxu0 0.0
        %3051 = vmatpush1.msra.mxu0 0.0
        %3052 = vmatprep.subr.mxu0 0.0
        %3053 = vmatpush1.msra.mxu0 0.0
        %3054 = vmatprep.subr.mxu0 0.0
        %3055 = vmatpush1.msra.mxu0 0.0
        %3056 = vmatprep.subr.mxu0 0.0
        %3057 = vmatpush1.msra.mxu0 0.0
        %3058 = vmatprep.mubr.f32.mxu0 0.0
        %3059 = vmatmul.mubr.f32.gmra.mrb[0].mxu0 %v2992
        %v3060 = vpop.f32.mrb[0].mxu0
        %v3061 = vadd.f32 %v2988, %v3060
        %v3062 = vpop.f32.mrb[0].mxu0
        %v3063 = vadd.f32 %v2988, %v3062
        %3064 = vdwg.mxu0
        %3065 = vmatprep.subr.mxu0 %v2982
        %3066 = vmatpush1.msra.mxu0 %v2981
        %3067 = vmatprep.subr.mxu0 0.0
        %3068 = vmatpush1.msra.mxu0 0.0
        %3069 = vmatprep.subr.mxu0 0.0
        %3070 = vmatpush1.msra.mxu0 0.0
        %3071 = vmatprep.subr.mxu0 0.0
        %3072 = vmatpush1.msra.mxu0 0.0
        %3073 = vmatprep.subr.mxu0 0.0
        %3074 = vmatpush1.msra.mxu0 0.0
        %3075 = vmatprep.subr.mxu0 0.0
        %3076 = vmatpush1.msra.mxu0 0.0
        %3077 = vmatprep.subr.mxu0 0.0
        %3078 = vmatpush1.msra.mxu0 0.0
        %3079 = vmatprep.subr.mxu0 0.0
        %3080 = vmatpush1.msra.mxu0 0.0
        %3081 = vmatprep.subr.mxu0 0.0
        %3082 = vmatpush1.msra.mxu0 0.0
        %3083 = vmatprep.subr.mxu0 0.0
        %3084 = vmatpush1.msra.mxu0 0.0
        %3085 = vmatprep.subr.mxu0 0.0
        %3086 = vmatpush1.msra.mxu0 0.0
        %3087 = vmatprep.subr.mxu0 0.0
        %3088 = vmatpush1.msra.mxu0 0.0
        %3089 = vmatprep.subr.mxu0 0.0
        %3090 = vmatpush1.msra.mxu0 0.0
        %3091 = vmatprep.subr.mxu0 0.0
        %3092 = vmatpush1.msra.mxu0 0.0
        %3093 = vmatprep.subr.mxu0 0.0
        %3094 = vmatpush1.msra.mxu0 0.0
        %3095 = vmatprep.subr.mxu0 0.0
        %3096 = vmatpush1.msra.mxu0 0.0
        %3097 = vmatprep.subr.mxu0 0.0
        %3098 = vmatpush1.msra.mxu0 0.0
        %3099 = vmatprep.subr.mxu0 0.0
        %3100 = vmatpush1.msra.mxu0 0.0
        %3101 = vmatprep.subr.mxu0 0.0
        %3102 = vmatpush1.msra.mxu0 0.0
        %3103 = vmatprep.subr.mxu0 0.0
        %3104 = vmatpush1.msra.mxu0 0.0
        %3105 = vmatprep.subr.mxu0 0.0
        %3106 = vmatpush1.msra.mxu0 0.0
        %3107 = vmatprep.subr.mxu0 0.0
        %3108 = vmatpush1.msra.mxu0 0.0
        %3109 = vmatprep.subr.mxu0 0.0
        %3110 = vmatpush1.msra.mxu0 0.0
        %3111 = vmatprep.subr.mxu0 0.0
        %3112 = vmatpush1.msra.mxu0 0.0
        %3113 = vmatprep.subr.mxu0 0.0
        %3114 = vmatpush1.msra.mxu0 0.0
        %3115 = vmatprep.subr.mxu0 0.0
        %3116 = vmatpush1.msra.mxu0 0.0
        %3117 = vmatprep.subr.mxu0 0.0
        %3118 = vmatpush1.msra.mxu0 0.0
        %3119 = vmatprep.subr.mxu0 0.0
        %3120 = vmatpush1.msra.mxu0 0.0
        %3121 = vmatprep.subr.mxu0 0.0
        %3122 = vmatpush1.msra.mxu0 0.0
        %3123 = vmatprep.subr.mxu0 0.0
        %3124 = vmatpush1.msra.mxu0 0.0
        %3125 = vmatprep.subr.mxu0 0.0
        %3126 = vmatpush1.msra.mxu0 0.0
        %3127 = vmatprep.subr.mxu0 0.0
        %3128 = vmatpush1.msra.mxu0 0.0
        %3129 = vmatprep.mubr.f32.mxu0 0.0
        %3130 = vmatmul.mubr.f32.gmra.mrb[0].mxu0 %v2992
        %v3131 = vpop.f32.mrb[0].mxu0
        %v3132 = vadd.f32 %v2988, %v3131
        %v3133 = vpop.f32.mrb[0].mxu0
        %v3134 = vadd.f32 %v2988, %v3133
        %3135 = vdwg.mxu0
        %v3136 = vsub.f32 0.0, %v3061
        %v3137 = vsub.f32 0.0, %v3063
        %v3138 = vsub.f32 0.0, %v3132
        %v3139 = vsub.f32 0.0, %v3134
        %v3140 = vmul.f32 %v3136, 1.442695
        %v3141 = vpow.pop %v3140
        %v3142 = vmul.f32 %v3137, 1.442695
        %v3143 = vpow.pop %v3142
        %v3144 = vmul.f32 %v3138, 1.442695
        %v3145 = vpow.pop %v3144
        %v3146 = vmul.f32 %v3139, 1.442695
        %v3147 = vpow.pop %v3146
        %v3148 = vadd.f32 %v3141, 1.0
        %v3149 = vadd.f32 %v3143, 1.0
        %v3150 = vadd.f32 %v3145, 1.0
        %v3151 = vadd.f32 %v3147, 1.0
        %v3152 = vrcp.pop %v3148
        %v3153 = vmul.f32 1.0, %v3152
        %v3154 = vrcp.pop %v3149
        %v3155 = vmul.f32 1.0, %v3154
        %v3156 = vrcp.pop %v3150
        %v3157 = vmul.f32 1.0, %v3156
        %v3158 = vrcp.pop %v3151
        %v3159 = vmul.f32 1.0, %v3158
        %v3160 = vmul.f32 %v3061, %v3153
        %v3161 = vmul.f32 %v3063, %v3155
        %v3162 = vmul.f32 %v3132, %v3157
        %v3163 = vmul.f32 %v3134, %v3159
        %v3164 = vld [vmem:[%s7] sm:$0xff]
        %v3165 = vld [vmem:[%s7 + $0x8] sm:$0xff]
        %v3166 = vld [vmem:[%s7 + $0x10] sm:$0xff]
        %v3167 = vld [vmem:[%s7 + $0x18] sm:$0xff]
        %v3168 = vld [vmem:[%s7 + $0x20] sm:$0xff]
        %v3169 = vld [vmem:[%s7 + $0x28] sm:$0xff]
        %v3170 = vld [vmem:[%s7 + $0x30] sm:$0xff]
        %v3171 = vld [vmem:[%s7 + $0x38] sm:$0xff]
        %v3172 = vld [vmem:[%s7 + $0x40] sm:$0xff]
        %v3173 = vld [vmem:[%s7 + $0x48] sm:$0xff]
        %v3174 = vld [vmem:[%s7 + $0x50] sm:$0xff]
        %v3175 = vld [vmem:[%s8] sm:$0xff]
        %v3176 = vld [vmem:[%s8 + $0x8] sm:$0xff]
        %v3177 = vld [vmem:[%s8 + $0x10] sm:$0xff]
        %v3178 = vld [vmem:[%s8 + $0x18] sm:$0xff]
        %v3179 = vld [vmem:[%s8 + $0x20] sm:$0xff]
        %v3180 = vld [vmem:[%s8 + $0x28] sm:$0xff]
        %v3181 = vld [vmem:[%s8 + $0x30] sm:$0xff]
        %v3182 = vld [vmem:[%s8 + $0x38] sm:$0xff]
        %v3183 = vld [vmem:[%s8 + $0x40] sm:$0xff]
        %v3184 = vld [vmem:[%s8 + $0x48] sm:$0xff]
        %v3185 = vld [vmem:[%s8 + $0x50] sm:$0xff]
        %3187 = vset.pattern.permute.xlu0 0
        %3188 = vperm.xlu0 %3187, %v3175
        %v3189 = vpop.permute.xlu0 %3188
        %3192 = vset.pattern.permute.xlu0 0
        %3193 = vperm.xlu0 %3192, %v3176
        %v3194 = vpop.permute.xlu0 %3193
        %3197 = vset.pattern.permute.xlu0 0
        %3198 = vperm.xlu0 %3197, %v3177
        %v3199 = vpop.permute.xlu0 %3198
        %3202 = vset.pattern.permute.xlu0 0
        %3203 = vperm.xlu0 %3202, %v3178
        %v3204 = vpop.permute.xlu0 %3203
        %3207 = vset.pattern.permute.xlu0 0
        %3208 = vperm.xlu0 %3207, %v3179
        %v3209 = vpop.permute.xlu0 %3208
        %3212 = vset.pattern.permute.xlu0 0
        %3213 = vperm.xlu0 %3212, %v3180
        %v3214 = vpop.permute.xlu0 %3213
        %3217 = vset.pattern.permute.xlu0 0
        %3218 = vperm.xlu0 %3217, %v3181
        %v3219 = vpop.permute.xlu0 %3218
        %3222 = vset.pattern.permute.xlu0 0
        %3223 = vperm.xlu0 %3222, %v3182
        %v3224 = vpop.permute.xlu0 %3223
        %3227 = vset.pattern.permute.xlu0 0
        %3228 = vperm.xlu0 %3227, %v3183
        %v3229 = vpop.permute.xlu0 %3228
        %3232 = vset.pattern.permute.xlu0 0
        %3233 = vperm.xlu0 %3232, %v3184
        %v3234 = vpop.permute.xlu0 %3233
        %3237 = vset.pattern.permute.xlu0 0
        %3238 = vperm.xlu0 %3237, %v3185
        %v3239 = vpop.permute.xlu0 %3238
        %v3242 = vsel %vm2990, %v3164, 0
        %v3245 = vsel %vm2990, %v3165, 0
        %v3248 = vsel %vm2990, %v3166, 0
        %v3251 = vsel %vm2990, %v3167, 0
        %v3254 = vsel %vm2990, %v3168, 0
        %v3257 = vsel %vm2990, %v3169, 0
        %v3260 = vsel %vm2990, %v3170, 0
        %v3263 = vsel %vm2990, %v3171, 0
        %v3266 = vsel %vm2990, %v3172, 0
        %v3269 = vsel %vm2990, %v3173, 0
        %v3272 = vsel %vm2990, %v3174, 0
        %3274 = vmatprep.subr.mxu0 %v3161
        %3275 = vmatpush1.msra.mxu0 %v3160
        %3276 = vmatprep.subr.mxu0 0.0
        %3277 = vmatpush1.msra.mxu0 0.0
        %3278 = vmatprep.subr.mxu0 0.0
        %3279 = vmatpush1.msra.mxu0 0.0
        %3280 = vmatprep.subr.mxu0 0.0
        %3281 = vmatpush1.msra.mxu0 0.0
        %3282 = vmatprep.subr.mxu0 0.0
        %3283 = vmatpush1.msra.mxu0 0.0
        %3284 = vmatprep.subr.mxu0 0.0
        %3285 = vmatpush1.msra.mxu0 0.0
        %3286 = vmatprep.subr.mxu0 0.0
        %3287 = vmatpush1.msra.mxu0 0.0
        %3288 = vmatprep.subr.mxu0 0.0
        %3289 = vmatpush1.msra.mxu0 0.0
        %3290 = vmatprep.subr.mxu0 0.0
        %3291 = vmatpush1.msra.mxu0 0.0
        %3292 = vmatprep.subr.mxu0 0.0
        %3293 = vmatpush1.msra.mxu0 0.0
        %3294 = vmatprep.subr.mxu0 0.0
        %3295 = vmatpush1.msra.mxu0 0.0
        %3296 = vmatprep.subr.mxu0 0.0
        %3297 = vmatpush1.msra.mxu0 0.0
        %3298 = vmatprep.subr.mxu0 0.0
        %3299 = vmatpush1.msra.mxu0 0.0
        %3300 = vmatprep.subr.mxu0 0.0
        %3301 = vmatpush1.msra.mxu0 0.0
        %3302 = vmatprep.subr.mxu0 0.0
        %3303 = vmatpush1.msra.mxu0 0.0
        %3304 = vmatprep.subr.mxu0 0.0
        %3305 = vmatpush1.msra.mxu0 0.0
        %3306 = vmatprep.subr.mxu0 0.0
        %3307 = vmatpush1.msra.mxu0 0.0
        %3308 = vmatprep.subr.mxu0 0.0
        %3309 = vmatpush1.msra.mxu0 0.0
        %3310 = vmatprep.subr.mxu0 0.0
        %3311 = vmatpush1.msra.mxu0 0.0
        %3312 = vmatprep.subr.mxu0 0.0
        %3313 = vmatpush1.msra.mxu0 0.0
        %3314 = vmatprep.subr.mxu0 0.0
        %3315 = vmatpush1.msra.mxu0 0.0
        %3316 = vmatprep.subr.mxu0 0.0
        %3317 = vmatpush1.msra.mxu0 0.0
        %3318 = vmatprep.subr.mxu0 0.0
        %3319 = vmatpush1.msra.mxu0 0.0
        %3320 = vmatprep.subr.mxu0 0.0
        %3321 = vmatpush1.msra.mxu0 0.0
        %3322 = vmatprep.subr.mxu0 0.0
        %3323 = vmatpush1.msra.mxu0 0.0
        %3324 = vmatprep.subr.mxu0 0.0
        %3325 = vmatpush1.msra.mxu0 0.0
        %3326 = vmatprep.subr.mxu0 0.0
        %3327 = vmatpush1.msra.mxu0 0.0
        %3328 = vmatprep.subr.mxu0 0.0
        %3329 = vmatpush1.msra.mxu0 0.0
        %3330 = vmatprep.subr.mxu0 0.0
        %3331 = vmatpush1.msra.mxu0 0.0
        %3332 = vmatprep.subr.mxu0 0.0
        %3333 = vmatpush1.msra.mxu0 0.0
        %3334 = vmatprep.subr.mxu0 0.0
        %3335 = vmatpush1.msra.mxu0 0.0
        %3336 = vmatprep.subr.mxu0 0.0
        %3337 = vmatpush1.msra.mxu0 0.0
        %3338 = vmatprep.mubr.f32.mxu0 0.0
        %3339 = vmatmul.mubr.f32.gmra.mrb[0].mxu0 %v3242
        %v3340 = vpop.f32.mrb[0].mxu0
        %v3341 = vadd.f32 %v3189, %v3340
        %v3342 = vpop.f32.mrb[0].mxu0
        %v3343 = vadd.f32 %v3189, %v3342
        %3344 = vmatprep.mubr.f32.mxu0 0.0
        %3345 = vmatmul.mubr.f32.gmra.mrb[0].mxu0 %v3245
        %v3346 = vpop.f32.mrb[0].mxu0
        %v3347 = vadd.f32 %v3194, %v3346
        %v3348 = vpop.f32.mrb[0].mxu0
        %v3349 = vadd.f32 %v3194, %v3348
        %3350 = vmatprep.mubr.f32.mxu0 0.0
        %3351 = vmatmul.mubr.f32.gmra.mrb[0].mxu0 %v3248
        %v3352 = vpop.f32.mrb[0].mxu0
        %v3353 = vadd.f32 %v3199, %v3352
        %v3354 = vpop.f32.mrb[0].mxu0
        %v3355 = vadd.f32 %v3199, %v3354
        %3356 = vmatprep.mubr.f32.mxu0 0.0
        %3357 = vmatmul.mubr.f32.gmra.mrb[0].mxu0 %v3251
        %v3358 = vpop.f32.mrb[0].mxu0
        %v3359 = vadd.f32 %v3204, %v3358
        %v3360 = vpop.f32.mrb[0].mxu0
        %v3361 = vadd.f32 %v3204, %v3360
        %3362 = vmatprep.mubr.f32.mxu0 0.0
        %3363 = vmatmul.mubr.f32.gmra.mrb[0].mxu0 %v3254
        %v3364 = vpop.f32.mrb[0].mxu0
        %v3365 = vadd.f32 %v3209, %v3364
        %v3366 = vpop.f32.mrb[0].mxu0
        %v3367 = vadd.f32 %v3209, %v3366
        %3368 = vmatprep.mubr.f32.mxu0 0.0
        %3369 = vmatmul.mubr.f32.gmra.mrb[0].mxu0 %v3257
        %v3370 = vpop.f32.mrb[0].mxu0
        %v3371 = vadd.f32 %v3214, %v3370
        %v3372 = vpop.f32.mrb[0].mxu0
        %v3373 = vadd.f32 %v3214, %v3372
        %3374 = vmatprep.mubr.f32.mxu0 0.0
        %3375 = vmatmul.mubr.f32.gmra.mrb[0].mxu0 %v3260
        %v3376 = vpop.f32.mrb[0].mxu0
        %v3377 = vadd.f32 %v3219, %v3376
        %v3378 = vpop.f32.mrb[0].mxu0
        %v3379 = vadd.f32 %v3219, %v3378
        %3380 = vmatprep.mubr.f32.mxu0 0.0
        %3381 = vmatmul.mubr.f32.gmra.mrb[0].mxu0 %v3263
        %v3382 = vpop.f32.mrb[0].mxu0
        %v3383 = vadd.f32 %v3224, %v3382
        %v3384 = vpop.f32.mrb[0].mxu0
        %v3385 = vadd.f32 %v3224, %v3384
        %3386 = vmatprep.mubr.f32.mxu0 0.0
        %3387 = vmatmul.mubr.f32.gmra.mrb[0].mxu0 %v3266
        %v3388 = vpop.f32.mrb[0].mxu0
        %v3389 = vadd.f32 %v3229, %v3388
        %v3390 = vpop.f32.mrb[0].mxu0
        %v3391 = vadd.f32 %v3229, %v3390
        %3392 = vmatprep.mubr.f32.mxu0 0.0
        %3393 = vmatmul.mubr.f32.gmra.mrb[0].mxu0 %v3269
        %v3394 = vpop.f32.mrb[0].mxu0
        %v3395 = vadd.f32 %v3234, %v3394
        %v3396 = vpop.f32.mrb[0].mxu0
        %v3397 = vadd.f32 %v3234, %v3396
        %3398 = vmatprep.mubr.f32.mxu0 0.0
        %3399 = vmatmul.mubr.f32.gmra.mrb[0].mxu0 %v3272
        %v3400 = vpop.f32.mrb[0].mxu0
        %v3401 = vadd.f32 %v3239, %v3400
        %v3402 = vpop.f32.mrb[0].mxu0
        %v3403 = vadd.f32 %v3239, %v3402
        %3404 = vdwg.mxu0
        %3405 = vmatprep.subr.mxu0 %v3163
        %3406 = vmatpush1.msra.mxu0 %v3162
        %3407 = vmatprep.subr.mxu0 0.0
        %3408 = vmatpush1.msra.mxu0 0.0
        %3409 = vmatprep.subr.mxu0 0.0
        %3410 = vmatpush1.msra.mxu0 0.0
        %3411 = vmatprep.subr.mxu0 0.0
        %3412 = vmatpush1.msra.mxu0 0.0
        %3413 = vmatprep.subr.mxu0 0.0
        %3414 = vmatpush1.msra.mxu0 0.0
        %3415 = vmatprep.subr.mxu0 0.0
        %3416 = vmatpush1.msra.mxu0 0.0
        %3417 = vmatprep.subr.mxu0 0.0
        %3418 = vmatpush1.msra.mxu0 0.0
        %3419 = vmatprep.subr.mxu0 0.0
        %3420 = vmatpush1.msra.mxu0 0.0
        %3421 = vmatprep.subr.mxu0 0.0
        %3422 = vmatpush1.msra.mxu0 0.0
        %3423 = vmatprep.subr.mxu0 0.0
        %3424 = vmatpush1.msra.mxu0 0.0
        %3425 = vmatprep.subr.mxu0 0.0
        %3426 = vmatpush1.msra.mxu0 0.0
        %3427 = vmatprep.subr.mxu0 0.0
        %3428 = vmatpush1.msra.mxu0 0.0
        %3429 = vmatprep.subr.mxu0 0.0
        %3430 = vmatpush1.msra.mxu0 0.0
        %3431 = vmatprep.subr.mxu0 0.0
        %3432 = vmatpush1.msra.mxu0 0.0
        %3433 = vmatprep.subr.mxu0 0.0
        %3434 = vmatpush1.msra.mxu0 0.0
        %3435 = vmatprep.subr.mxu0 0.0
        %3436 = vmatpush1.msra.mxu0 0.0
        %3437 = vmatprep.subr.mxu0 0.0
        %3438 = vmatpush1.msra.mxu0 0.0
        %3439 = vmatprep.subr.mxu0 0.0
        %3440 = vmatpush1.msra.mxu0 0.0
        %3441 = vmatprep.subr.mxu0 0.0
        %3442 = vmatpush1.msra.mxu0 0.0
        %3443 = vmatprep.subr.mxu0 0.0
        %3444 = vmatpush1.msra.mxu0 0.0
        %3445 = vmatprep.subr.mxu0 0.0
        %3446 = vmatpush1.msra.mxu0 0.0
        %3447 = vmatprep.subr.mxu0 0.0
        %3448 = vmatpush1.msra.mxu0 0.0
        %3449 = vmatprep.subr.mxu0 0.0
        %3450 = vmatpush1.msra.mxu0 0.0
        %3451 = vmatprep.subr.mxu0 0.0
        %3452 = vmatpush1.msra.mxu0 0.0
        %3453 = vmatprep.subr.mxu0 0.0
        %3454 = vmatpush1.msra.mxu0 0.0
        %3455 = vmatprep.subr.mxu0 0.0
        %3456 = vmatpush1.msra.mxu0 0.0
        %3457 = vmatprep.subr.mxu0 0.0
        %3458 = vmatpush1.msra.mxu0 0.0
        %3459 = vmatprep.subr.mxu0 0.0
        %3460 = vmatpush1.msra.mxu0 0.0
        %3461 = vmatprep.subr.mxu0 0.0
        %3462 = vmatpush1.msra.mxu0 0.0
        %3463 = vmatprep.subr.mxu0 0.0
        %3464 = vmatpush1.msra.mxu0 0.0
        %3465 = vmatprep.subr.mxu0 0.0
        %3466 = vmatpush1.msra.mxu0 0.0
        %3467 = vmatprep.subr.mxu0 0.0
        %3468 = vmatpush1.msra.mxu0 0.0
        %3469 = vmatprep.mubr.f32.mxu0 0.0
        %3470 = vmatmul.mubr.f32.gmra.mrb[0].mxu0 %v3242
        %v3471 = vpop.f32.mrb[0].mxu0
        %v3472 = vadd.f32 %v3189, %v3471
        %v3473 = vpop.f32.mrb[0].mxu0
        %v3474 = vadd.f32 %v3189, %v3473
        %3475 = vmatprep.mubr.f32.mxu0 0.0
        %3476 = vmatmul.mubr.f32.gmra.mrb[0].mxu0 %v3245
        %v3477 = vpop.f32.mrb[0].mxu0
        %v3478 = vadd.f32 %v3194, %v3477
        %v3479 = vpop.f32.mrb[0].mxu0
        %v3480 = vadd.f32 %v3194, %v3479
        %3481 = vmatprep.mubr.f32.mxu0 0.0
        %3482 = vmatmul.mubr.f32.gmra.mrb[0].mxu0 %v3248
        %v3483 = vpop.f32.mrb[0].mxu0
        %v3484 = vadd.f32 %v3199, %v3483
        %v3485 = vpop.f32.mrb[0].mxu0
        %v3486 = vadd.f32 %v3199, %v3485
        %3487 = vmatprep.mubr.f32.mxu0 0.0
        %3488 = vmatmul.mubr.f32.gmra.mrb[0].mxu0 %v3251
        %v3489 = vpop.f32.mrb[0].mxu0
        %v3490 = vadd.f32 %v3204, %v3489
        %v3491 = vpop.f32.mrb[0].mxu0
        %v3492 = vadd.f32 %v3204, %v3491
        %3493 = vmatprep.mubr.f32.mxu0 0.0
        %3494 = vmatmul.mubr.f32.gmra.mrb[0].mxu0 %v3254
        %v3495 = vpop.f32.mrb[0].mxu0
        %v3496 = vadd.f32 %v3209, %v3495
        %v3497 = vpop.f32.mrb[0].mxu0
        %v3498 = vadd.f32 %v3209, %v3497
        %3499 = vmatprep.mubr.f32.mxu0 0.0
        %3500 = vmatmul.mubr.f32.gmra.mrb[0].mxu0 %v3257
        %v3501 = vpop.f32.mrb[0].mxu0
        %v3502 = vadd.f32 %v3214, %v3501
        %v3503 = vpop.f32.mrb[0].mxu0
        %v3504 = vadd.f32 %v3214, %v3503
        %3505 = vmatprep.mubr.f32.mxu0 0.0
        %3506 = vmatmul.mubr.f32.gmra.mrb[0].mxu0 %v3260
        %v3507 = vpop.f32.mrb[0].mxu0
        %v3508 = vadd.f32 %v3219, %v3507
        %v3509 = vpop.f32.mrb[0].mxu0
        %v3510 = vadd.f32 %v3219, %v3509
        %3511 = vmatprep.mubr.f32.mxu0 0.0
        %3512 = vmatmul.mubr.f32.gmra.mrb[0].mxu0 %v3263
        %v3513 = vpop.f32.mrb[0].mxu0
        %v3514 = vadd.f32 %v3224, %v3513
        %v3515 = vpop.f32.mrb[0].mxu0
        %v3516 = vadd.f32 %v3224, %v3515
        %3517 = vmatprep.mubr.f32.mxu0 0.0
        %3518 = vmatmul.mubr.f32.gmra.mrb[0].mxu0 %v3266
        %v3519 = vpop.f32.mrb[0].mxu0
        %v3520 = vadd.f32 %v3229, %v3519
        %v3521 = vpop.f32.mrb[0].mxu0
        %v3522 = vadd.f32 %v3229, %v3521
        %3523 = vmatprep.mubr.f32.mxu0 0.0
        %3524 = vmatmul.mubr.f32.gmra.mrb[0].mxu0 %v3269
        %v3525 = vpop.f32.mrb[0].mxu0
        %v3526 = vadd.f32 %v3234, %v3525
        %v3527 = vpop.f32.mrb[0].mxu0
        %v3528 = vadd.f32 %v3234, %v3527
        %3529 = vmatprep.mubr.f32.mxu0 0.0
        %3530 = vmatmul.mubr.f32.gmra.mrb[0].mxu0 %v3272
        %v3531 = vpop.f32.mrb[0].mxu0
        %v3532 = vadd.f32 %v3239, %v3531
        %v3533 = vpop.f32.mrb[0].mxu0
        %v3534 = vadd.f32 %v3239, %v3533
        %3535 = vdwg.mxu0
        %3536 = vst [vmem:[%s492] sm:$0xff] %v3401
        %3537 = vst [vmem:[%s492 + $0x8] sm:$0xff] %v3403
        %3538 = vst [vmem:[%s492 + $0x10] sm:$0xff] %v3532
        %3539 = vst [vmem:[%s492 + $0x18] sm:$0xff] %v3534
        %v3540 = vmul.f32 %v536, %v3341
        %v3541 = vmul.f32 %v540, %v3343
        %v3542 = vmul.f32 %v544, %v3472
        %v3543 = vmul.f32 %v548, %v3474
        %v3544 = vmul.f32 %v552, %v3341
        %v3545 = vmul.f32 %v556, %v3343
        %v3546 = vmul.f32 %v560, %v3472
        %v3547 = vmul.f32 %v564, %v3474
        %v3548 = vmul.f32 %v568, %v3341
        %v3549 = vmul.f32 %v572, %v3343
        %v3550 = vmul.f32 %v576, %v3472
        %v3551 = vmul.f32 %v580, %v3474
        %v3552 = vadd.f32 %v3540, 0.0
        %v3553 = vadd.f32 %v3541, 0.0
        %v3554 = vadd.f32 %v3542, 0.0
        %v3555 = vadd.f32 %v3543, 0.0
        %v3556 = vadd.f32 %v3544, 0.0
        %v3557 = vadd.f32 %v3545, 0.0
        %v3558 = vadd.f32 %v3546, 0.0
        %v3559 = vadd.f32 %v3547, 0.0
        %v3560 = vadd.f32 %v3548, 0.0
        %v3561 = vadd.f32 %v3549, 0.0
        %v3562 = vadd.f32 %v3550, 0.0
        %v3563 = vadd.f32 %v3551, 0.0
        %v3564 = vmul.f32 %v632, %v3347
        %v3565 = vmul.f32 %v636, %v3349
        %v3566 = vmul.f32 %v640, %v3478
        %v3567 = vmul.f32 %v644, %v3480
        %v3568 = vmul.f32 %v648, %v3347
        %v3569 = vmul.f32 %v652, %v3349
        %v3570 = vmul.f32 %v656, %v3478
        %v3571 = vmul.f32 %v660, %v3480
        %v3572 = vmul.f32 %v664, %v3347
        %v3573 = vmul.f32 %v668, %v3349
        %v3574 = vmul.f32 %v672, %v3478
        %v3575 = vmul.f32 %v676, %v3480
        %v3576 = vadd.f32 %v3552, %v3564
        %v3577 = vadd.f32 %v3553, %v3565
        %v3578 = vadd.f32 %v3554, %v3566
        %v3579 = vadd.f32 %v3555, %v3567
        %v3580 = vadd.f32 %v3556, %v3568
        %v3581 = vadd.f32 %v3557, %v3569
        %v3582 = vadd.f32 %v3558, %v3570
        %v3583 = vadd.f32 %v3559, %v3571
        %v3584 = vadd.f32 %v3560, %v3572
        %v3585 = vadd.f32 %v3561, %v3573
        %v3586 = vadd.f32 %v3562, %v3574
        %v3587 = vadd.f32 %v3563, %v3575
        %v3588 = vmul.f32 %v728, %v3353
        %v3589 = vmul.f32 %v732, %v3355
        %v3590 = vmul.f32 %v736, %v3484
        %v3591 = vmul.f32 %v740, %v3486
        %v3592 = vmul.f32 %v744, %v3353
        %v3593 = vmul.f32 %v748, %v3355
        %v3594 = vmul.f32 %v752, %v3484
        %v3595 = vmul.f32 %v756, %v3486
        %v3596 = vmul.f32 %v760, %v3353
        %v3597 = vmul.f32 %v764, %v3355
        %v3598 = vmul.f32 %v768, %v3484
        %v3599 = vmul.f32 %v772, %v3486
        %v3600 = vadd.f32 %v3576, %v3588
        %v3601 = vadd.f32 %v3577, %v3589
        %v3602 = vadd.f32 %v3578, %v3590
        %v3603 = vadd.f32 %v3579, %v3591
        %v3604 = vadd.f32 %v3580, %v3592
        %v3605 = vadd.f32 %v3581, %v3593
        %v3606 = vadd.f32 %v3582, %v3594
        %v3607 = vadd.f32 %v3583, %v3595
        %v3608 = vadd.f32 %v3584, %v3596
        %v3609 = vadd.f32 %v3585, %v3597
        %v3610 = vadd.f32 %v3586, %v3598
        %v3611 = vadd.f32 %v3587, %v3599
        %v3612 = vmul.f32 %v824, %v3359
        %v3613 = vmul.f32 %v828, %v3361
        %v3614 = vmul.f32 %v832, %v3490
        %v3615 = vmul.f32 %v836, %v3492
        %v3616 = vmul.f32 %v840, %v3359
        %v3617 = vmul.f32 %v844, %v3361
        %v3618 = vmul.f32 %v848, %v3490
        %v3619 = vmul.f32 %v852, %v3492
        %v3620 = vmul.f32 %v856, %v3359
        %v3621 = vmul.f32 %v860, %v3361
        %v3622 = vmul.f32 %v864, %v3490
        %v3623 = vmul.f32 %v868, %v3492
        %v3624 = vadd.f32 %v3600, %v3612
        %v3625 = vadd.f32 %v3601, %v3613
        %v3626 = vadd.f32 %v3602, %v3614
        %v3627 = vadd.f32 %v3603, %v3615
        %v3628 = vadd.f32 %v3604, %v3616
        %v3629 = vadd.f32 %v3605, %v3617
        %v3630 = vadd.f32 %v3606, %v3618
        %v3631 = vadd.f32 %v3607, %v3619
        %v3632 = vadd.f32 %v3608, %v3620
        %v3633 = vadd.f32 %v3609, %v3621
        %v3634 = vadd.f32 %v3610, %v3622
        %v3635 = vadd.f32 %v3611, %v3623
        %v3636 = vmul.f32 %v920, %v3365
        %v3637 = vmul.f32 %v924, %v3367
        %v3638 = vmul.f32 %v928, %v3496
        %v3639 = vmul.f32 %v932, %v3498
        %v3640 = vmul.f32 %v936, %v3365
        %v3641 = vmul.f32 %v940, %v3367
        %v3642 = vmul.f32 %v944, %v3496
        %v3643 = vmul.f32 %v948, %v3498
        %v3644 = vmul.f32 %v952, %v3365
        %v3645 = vmul.f32 %v956, %v3367
        %v3646 = vmul.f32 %v960, %v3496
        %v3647 = vmul.f32 %v964, %v3498
        %v3648 = vadd.f32 %v3624, %v3636
        %v3649 = vadd.f32 %v3625, %v3637
        %v3650 = vadd.f32 %v3626, %v3638
        %v3651 = vadd.f32 %v3627, %v3639
        %v3652 = vadd.f32 %v3628, %v3640
        %v3653 = vadd.f32 %v3629, %v3641
        %v3654 = vadd.f32 %v3630, %v3642
        %v3655 = vadd.f32 %v3631, %v3643
        %v3656 = vadd.f32 %v3632, %v3644
        %v3657 = vadd.f32 %v3633, %v3645
        %v3658 = vadd.f32 %v3634, %v3646
        %v3659 = vadd.f32 %v3635, %v3647
        %v3660 = vmul.f32 %v1016, %v3371
        %v3661 = vmul.f32 %v1020, %v3373
        %v3662 = vmul.f32 %v1024, %v3502
        %v3663 = vmul.f32 %v1028, %v3504
        %v3664 = vmul.f32 %v1032, %v3371
        %v3665 = vmul.f32 %v1036, %v3373
        %v3666 = vmul.f32 %v1040, %v3502
        %v3667 = vmul.f32 %v1044, %v3504
        %v3668 = vmul.f32 %v1048, %v3371
        %v3669 = vmul.f32 %v1052, %v3373
        %v3670 = vmul.f32 %v1056, %v3502
        %v3671 = vmul.f32 %v1060, %v3504
        %v3672 = vadd.f32 %v3648, %v3660
        %v3673 = vadd.f32 %v3649, %v3661
        %v3674 = vadd.f32 %v3650, %v3662
        %v3675 = vadd.f32 %v3651, %v3663
        %v3676 = vadd.f32 %v3652, %v3664
        %v3677 = vadd.f32 %v3653, %v3665
        %v3678 = vadd.f32 %v3654, %v3666
        %v3679 = vadd.f32 %v3655, %v3667
        %v3680 = vadd.f32 %v3656, %v3668
        %v3681 = vadd.f32 %v3657, %v3669
        %v3682 = vadd.f32 %v3658, %v3670
        %v3683 = vadd.f32 %v3659, %v3671
        %v3684 = vmul.f32 %v1112, %v3377
        %v3685 = vmul.f32 %v1116, %v3379
        %v3686 = vmul.f32 %v1120, %v3508
        %v3687 = vmul.f32 %v1124, %v3510
        %v3688 = vmul.f32 %v1128, %v3377
        %v3689 = vmul.f32 %v1132, %v3379
        %v3690 = vmul.f32 %v1136, %v3508
        %v3691 = vmul.f32 %v1140, %v3510
        %v3692 = vmul.f32 %v1144, %v3377
        %v3693 = vmul.f32 %v1148, %v3379
        %v3694 = vmul.f32 %v1152, %v3508
        %v3695 = vmul.f32 %v1156, %v3510
        %v3696 = vadd.f32 %v3672, %v3684
        %v3697 = vadd.f32 %v3673, %v3685
        %v3698 = vadd.f32 %v3674, %v3686
        %v3699 = vadd.f32 %v3675, %v3687
        %v3700 = vadd.f32 %v3676, %v3688
        %v3701 = vadd.f32 %v3677, %v3689
        %v3702 = vadd.f32 %v3678, %v3690
        %v3703 = vadd.f32 %v3679, %v3691
        %v3704 = vadd.f32 %v3680, %v3692
        %v3705 = vadd.f32 %v3681, %v3693
        %v3706 = vadd.f32 %v3682, %v3694
        %v3707 = vadd.f32 %v3683, %v3695
        %v3708 = vmul.f32 %v1208, %v3383
        %v3709 = vmul.f32 %v1212, %v3385
        %v3710 = vmul.f32 %v1216, %v3514
        %v3711 = vmul.f32 %v1220, %v3516
        %v3712 = vmul.f32 %v1224, %v3383
        %v3713 = vmul.f32 %v1228, %v3385
        %v3714 = vmul.f32 %v1232, %v3514
        %v3715 = vmul.f32 %v1236, %v3516
        %v3716 = vmul.f32 %v1240, %v3383
        %v3717 = vmul.f32 %v1244, %v3385
        %v3718 = vmul.f32 %v1248, %v3514
        %v3719 = vmul.f32 %v1252, %v3516
        %v3720 = vadd.f32 %v3696, %v3708
        %v3721 = vadd.f32 %v3697, %v3709
        %v3722 = vadd.f32 %v3698, %v3710
        %v3723 = vadd.f32 %v3699, %v3711
        %v3724 = vadd.f32 %v3700, %v3712
        %v3725 = vadd.f32 %v3701, %v3713
        %v3726 = vadd.f32 %v3702, %v3714
        %v3727 = vadd.f32 %v3703, %v3715
        %v3728 = vadd.f32 %v3704, %v3716
        %v3729 = vadd.f32 %v3705, %v3717
        %v3730 = vadd.f32 %v3706, %v3718
        %v3731 = vadd.f32 %v3707, %v3719
        %v3732 = vmul.f32 %v1304, %v3389
        %v3733 = vmul.f32 %v1308, %v3391
        %v3734 = vmul.f32 %v1312, %v3520
        %v3735 = vmul.f32 %v1316, %v3522
        %v3736 = vmul.f32 %v1320, %v3389
        %v3737 = vmul.f32 %v1324, %v3391
        %v3738 = vmul.f32 %v1328, %v3520
        %v3739 = vmul.f32 %v1332, %v3522
        %v3740 = vmul.f32 %v1336, %v3389
        %v3741 = vmul.f32 %v1340, %v3391
        %v3742 = vmul.f32 %v1344, %v3520
        %v3743 = vmul.f32 %v1348, %v3522
        %v3744 = vadd.f32 %v3720, %v3732
        %v3745 = vadd.f32 %v3721, %v3733
        %v3746 = vadd.f32 %v3722, %v3734
        %v3747 = vadd.f32 %v3723, %v3735
        %v3748 = vadd.f32 %v3724, %v3736
        %v3749 = vadd.f32 %v3725, %v3737
        %v3750 = vadd.f32 %v3726, %v3738
        %v3751 = vadd.f32 %v3727, %v3739
        %v3752 = vadd.f32 %v3728, %v3740
        %v3753 = vadd.f32 %v3729, %v3741
        %v3754 = vadd.f32 %v3730, %v3742
        %v3755 = vadd.f32 %v3731, %v3743
        %v3756 = vmul.f32 %v1400, %v3395
        %v3757 = vmul.f32 %v1404, %v3397
        %v3758 = vmul.f32 %v1408, %v3526
        %v3759 = vmul.f32 %v1412, %v3528
        %v3760 = vmul.f32 %v1416, %v3395
        %v3761 = vmul.f32 %v1420, %v3397
        %v3762 = vmul.f32 %v1424, %v3526
        %v3763 = vmul.f32 %v1428, %v3528
        %v3764 = vmul.f32 %v1432, %v3395
        %v3765 = vmul.f32 %v1436, %v3397
        %v3766 = vmul.f32 %v1440, %v3526
        %v3767 = vmul.f32 %v1444, %v3528
        %v3768 = vadd.f32 %v3744, %v3756
        %v3769 = vadd.f32 %v3745, %v3757
        %v3770 = vadd.f32 %v3746, %v3758
        %v3771 = vadd.f32 %v3747, %v3759
        %v3772 = vadd.f32 %v3748, %v3760
        %v3773 = vadd.f32 %v3749, %v3761
        %v3774 = vadd.f32 %v3750, %v3762
        %v3775 = vadd.f32 %v3751, %v3763
        %v3776 = vadd.f32 %v3752, %v3764
        %v3777 = vadd.f32 %v3753, %v3765
        %v3778 = vadd.f32 %v3754, %v3766
        %v3779 = vadd.f32 %v3755, %v3767
        %3780 = vst [vmem:[%s485] sm:$0xff] %v3768
        %3781 = vst [vmem:[%s485 + $0x8] sm:$0xff] %v3769
        %3782 = vst [vmem:[%s485 + $0x10] sm:$0xff] %v3770
        %3783 = vst [vmem:[%s485 + $0x18] sm:$0xff] %v3771
        %3784 = vst [vmem:[%s485 + $0x20] sm:$0xff] %v3772
        %3785 = vst [vmem:[%s485 + $0x28] sm:$0xff] %v3773
        %3786 = vst [vmem:[%s485 + $0x30] sm:$0xff] %v3774
        %3787 = vst [vmem:[%s485 + $0x38] sm:$0xff] %v3775
        %3788 = vst [vmem:[%s485 + $0x40] sm:$0xff] %v3776
        %3789 = vst [vmem:[%s485 + $0x48] sm:$0xff] %v3777
        %3790 = vst [vmem:[%s485 + $0x50] sm:$0xff] %v3778
        %3791 = vst [vmem:[%s485 + $0x58] sm:$0xff] %v3779
        %s3792 = sand.u32 %s232, 1
        %s3793 = sand.u32 %s232, 1
        %s3794 = smul.addr %s3793, 96
        %s3795 = scalar_lea.vmem [#allocation5], %s3794
        %s3796 = sand.u32 %s258, 1
        %s3797 = scalar_lea.sflag [#allocation7], %s3796
        %s3798 = sand.u32 %s258, 1
        %s3799 = smul.addr %s3798, 32
        %s3800 = scalar_lea.vmem [#allocation6], %s3799
        // Predicated region
        $region103: #{edge_readout_forward.1} parent=93 // pred_check
          %p3801 = pneg %p242
        $region104: #{edge_readout_forward.1} parent=93 // pred_check_branch
          %3803 = sbr.rel (%p3801) target = $region106
        $region105: #{edge_readout_forward.1} parent=93 // pred_region
          %s3804 = smul.u32 4, %s25
          %s3805 = smul.addr %s3804, 8
          %s3806 = scalar_lea.vmem %s9, %s3805
          // Predicated region
          $region107: #{edge_readout_forward.1} parent=105 // pred_check
            _
          $region108: #{edge_readout_forward.1} parent=105 // pred_check_branch
            %3808 = sbr.rel (0) target = $region110
          $region109: #{edge_readout_forward.1} parent=105 // pred_region
            // Predicated region
            $region111: #{edge_readout_forward.1} parent=109 // pred_check
              _
            $region112: #{edge_readout_forward.1} parent=109 // pred_check_branch
              %3810 = sbr.rel (0) target = $region114
            $region113: #{edge_readout_forward.1} parent=109 // pred_region
              loop: start=0, step=1, limit=1
              $region115: #{edge_readout_forward.1} parent=113 // loop_pre_header
                _
              $region116: #{edge_readout_forward.1} parent=113 // loop_header
                %s3812 = sphi 0, %s3816
                %p3813 = scmp.ge.s32.totalorder %s3812, 1
                %s3817 = sphi %s3795, %s3795
                %s3818 = sphi %s3806, %s3806
              $region117: #{edge_readout_forward.1} parent=113 // loop_header_branch
                %3815 = sbr.rel (%p3813) target = $region121
              $region118: #{edge_readout_forward.1} parent=113 // loop_body
                %v3819 = vld [vmem:[%s3817] sm:$0xff]
                %3820 = vst [vmem:[%s3818] sm:$0xff] %v3819
                %v3821 = vld [vmem:[%s3817 + $0x8] sm:$0xff]
                %3822 = vst [vmem:[%s3818 + $0x8] sm:$0xff] %v3821
                %v3823 = vld [vmem:[%s3817 + $0x10] sm:$0xff]
                %3824 = vst [vmem:[%s3818 + $0x10] sm:$0xff] %v3823
                %v3825 = vld [vmem:[%s3817 + $0x18] sm:$0xff]
                %3826 = vst [vmem:[%s3818 + $0x18] sm:$0xff] %v3825
                %v3827 = vld [vmem:[%s3817 + $0x20] sm:$0xff]
                %3828 = vst [vmem:[%s3818 + $0x40] sm:$0xff] %v3827
                %v3829 = vld [vmem:[%s3817 + $0x28] sm:$0xff]
                %3830 = vst [vmem:[%s3818 + $0x48] sm:$0xff] %v3829
                %v3831 = vld [vmem:[%s3817 + $0x30] sm:$0xff]
                %3832 = vst [vmem:[%s3818 + $0x50] sm:$0xff] %v3831
                %v3833 = vld [vmem:[%s3817 + $0x38] sm:$0xff]
                %3834 = vst [vmem:[%s3818 + $0x58] sm:$0xff] %v3833
                %v3835 = vld [vmem:[%s3817 + $0x40] sm:$0xff]
                %3836 = vst [vmem:[%s3818 + $0x80] sm:$0xff] %v3835
                %v3837 = vld [vmem:[%s3817 + $0x48] sm:$0xff]
                %3838 = vst [vmem:[%s3818 + $0x88] sm:$0xff] %v3837
                %v3839 = vld [vmem:[%s3817 + $0x50] sm:$0xff]
                %3840 = vst [vmem:[%s3818 + $0x90] sm:$0xff] %v3839
                %v3841 = vld [vmem:[%s3817 + $0x58] sm:$0xff]
                %3842 = vst [vmem:[%s3818 + $0x98] sm:$0xff] %v3841
              $region119: #{edge_readout_forward.1} parent=113 // loop_footer
                %s3816 = sadd.s32 1, %s3812
              $region120: #{edge_readout_forward.1} parent=113 // loop_footer_branch
                %3811 = sbr.rel target = $region116
              $region121: #{edge_readout_forward.1} parent=113 // loop_exit
                _
            $region114: #{edge_readout_forward.1} parent=109 // pred_fallthru
              _
            // Predicated region
            $region122: #{edge_readout_forward.1} parent=109 // pred_check
              _
            $region123: #{edge_readout_forward.1} parent=109 // pred_check_branch
              %3844 = sbr.rel target = $region125
            $region124: #{edge_readout_forward.1} parent=109 // pred_region
              _
            $region125: #{edge_readout_forward.1} parent=109 // pred_fallthru
              _
          $region110: #{edge_readout_forward.1} parent=105 // pred_fallthru
            _
          %3845 = vnop
        $region106: #{edge_readout_forward.1} parent=93 // pred_fallthru
          _
        // Predicated region
        $region126: #{edge_readout_forward.1} parent=93 // pred_check
          %p3846 = pneg %p268
        $region127: #{edge_readout_forward.1} parent=93 // pred_check_branch
          %3848 = sbr.rel (%p3846) target = $region129
        $region128: #{edge_readout_forward.1} parent=93 // pred_region
          %s3849 = smul.u32 4, %s25
          %s3851 = ssub.s32 512, 512
          %3852 = vsyncadd %s3797, %s3851
          %s3853 = smul.addr %s3849, 128
          %s3854 = scalar_lea.hbm %s10, %s3853
          %s3856 = sshll.u32 %s3800, 4
          %s3857 = int_to_ptr.vmem [resolvable:$true] %s3856
          %3859 = dma.vmem_to_hbm [thread:$0]  %s3857, 512, %s3854, %s3797
        $region129: #{edge_readout_forward.1} parent=93 // pred_fallthru
          _
      $region94: #{edge_readout_forward.1} parent=5 // pred_fallthru
        _
      %p3860 = scmp.le.s32.totalorder 2, %s20
      // Predicated region
      $region130: #{edge_readout_forward.1} parent=5 // pred_check
        %p3861 = pneg %p3860
      $region131: #{edge_readout_forward.1} parent=5 // pred_check_branch
        %3863 = sbr.rel (%p3861) target = $region133
      $region132: #{edge_readout_forward.1} parent=5 // pred_region
        %s3864 = ssub.s32 %s20, 2
        // Predicated region
        $region134: #{edge_readout_forward.1} parent=132 // pred_check
          %p3865 = pneg %p248
        $region135: #{edge_readout_forward.1} parent=132 // pred_check_branch
          %3867 = sbr.rel (%p3865) target = $region137
        $region136: #{edge_readout_forward.1} parent=132 // pred_region
          %s3868 = sand.u32 %s233, 1
          %s3869 = sand.u32 %s233, 1
          %s3870 = smul.addr %s3869, 96
          %s3871 = scalar_lea.vmem [#allocation5], %s3870
        $region137: #{edge_readout_forward.1} parent=132 // pred_fallthru
          _
        // Predicated region
        $region138: #{edge_readout_forward.1} parent=132 // pred_check
          %p3872 = pneg %p274
        $region139: #{edge_readout_forward.1} parent=132 // pred_check_branch
          %3874 = sbr.rel (%p3872) target = $region141
        $region140: #{edge_readout_forward.1} parent=132 // pred_region
          %s3875 = sand.u32 %s259, 1
          %s3876 = scalar_lea.sflag [#allocation7], %s3875
          %s3877 = sand.u32 %s259, 1
          %s3878 = smul.addr %s3877, 32
          %s3879 = scalar_lea.vmem [#allocation6], %s3878
          %3880 = dma.done %s3876, 512
        $region141: #{edge_readout_forward.1} parent=132 // pred_fallthru
          _
      $region133: #{edge_readout_forward.1} parent=5 // pred_fallthru
        _
    $region6: #{edge_readout_forward.1} parent=1 // loop_footer
      %s24 = sadd.s32 1, %s20
    $region7: #{edge_readout_forward.1} parent=1 // loop_footer_branch
      %19 = sbr.rel target = $region3
    $region8: #{edge_readout_forward.1} parent=1 // loop_exit
      _
    %3881 = vsyncpa [#allocation7], 1
    %s3882 = scalar_lea.sflag [#allocation7], 1
    %3883 = vsyncpa %s3882, 1

</llo_original>
